<compile_context>
chip_gen: v7x
topology: tpu7x:2x2x1
jax: 0.10.0
libtpu: 0.0.40
codegen_flags: <defaults>
</compile_context>

<pallas_src>
import functools
from math import sqrt

import jax
import jax.numpy as jnp
import numpy as np
from jax.experimental import pallas as pl
from jax.experimental.pallas import tpu as pltpu

_LANE = 128   # TPU vreg lane width: channel dims padded to a multiple of this
_TOP = 8      # activation interior starts at row 8 -> sublane-aligned stores


def _round_up(x, m):
    return ((x + m - 1) // m) * m


# ----------------------------------------------------------------------------
# Fused Pallas kernel: all conv(+BN)+tanh layers for ONE batch element.
# ----------------------------------------------------------------------------
def _postnet_fused_kernel(x_ref, *refs, K, T, pad, meta):
    # x_ref : (T, cin_p0)                     lane-padded, compute_dtype
    # refs  : w_0, b_0, ..., w_{L-1}, b_{L-1}, o_ref, xpad_scratch
    #   w_l : (K, cin_p_l, cout_p_l)          BN-folded, zero-padded, compute_dtype
    #   b_l : (1, cout_p_l)                   BN-folded bias (f32)
    #   o_ref: (T, cout_p_last)               lane-dense padded output
    #   xpad : (_TOP + T + pad, c_max)        compute_dtype VMEM activation slab
    L = len(meta)
    w_refs = refs[0:2 * L:2]
    b_refs = refs[1:2 * L:2]
    o_ref = refs[2 * L]
    xpad = refs[2 * L + 1]

    c_max = xpad.shape[-1]
    # Only the halo rows must be zero: they are read by every layer and never
    # written, while the interior is fully overwritten each grid step.  Zeroing
    # just 8+pad rows per step (not the whole slab) is cheap and, unlike a
    # program_id==0 guard, stays correct when the batch axis is split across
    # TensorCores (each core owns its own scratch slab).
    xpad[0:_TOP, :] = jnp.zeros((_TOP, c_max), xpad.dtype)
    xpad[_TOP + T:_TOP + T + pad, :] = jnp.zeros((pad, c_max), xpad.dtype)

    cin_p0 = meta[0][0]
    xpad[_TOP:_TOP + T, :cin_p0] = x_ref[...]   # pre-padded, pre-cast input

    base = _TOP - pad
    for l in range(L):
        cin_p, cout_p, use_tanh = meta[l]
        # K accumulated MXU dots (one per conv tap) into a single f32
        # accumulator seeded with the BN-folded bias -- no im2col concatenate.
        acc = jnp.broadcast_to(b_refs[l][...], (T, cout_p))
        for k in range(K):
            acc = acc + jnp.dot(xpad[base + k:base + k + T, :cin_p],
                                w_refs[l][k],
                                preferred_element_type=jnp.float32)
        y = jnp.tanh(acc) if use_tanh else acc   # f32 epilogue (v5e-safe)
        if l + 1 < L:
            # Keep the activation VMEM-resident for the next layer.  Padded
            # lanes stay exactly 0 (zero weight cols + zero bias -> tanh(0)=0),
            # so the next layer's contraction over cin_p lanes is exact.
            xpad[_TOP:_TOP + T, :cout_p] = y.astype(xpad.dtype)
        else:
            o_ref[...] = y.astype(o_ref.dtype)
        # TODO(synk): training-mode Dropout would need pltpu.prng_random_bits
        # masking here; identity at inference.


# ----------------------------------------------------------------------------
# Wrapper: fold BN + bias into weights, pad channels to 128 lanes, call kernel.
# ----------------------------------------------------------------------------
def _fold_and_pad_layers(layers, compute_dtype):
    """(w_oik, bias, bn_scale, bn_shift, tanh?) -> kernel-ready padded params."""
    fused = []
    for (w_oik, b, scale, shift, use_tanh) in layers:
        cout, cin, K = w_oik.shape
        cin_p = _round_up(cin, _LANE)
        cout_p = _round_up(cout, _LANE)
        w_kio = jnp.transpose(w_oik, (2, 1, 0)).astype(jnp.float32)  # (K,cin,cout)
        w_fold = w_kio * scale[None, None, :]            # fold BN scale into W
        b_fold = b.astype(jnp.float32) * scale + shift   # fold bias through BN
        w_pad = jnp.zeros((K, cin_p, cout_p), jnp.float32)
        w_pad = w_pad.at[:, :cin, :cout].set(w_fold)     # padded chans stay 0
        b_pad = jnp.zeros((1, cout_p), jnp.float32).at[:, :cout].set(b_fold)
        fused.append(dict(
            w=w_pad.astype(compute_dtype), b=b_pad,
            cin_p=cin_p, cout_p=cout_p, cout=cout,
            tanh=bool(use_tanh), K=K))
    return fused


def postnet_forward_pallas_btc(x_btc, layers, *, compute_dtype=jnp.bfloat16):
    """Channels-last entry: x_btc (B, T, C_in) -> (B, T, C_out).

    Prefer this entry when callers can supply/consume channels-last data: it
    avoids the extra HBM read+write of the NCL transpose wrapper below.
    """
    fused = _fold_and_pad_layers(layers, compute_dtype)
    K = fused[0]["K"]
    pad = (K - 1) // 2
    B, T, C_in = x_btc.shape
    cin_p0 = fused[0]["cin_p"]
    c_max = max(max(m["cin_p"], m["cout_p"]) for m in fused)
    cout_p_last = fused[-1]["cout_p"]
    cout_last = fused[-1]["cout"]
    out_dtype = x_btc.dtype

    # Lane-dense input DMA: pad channels to 128 lanes and pre-cast to
    # compute_dtype (no-op for f32; halves input DMA bytes for bf16).
    x_pad = jnp.zeros((B, T, cin_p0), compute_dtype).at[:, :, :C_in].set(
        x_btc.astype(compute_dtype))

    meta = tuple((m["cin_p"], m["cout_p"], m["tanh"]) for m in fused)
    kernel = functools.partial(_postnet_fused_kernel, K=K, T=T, pad=pad,
                               meta=meta)

    operands = [x_pad]
    for m in fused:
        operands.extend([m["w"], m["b"]])

    # --- cost estimate so XLA schedules surrounding ops correctly -----------
    flops = 2 * B * T * sum(m["K"] * m["cin_p"] * m["cout_p"] for m in fused)
    transc = B * T * sum(m["cout_p"] for m in fused if m["tanh"])
    bytes_acc = (x_pad.size * x_pad.dtype.itemsize
                 + B * T * cout_p_last * np.dtype(out_dtype).itemsize
                 + sum(m["w"].size * m["w"].dtype.itemsize for m in fused)
                 + sum(m["b"].size * 4 for m in fused))
    cost = pl.CostEstimate(flops=int(flops), transcendentals=int(transc),
                           bytes_accessed=int(bytes_acc))

    # --- VMEM budget (weights dominate at realistic postnet sizes) ----------
    itemsize = np.dtype(compute_dtype).itemsize
    w_bytes = sum(m["w"].size * m["w"].dtype.itemsize for m in fused)
    b_bytes = sum(m["b"].size * 4 for m in fused)
    slab_bytes = (_TOP + T + pad) * c_max * itemsize
    io_bytes = 2 * T * (cin_p0 * itemsize
                        + cout_p_last * np.dtype(out_dtype).itemsize)
    required = 2 * (w_bytes + b_bytes) + slab_bytes + io_bytes  # 2x: worst case
    try:
        phys_vmem = pltpu.get_tpu_info().vmem_capacity_bytes
    except Exception:
        phys_vmem = 64 * 1024 * 1024     # v7x per-core VMEM (smallest gen)
    vmem_limit = int(min(max(32 * 2**20, 1.5 * required + 8 * 2**20),
                         0.9 * phys_vmem))

    def build(single_buffer_weights):
        in_specs = [pl.BlockSpec((None, T, cin_p0), lambda b: (b, 0, 0))]
        for m in fused:
            kdim, cinp, coutp = m["w"].shape
            if single_buffer_weights:
                # Weights/biases are grid-invariant: one VMEM buffer suffices,
                # halving their VMEM residency with zero perf cost.
                in_specs.append(pl.BlockSpec((kdim, cinp, coutp),
                                             lambda b: (0, 0, 0),
                                             pipeline_mode=pl.Buffered(1)))
                in_specs.append(pl.BlockSpec((1, coutp), lambda b: (0, 0),
                                             pipeline_mode=pl.Buffered(1)))
            else:
                in_specs.append(pl.BlockSpec((kdim, cinp, coutp),
                                             lambda b: (0, 0, 0)))
                in_specs.append(pl.BlockSpec((1, coutp), lambda b: (0, 0)))
        return pl.pallas_call(
            kernel,
            out_shape=jax.ShapeDtypeStruct((B, T, cout_p_last), out_dtype),
            grid_spec=pltpu.PrefetchScalarGridSpec(
                num_scalar_prefetch=0,
                grid=(B,),                            # one batch element / step
                in_specs=in_specs,
                out_specs=pl.BlockSpec((None, T, cout_p_last),
                                       lambda b: (b, 0, 0)),
                scratch_shapes=[pltpu.VMEM((_TOP + T + pad, c_max),
                                           compute_dtype)],
            ),
            compiler_params=pltpu.CompilerParams(
                dimension_semantics=("parallel",),
                vmem_limit_bytes=vmem_limit),
            cost_estimate=cost,
        )

    try:
        out = build(True)(*operands)
    except Exception:
        # pipeline_mode=pl.Buffered(1) unsupported on this jax build: fall back
        # to default double-buffered weight blocks (correct, slightly more VMEM).
        out = build(False)(*operands)

    # TODO(synk): add a parallel T-tiling grid axis (recomputing an L*pad-row
    # halo per tile) so long sequences / small batches use both v7x TensorCores
    # and the slab stays bounded; unnecessary at these demo sizes.
    return out[:, :, :cout_last]                       # drop lane padding


def postnet_forward_pallas(x_bct, layers, *, compute_dtype=jnp.bfloat16):
    """PyTorch-layout entry: x_bct (B, C, T) -> (B, C_out, T)."""
    out_btc = postnet_forward_pallas_btc(jnp.transpose(x_bct, (0, 2, 1)),
                                         layers, compute_dtype=compute_dtype)
    return jnp.transpose(out_btc, (0, 2, 1))


# ----------------------------------------------------------------------------
# Parameter initialization (deterministic, mirrors the module's __init__)
# ----------------------------------------------------------------------------
def xavier_uniform_conv1d(key, out_c, in_c, k, gain):
    fan_in = in_c * k
    fan_out = out_c * k
    a = gain * sqrt(6.0 / (fan_in + fan_out))
    return jax.random.uniform(key, (out_c, in_c, k), jnp.float32, -a, a)


def conv_bias_default(key, out_c, in_c, k):
    bound = 1.0 / sqrt(in_c * k)
    return jax.random.uniform(key, (out_c,), jnp.float32, -bound, bound)


def make_postnet_params(key, hp):
    """Builds per-layer (weight, bias, bn_scale, bn_shift, tanh?) tuples."""
    K = hp["postnet_kernel_size"]
    eps = 1e-5
    layers = []
    keys = jax.random.split(key, 2 * hp["postnet_num_convolutions"])
    gain_tanh = 5.0 / 3.0   # torch.nn.init.calculate_gain('tanh')
    gain_linear = 1.0       # torch.nn.init.calculate_gain('linear')

    for i in range(hp["postnet_num_convolutions"] - 1):
        cin = hp["postnet_embedding_dim_in"][i]
        cout = hp["postnet_embedding_dim_out"][i]
        w = xavier_uniform_conv1d(keys[2 * i], cout, cin, K, gain_tanh)
        b = conv_bias_default(keys[2 * i + 1], cout, cin, K)
        # BatchNorm1d default (eval): gamma=1, beta=0, mean=0, var=1
        gamma = jnp.ones((cout,), jnp.float32)
        beta = jnp.zeros((cout,), jnp.float32)
        r_mean = jnp.zeros((cout,), jnp.float32)
        r_var = jnp.ones((cout,), jnp.float32)
        scale = gamma / jnp.sqrt(r_var + eps)
        shift = beta - r_mean * scale
        layers.append((w, b, scale, shift, True))

    cin = hp["final_postnet_embedding_dim_in"]
    cout = hp["final_postnet_embedding_dim_out"]
    w = xavier_uniform_conv1d(keys[-2], cout, cin, K, gain_linear)
    b = conv_bias_default(keys[-1], cout, cin, K)
    # final layer: no BatchNorm, no tanh -> identity affine
    layers.append((w, b, jnp.ones((cout,), jnp.float32),
                   jnp.zeros((cout,), jnp.float32), False))
    return layers


# ----------------------------------------------------------------------------
# Pure-JAX reference (lax.conv_general_dilated), same semantics
# ----------------------------------------------------------------------------
def postnet_forward_ref(x_bct, layers):
    x = x_bct
    for (w_oik, b, scale, shift, use_tanh) in layers:
        K = w_oik.shape[-1]
        pad = (K - 1) // 2
        y = jax.lax.conv_general_dilated(
            x, w_oik, window_strides=(1,), padding=[(pad, pad)],
            dimension_numbers=("NCH", "OIH", "NCH"))
        y = (y + b[None, :, None]) * scale[None, :, None] + shift[None, :, None]
        if use_tanh:
            y = jnp.tanh(y)
        x = y
    return x


# ----------------------------------------------------------------------------
if __name__ == "__main__":
    hp = dict(
        postnet_num_convolutions=3,
        postnet_embedding_dim_in=[8, 16],
        postnet_embedding_dim_out=[16, 16],
        final_postnet_embedding_dim_in=16,
        final_postnet_embedding_dim_out=8,
        postnet_kernel_size=5,
        postnet_dropout_p=0.5,
    )

    key = jax.random.PRNGKey(0)
    k_params, k_x = jax.random.split(key)
    layers = make_postnet_params(k_params, hp)

    B, C, T = 2, hp["postnet_embedding_dim_in"][0], 16
    x = jax.random.normal(k_x, (B, C, T), jnp.float32)     # NCL like PyTorch

    ref = jax.block_until_ready(postnet_forward_ref(x, layers))

    # f32 matmuls: tight check against the lax.conv reference.
    out_f32 = jax.block_until_ready(
        postnet_forward_pallas(x, layers, compute_dtype=jnp.float32))
    assert out_f32.shape == (B, hp["final_postnet_embedding_dim_out"], T), out_f32.shape
    np.testing.assert_allclose(np.asarray(out_f32), np.asarray(ref),
                               rtol=1e-4, atol=1e-4)

    # bf16 weights/activations (f32 accumulate + f32 epilogue): halves VMEM /
    # DMA traffic and boosts MXU throughput; tolerance loosened accordingly.
    out_bf16 = jax.block_until_ready(
        postnet_forward_pallas(x, layers, compute_dtype=jnp.bfloat16))
    np.testing.assert_allclose(np.asarray(out_bf16), np.asarray(ref),
                               rtol=5e-2, atol=5e-2)

    print("KERNEL_OK")
</pallas_src>

<mosaic_0001>
module attributes {stable_mosaic.version = 11 : i64} {
  func.func @_postnet_fused_kernel(%arg0: i32, %arg1: memref<1x16x128xf32, #tpu.memory_space<vmem>>, %arg2: memref<5x128x128xf32, #tpu.memory_space<vmem>>, %arg3: memref<1x128xf32, #tpu.memory_space<vmem>>, %arg4: memref<5x128x128xf32, #tpu.memory_space<vmem>>, %arg5: memref<1x128xf32, #tpu.memory_space<vmem>>, %arg6: memref<5x128x128xf32, #tpu.memory_space<vmem>>, %arg7: memref<1x128xf32, #tpu.memory_space<vmem>>, %arg8: memref<1x16x128xf32, #tpu.memory_space<vmem>>, %arg9: memref<26x128xf32, #tpu.memory_space<vmem>>) attributes {dimension_semantics = [#tpu.dimension_semantics<parallel>], iteration_bounds = array<i64: 2>, scalar_prefetch = 0 : i64, scratch_operands = 1 : i64, tpu.core_type = #tpu.core_type<tc>, window_params = [{transform_indices = @transform_0, window_bounds = array<i64: 1, 16, 128>}, {pipeline_mode = #tpu.pipeline_mode<synchronous>, transform_indices = @transform_1, window_bounds = array<i64: 5, 128, 128>}, {pipeline_mode = #tpu.pipeline_mode<synchronous>, transform_indices = @transform_2, window_bounds = array<i64: 1, 128>}, {pipeline_mode = #tpu.pipeline_mode<synchronous>, transform_indices = @transform_3, window_bounds = array<i64: 5, 128, 128>}, {pipeline_mode = #tpu.pipeline_mode<synchronous>, transform_indices = @transform_4, window_bounds = array<i64: 1, 128>}, {pipeline_mode = #tpu.pipeline_mode<synchronous>, transform_indices = @transform_5, window_bounds = array<i64: 5, 128, 128>}, {pipeline_mode = #tpu.pipeline_mode<synchronous>, transform_indices = @transform_6, window_bounds = array<i64: 1, 128>}, {transform_indices = @transform_7, window_bounds = array<i64: 1, 16, 128>}]} {
    %cst = arith.constant 0.000000e+00 : f32
    %0 = vector.broadcast %cst : f32 to vector<8x128xf32>
    %c0 = arith.constant 0 : index
    %c0_0 = arith.constant 0 : index
    %1 = vector.load %arg9[%c0, %c0_0] : memref<26x128xf32, #tpu.memory_space<vmem>>, vector<8x128xf32>
    tpu.vector_store %arg9[%c0, %c0_0], %0 {strides = array<i32>} : memref<26x128xf32, #tpu.memory_space<vmem>>, vector<8x128xf32>,
    %cst_1 = arith.constant 0.000000e+00 : f32
    %2 = vector.broadcast %cst_1 : f32 to vector<2x128xf32>
    %c24 = arith.constant 24 : index
    %c0_2 = arith.constant 0 : index
    %3 = vector.load %arg9[%c24, %c0_2] : memref<26x128xf32, #tpu.memory_space<vmem>>, vector<2x128xf32>
    tpu.vector_store %arg9[%c24, %c0_2], %2 {strides = array<i32>} : memref<26x128xf32, #tpu.memory_space<vmem>>, vector<2x128xf32>,
    %c0_3 = arith.constant 0 : index
    %c0_4 = arith.constant 0 : index
    %c0_5 = arith.constant 0 : index
    %4 = vector.load %arg1[%c0_3, %c0_4, %c0_5] : memref<1x16x128xf32, #tpu.memory_space<vmem>>, vector<1x16x128xf32>
    %5 = vector.shape_cast %4 : vector<1x16x128xf32> to vector<16x128xf32>
    %c8 = arith.constant 8 : index
    %c0_6 = arith.constant 0 : index
    %6 = vector.load %arg9[%c8, %c0_6] : memref<26x128xf32, #tpu.memory_space<vmem>>, vector<16x128xf32>
    tpu.vector_store %arg9[%c8, %c0_6], %5 {strides = array<i32>} : memref<26x128xf32, #tpu.memory_space<vmem>>, vector<16x128xf32>,
    %c0_7 = arith.constant 0 : index
    %c0_8 = arith.constant 0 : index
    %7 = vector.load %arg3[%c0_7, %c0_8] : memref<1x128xf32, #tpu.memory_space<vmem>>, vector<1x128xf32>
    %8 = vector.shape_cast %7 : vector<1x128xf32> to vector<1x128xf32>
    %9 = vector.broadcast %8 : vector<1x128xf32> to vector<16x128xf32>
    %c6 = arith.constant 6 : index
    %c0_9 = arith.constant 0 : index
    %10 = vector.load %arg9[%c6, %c0_9] : memref<26x128xf32, #tpu.memory_space<vmem>>, vector<16x128xf32>
    %c0_10 = arith.constant 0 : index
    %c0_11 = arith.constant 0 : index
    %c0_12 = arith.constant 0 : index
    %11 = vector.load %arg2[%c0_10, %c0_11, %c0_12] : memref<5x128x128xf32, #tpu.memory_space<vmem>>, vector<1x128x128xf32>
    %12 = vector.shape_cast %11 : vector<1x128x128xf32> to vector<128x128xf32>
    %cst_13 = arith.constant dense<0.000000e+00> : vector<16x128xf32>
    %13 = tpu.matmul %10, %12, %cst_13 {dimension_numbers = #tpu.dot_dimension_numbers<[1], [0], [0], [1], [0, 0, 1, 1], [], []>} : vector<16x128xf32>, vector<128x128xf32>, vector<16x128xf32> -> vector<16x128xf32>
    %14 = arith.addf %9, %13 : vector<16x128xf32>
    %c7 = arith.constant 7 : index
    %c0_14 = arith.constant 0 : index
    %15 = vector.load %arg9[%c7, %c0_14] : memref<26x128xf32, #tpu.memory_space<vmem>>, vector<16x128xf32>
    %c1 = arith.constant 1 : index
    %c0_15 = arith.constant 0 : index
    %c0_16 = arith.constant 0 : index
    %16 = vector.load %arg2[%c1, %c0_15, %c0_16] : memref<5x128x128xf32, #tpu.memory_space<vmem>>, vector<1x128x128xf32>
    %17 = vector.shape_cast %16 : vector<1x128x128xf32> to vector<128x128xf32>
    %cst_17 = arith.constant dense<0.000000e+00> : vector<16x128xf32>
    %18 = tpu.matmul %15, %17, %cst_17 {dimension_numbers = #tpu.dot_dimension_numbers<[1], [0], [0], [1], [0, 0, 1, 1], [], []>} : vector<16x128xf32>, vector<128x128xf32>, vector<16x128xf32> -> vector<16x128xf32>
    %19 = arith.addf %14, %18 : vector<16x128xf32>
    %c8_18 = arith.constant 8 : index
    %c0_19 = arith.constant 0 : index
    %20 = vector.load %arg9[%c8_18, %c0_19] : memref<26x128xf32, #tpu.memory_space<vmem>>, vector<16x128xf32>
    %c2 = arith.constant 2 : index
    %c0_20 = arith.constant 0 : index
    %c0_21 = arith.constant 0 : index
    %21 = vector.load %arg2[%c2, %c0_20, %c0_21] : memref<5x128x128xf32, #tpu.memory_space<vmem>>, vector<1x128x128xf32>
    %22 = vector.shape_cast %21 : vector<1x128x128xf32> to vector<128x128xf32>
    %cst_22 = arith.constant dense<0.000000e+00> : vector<16x128xf32>
    %23 = tpu.matmul %20, %22, %cst_22 {dimension_numbers = #tpu.dot_dimension_numbers<[1], [0], [0], [1], [0, 0, 1, 1], [], []>} : vector<16x128xf32>, vector<128x128xf32>, vector<16x128xf32> -> vector<16x128xf32>
    %24 = arith.addf %19, %23 : vector<16x128xf32>
    %c9 = arith.constant 9 : index
    %c0_23 = arith.constant 0 : index
    %25 = vector.load %arg9[%c9, %c0_23] : memref<26x128xf32, #tpu.memory_space<vmem>>, vector<16x128xf32>
    %c3 = arith.constant 3 : index
    %c0_24 = arith.constant 0 : index
    %c0_25 = arith.constant 0 : index
    %26 = vector.load %arg2[%c3, %c0_24, %c0_25] : memref<5x128x128xf32, #tpu.memory_space<vmem>>, vector<1x128x128xf32>
    %27 = vector.shape_cast %26 : vector<1x128x128xf32> to vector<128x128xf32>
    %cst_26 = arith.constant dense<0.000000e+00> : vector<16x128xf32>
    %28 = tpu.matmul %25, %27, %cst_26 {dimension_numbers = #tpu.dot_dimension_numbers<[1], [0], [0], [1], [0, 0, 1, 1], [], []>} : vector<16x128xf32>, vector<128x128xf32>, vector<16x128xf32> -> vector<16x128xf32>
    %29 = arith.addf %24, %28 : vector<16x128xf32>
    %c10 = arith.constant 10 : index
    %c0_27 = arith.constant 0 : index
    %30 = vector.load %arg9[%c10, %c0_27] : memref<26x128xf32, #tpu.memory_space<vmem>>, vector<16x128xf32>
    %c4 = arith.constant 4 : index
    %c0_28 = arith.constant 0 : index
    %c0_29 = arith.constant 0 : index
    %31 = vector.load %arg2[%c4, %c0_28, %c0_29] : memref<5x128x128xf32, #tpu.memory_space<vmem>>, vector<1x128x128xf32>
    %32 = vector.shape_cast %31 : vector<1x128x128xf32> to vector<128x128xf32>
    %cst_30 = arith.constant dense<0.000000e+00> : vector<16x128xf32>
    %33 = tpu.matmul %30, %32, %cst_30 {dimension_numbers = #tpu.dot_dimension_numbers<[1], [0], [0], [1], [0, 0, 1, 1], [], []>} : vector<16x128xf32>, vector<128x128xf32>, vector<16x128xf32> -> vector<16x128xf32>
    %34 = arith.addf %29, %33 : vector<16x128xf32>
    %35 = math.tanh %34 : vector<16x128xf32>
    %c8_31 = arith.constant 8 : index
    %c0_32 = arith.constant 0 : index
    %36 = vector.load %arg9[%c8_31, %c0_32] : memref<26x128xf32, #tpu.memory_space<vmem>>, vector<16x128xf32>
    tpu.vector_store %arg9[%c8_31, %c0_32], %35 {strides = array<i32>} : memref<26x128xf32, #tpu.memory_space<vmem>>, vector<16x128xf32>,
    %c0_33 = arith.constant 0 : index
    %c0_34 = arith.constant 0 : index
    %37 = vector.load %arg5[%c0_33, %c0_34] : memref<1x128xf32, #tpu.memory_space<vmem>>, vector<1x128xf32>
    %38 = vector.shape_cast %37 : vector<1x128xf32> to vector<1x128xf32>
    %39 = vector.broadcast %38 : vector<1x128xf32> to vector<16x128xf32>
    %c6_35 = arith.constant 6 : index
    %c0_36 = arith.constant 0 : index
    %40 = vector.load %arg9[%c6_35, %c0_36] : memref<26x128xf32, #tpu.memory_space<vmem>>, vector<16x128xf32>
    %c0_37 = arith.constant 0 : index
    %c0_38 = arith.constant 0 : index
    %c0_39 = arith.constant 0 : index
    %41 = vector.load %arg4[%c0_37, %c0_38, %c0_39] : memref<5x128x128xf32, #tpu.memory_space<vmem>>, vector<1x128x128xf32>
    %42 = vector.shape_cast %41 : vector<1x128x128xf32> to vector<128x128xf32>
    %cst_40 = arith.constant dense<0.000000e+00> : vector<16x128xf32>
    %43 = tpu.matmul %40, %42, %cst_40 {dimension_numbers = #tpu.dot_dimension_numbers<[1], [0], [0], [1], [0, 0, 1, 1], [], []>} : vector<16x128xf32>, vector<128x128xf32>, vector<16x128xf32> -> vector<16x128xf32>
    %44 = arith.addf %39, %43 : vector<16x128xf32>
    %c7_41 = arith.constant 7 : index
    %c0_42 = arith.constant 0 : index
    %45 = vector.load %arg9[%c7_41, %c0_42] : memref<26x128xf32, #tpu.memory_space<vmem>>, vector<16x128xf32>
    %c1_43 = arith.constant 1 : index
    %c0_44 = arith.constant 0 : index
    %c0_45 = arith.constant 0 : index
    %46 = vector.load %arg4[%c1_43, %c0_44, %c0_45] : memref<5x128x128xf32, #tpu.memory_space<vmem>>, vector<1x128x128xf32>
    %47 = vector.shape_cast %46 : vector<1x128x128xf32> to vector<128x128xf32>
    %cst_46 = arith.constant dense<0.000000e+00> : vector<16x128xf32>
    %48 = tpu.matmul %45, %47, %cst_46 {dimension_numbers = #tpu.dot_dimension_numbers<[1], [0], [0], [1], [0, 0, 1, 1], [], []>} : vector<16x128xf32>, vector<128x128xf32>, vector<16x128xf32> -> vector<16x128xf32>
    %49 = arith.addf %44, %48 : vector<16x128xf32>
    %c8_47 = arith.constant 8 : index
    %c0_48 = arith.constant 0 : index
    %50 = vector.load %arg9[%c8_47, %c0_48] : memref<26x128xf32, #tpu.memory_space<vmem>>, vector<16x128xf32>
    %c2_49 = arith.constant 2 : index
    %c0_50 = arith.constant 0 : index
    %c0_51 = arith.constant 0 : index
    %51 = vector.load %arg4[%c2_49, %c0_50, %c0_51] : memref<5x128x128xf32, #tpu.memory_space<vmem>>, vector<1x128x128xf32>
    %52 = vector.shape_cast %51 : vector<1x128x128xf32> to vector<128x128xf32>
    %cst_52 = arith.constant dense<0.000000e+00> : vector<16x128xf32>
    %53 = tpu.matmul %50, %52, %cst_52 {dimension_numbers = #tpu.dot_dimension_numbers<[1], [0], [0], [1], [0, 0, 1, 1], [], []>} : vector<16x128xf32>, vector<128x128xf32>, vector<16x128xf32> -> vector<16x128xf32>
    %54 = arith.addf %49, %53 : vector<16x128xf32>
    %c9_53 = arith.constant 9 : index
    %c0_54 = arith.constant 0 : index
    %55 = vector.load %arg9[%c9_53, %c0_54] : memref<26x128xf32, #tpu.memory_space<vmem>>, vector<16x128xf32>
    %c3_55 = arith.constant 3 : index
    %c0_56 = arith.constant 0 : index
    %c0_57 = arith.constant 0 : index
    %56 = vector.load %arg4[%c3_55, %c0_56, %c0_57] : memref<5x128x128xf32, #tpu.memory_space<vmem>>, vector<1x128x128xf32>
    %57 = vector.shape_cast %56 : vector<1x128x128xf32> to vector<128x128xf32>
    %cst_58 = arith.constant dense<0.000000e+00> : vector<16x128xf32>
    %58 = tpu.matmul %55, %57, %cst_58 {dimension_numbers = #tpu.dot_dimension_numbers<[1], [0], [0], [1], [0, 0, 1, 1], [], []>} : vector<16x128xf32>, vector<128x128xf32>, vector<16x128xf32> -> vector<16x128xf32>
    %59 = arith.addf %54, %58 : vector<16x128xf32>
    %c10_59 = arith.constant 10 : index
    %c0_60 = arith.constant 0 : index
    %60 = vector.load %arg9[%c10_59, %c0_60] : memref<26x128xf32, #tpu.memory_space<vmem>>, vector<16x128xf32>
    %c4_61 = arith.constant 4 : index
    %c0_62 = arith.constant 0 : index
    %c0_63 = arith.constant 0 : index
    %61 = vector.load %arg4[%c4_61, %c0_62, %c0_63] : memref<5x128x128xf32, #tpu.memory_space<vmem>>, vector<1x128x128xf32>
    %62 = vector.shape_cast %61 : vector<1x128x128xf32> to vector<128x128xf32>
    %cst_64 = arith.constant dense<0.000000e+00> : vector<16x128xf32>
    %63 = tpu.matmul %60, %62, %cst_64 {dimension_numbers = #tpu.dot_dimension_numbers<[1], [0], [0], [1], [0, 0, 1, 1], [], []>} : vector<16x128xf32>, vector<128x128xf32>, vector<16x128xf32> -> vector<16x128xf32>
    %64 = arith.addf %59, %63 : vector<16x128xf32>
    %65 = math.tanh %64 : vector<16x128xf32>
    %c8_65 = arith.constant 8 : index
    %c0_66 = arith.constant 0 : index
    %66 = vector.load %arg9[%c8_65, %c0_66] : memref<26x128xf32, #tpu.memory_space<vmem>>, vector<16x128xf32>
    tpu.vector_store %arg9[%c8_65, %c0_66], %65 {strides = array<i32>} : memref<26x128xf32, #tpu.memory_space<vmem>>, vector<16x128xf32>,
    %c0_67 = arith.constant 0 : index
    %c0_68 = arith.constant 0 : index
    %67 = vector.load %arg7[%c0_67, %c0_68] : memref<1x128xf32, #tpu.memory_space<vmem>>, vector<1x128xf32>
    %68 = vector.shape_cast %67 : vector<1x128xf32> to vector<1x128xf32>
    %69 = vector.broadcast %68 : vector<1x128xf32> to vector<16x128xf32>
    %c6_69 = arith.constant 6 : index
    %c0_70 = arith.constant 0 : index
    %70 = vector.load %arg9[%c6_69, %c0_70] : memref<26x128xf32, #tpu.memory_space<vmem>>, vector<16x128xf32>
    %c0_71 = arith.constant 0 : index
    %c0_72 = arith.constant 0 : index
    %c0_73 = arith.constant 0 : index
    %71 = vector.load %arg6[%c0_71, %c0_72, %c0_73] : memref<5x128x128xf32, #tpu.memory_space<vmem>>, vector<1x128x128xf32>
    %72 = vector.shape_cast %71 : vector<1x128x128xf32> to vector<128x128xf32>
    %cst_74 = arith.constant dense<0.000000e+00> : vector<16x128xf32>
    %73 = tpu.matmul %70, %72, %cst_74 {dimension_numbers = #tpu.dot_dimension_numbers<[1], [0], [0], [1], [0, 0, 1, 1], [], []>} : vector<16x128xf32>, vector<128x128xf32>, vector<16x128xf32> -> vector<16x128xf32>
    %74 = arith.addf %69, %73 : vector<16x128xf32>
    %c7_75 = arith.constant 7 : index
    %c0_76 = arith.constant 0 : index
    %75 = vector.load %arg9[%c7_75, %c0_76] : memref<26x128xf32, #tpu.memory_space<vmem>>, vector<16x128xf32>
    %c1_77 = arith.constant 1 : index
    %c0_78 = arith.constant 0 : index
    %c0_79 = arith.constant 0 : index
    %76 = vector.load %arg6[%c1_77, %c0_78, %c0_79] : memref<5x128x128xf32, #tpu.memory_space<vmem>>, vector<1x128x128xf32>
    %77 = vector.shape_cast %76 : vector<1x128x128xf32> to vector<128x128xf32>
    %cst_80 = arith.constant dense<0.000000e+00> : vector<16x128xf32>
    %78 = tpu.matmul %75, %77, %cst_80 {dimension_numbers = #tpu.dot_dimension_numbers<[1], [0], [0], [1], [0, 0, 1, 1], [], []>} : vector<16x128xf32>, vector<128x128xf32>, vector<16x128xf32> -> vector<16x128xf32>
    %79 = arith.addf %74, %78 : vector<16x128xf32>
    %c8_81 = arith.constant 8 : index
    %c0_82 = arith.constant 0 : index
    %80 = vector.load %arg9[%c8_81, %c0_82] : memref<26x128xf32, #tpu.memory_space<vmem>>, vector<16x128xf32>
    %c2_83 = arith.constant 2 : index
    %c0_84 = arith.constant 0 : index
    %c0_85 = arith.constant 0 : index
    %81 = vector.load %arg6[%c2_83, %c0_84, %c0_85] : memref<5x128x128xf32, #tpu.memory_space<vmem>>, vector<1x128x128xf32>
    %82 = vector.shape_cast %81 : vector<1x128x128xf32> to vector<128x128xf32>
    %cst_86 = arith.constant dense<0.000000e+00> : vector<16x128xf32>
    %83 = tpu.matmul %80, %82, %cst_86 {dimension_numbers = #tpu.dot_dimension_numbers<[1], [0], [0], [1], [0, 0, 1, 1], [], []>} : vector<16x128xf32>, vector<128x128xf32>, vector<16x128xf32> -> vector<16x128xf32>
    %84 = arith.addf %79, %83 : vector<16x128xf32>
    %c9_87 = arith.constant 9 : index
    %c0_88 = arith.constant 0 : index
    %85 = vector.load %arg9[%c9_87, %c0_88] : memref<26x128xf32, #tpu.memory_space<vmem>>, vector<16x128xf32>
    %c3_89 = arith.constant 3 : index
    %c0_90 = arith.constant 0 : index
    %c0_91 = arith.constant 0 : index
    %86 = vector.load %arg6[%c3_89, %c0_90, %c0_91] : memref<5x128x128xf32, #tpu.memory_space<vmem>>, vector<1x128x128xf32>
    %87 = vector.shape_cast %86 : vector<1x128x128xf32> to vector<128x128xf32>
    %cst_92 = arith.constant dense<0.000000e+00> : vector<16x128xf32>
    %88 = tpu.matmul %85, %87, %cst_92 {dimension_numbers = #tpu.dot_dimension_numbers<[1], [0], [0], [1], [0, 0, 1, 1], [], []>} : vector<16x128xf32>, vector<128x128xf32>, vector<16x128xf32> -> vector<16x128xf32>
    %89 = arith.addf %84, %88 : vector<16x128xf32>
    %c10_93 = arith.constant 10 : index
    %c0_94 = arith.constant 0 : index
    %90 = vector.load %arg9[%c10_93, %c0_94] : memref<26x128xf32, #tpu.memory_space<vmem>>, vector<16x128xf32>
    %c4_95 = arith.constant 4 : index
    %c0_96 = arith.constant 0 : index
    %c0_97 = arith.constant 0 : index
    %91 = vector.load %arg6[%c4_95, %c0_96, %c0_97] : memref<5x128x128xf32, #tpu.memory_space<vmem>>, vector<1x128x128xf32>
    %92 = vector.shape_cast %91 : vector<1x128x128xf32> to vector<128x128xf32>
    %cst_98 = arith.constant dense<0.000000e+00> : vector<16x128xf32>
    %93 = tpu.matmul %90, %92, %cst_98 {dimension_numbers = #tpu.dot_dimension_numbers<[1], [0], [0], [1], [0, 0, 1, 1], [], []>} : vector<16x128xf32>, vector<128x128xf32>, vector<16x128xf32> -> vector<16x128xf32>
    %94 = arith.addf %89, %93 : vector<16x128xf32>
    %c0_99 = arith.constant 0 : index
    %c0_100 = arith.constant 0 : index
    %c0_101 = arith.constant 0 : index
    %95 = vector.load %arg8[%c0_99, %c0_100, %c0_101] : memref<1x16x128xf32, #tpu.memory_space<vmem>>, vector<1x16x128xf32>
    %96 = vector.shape_cast %95 : vector<1x16x128xf32> to vector<16x128xf32>
    %97 = vector.shape_cast %94 : vector<16x128xf32> to vector<1x16x128xf32>
    tpu.vector_store %arg8[%c0_99, %c0_100, %c0_101], %97 {strides = array<i32>} : memref<1x16x128xf32, #tpu.memory_space<vmem>>, vector<1x16x128xf32>,
    return
  }
  func.func @transform_0(%arg0: i32) -> (i32, i32, i32) {
    %c0_i32 = arith.constant 0 : i32
    %c0_i32_0 = arith.constant 0 : i32
    %c0_i32_1 = arith.constant 0 : i32
    return %arg0, %c0_i32, %c0_i32_0 : i32, i32, i32
  }
  func.func @transform_1(%arg0: i32) -> (i32, i32, i32) {
    %c0_i32 = arith.constant 0 : i32
    %c0_i32_0 = arith.constant 0 : i32
    %c0_i32_1 = arith.constant 0 : i32
    %c0_i32_2 = arith.constant 0 : i32
    return %c0_i32, %c0_i32_0, %c0_i32_1 : i32, i32, i32
  }
  func.func @transform_2(%arg0: i32) -> (i32, i32) {
    %c0_i32 = arith.constant 0 : i32
    %c0_i32_0 = arith.constant 0 : i32
    %c0_i32_1 = arith.constant 0 : i32
    return %c0_i32, %c0_i32_0 : i32, i32
  }
  func.func @transform_3(%arg0: i32) -> (i32, i32, i32) {
    %c0_i32 = arith.constant 0 : i32
    %c0_i32_0 = arith.constant 0 : i32
    %c0_i32_1 = arith.constant 0 : i32
    %c0_i32_2 = arith.constant 0 : i32
    return %c0_i32, %c0_i32_0, %c0_i32_1 : i32, i32, i32
  }
  func.func @transform_4(%arg0: i32) -> (i32, i32) {
    %c0_i32 = arith.constant 0 : i32
    %c0_i32_0 = arith.constant 0 : i32
    %c0_i32_1 = arith.constant 0 : i32
    return %c0_i32, %c0_i32_0 : i32, i32
  }
  func.func @transform_5(%arg0: i32) -> (i32, i32, i32) {
    %c0_i32 = arith.constant 0 : i32
    %c0_i32_0 = arith.constant 0 : i32
    %c0_i32_1 = arith.constant 0 : i32
    %c0_i32_2 = arith.constant 0 : i32
    return %c0_i32, %c0_i32_0, %c0_i32_1 : i32, i32, i32
  }
  func.func @transform_6(%arg0: i32) -> (i32, i32) {
    %c0_i32 = arith.constant 0 : i32
    %c0_i32_0 = arith.constant 0 : i32
    %c0_i32_1 = arith.constant 0 : i32
    return %c0_i32, %c0_i32_0 : i32, i32
  }
  func.func @transform_7(%arg0: i32) -> (i32, i32, i32) {
    %c0_i32 = arith.constant 0 : i32
    %c0_i32_0 = arith.constant 0 : i32
    %c0_i32_1 = arith.constant 0 : i32
    return %arg0, %c0_i32, %c0_i32_0 : i32, i32, i32
  }
}

module attributes {stable_mosaic.version = 11 : i64} {
  func.func @_postnet_fused_kernel(%arg0: i32, %arg1: memref<1x16x128xf32, #tpu.memory_space<vmem>>, %arg2: memref<5x128x128xf32, #tpu.memory_space<vmem>>, %arg3: memref<1x128xf32, #tpu.memory_space<vmem>>, %arg4: memref<5x128x128xf32, #tpu.memory_space<vmem>>, %arg5: memref<1x128xf32, #tpu.memory_space<vmem>>, %arg6: memref<5x128x128xf32, #tpu.memory_space<vmem>>, %arg7: memref<1x128xf32, #tpu.memory_space<vmem>>, %arg8: memref<1x16x128xf32, #tpu.memory_space<vmem>>, %arg9: memref<26x128xf32, #tpu.memory_space<vmem>>) attributes {dimension_semantics = [#tpu.dimension_semantics<parallel>], iteration_bounds = array<i64: 2>, scalar_prefetch = 0 : i64, scratch_operands = 1 : i64, tpu.core_type = #tpu.core_type<tc>, window_params = [{transform_indices = @transform_0, window_bounds = array<i64: 1, 16, 128>}, {pipeline_mode = #tpu.pipeline_mode<synchronous>, transform_indices = @transform_1, window_bounds = array<i64: 5, 128, 128>}, {pipeline_mode = #tpu.pipeline_mode<synchronous>, transform_indices = @transform_2, window_bounds = array<i64: 1, 128>}, {pipeline_mode = #tpu.pipeline_mode<synchronous>, transform_indices = @transform_3, window_bounds = array<i64: 5, 128, 128>}, {pipeline_mode = #tpu.pipeline_mode<synchronous>, transform_indices = @transform_4, window_bounds = array<i64: 1, 128>}, {pipeline_mode = #tpu.pipeline_mode<synchronous>, transform_indices = @transform_5, window_bounds = array<i64: 5, 128, 128>}, {pipeline_mode = #tpu.pipeline_mode<synchronous>, transform_indices = @transform_6, window_bounds = array<i64: 1, 128>}, {transform_indices = @transform_7, window_bounds = array<i64: 1, 16, 128>}]} {
    %cst = arith.constant 0.000000e+00 : f32
    %0 = vector.broadcast %cst : f32 to vector<8x128xf32>
    %c0 = arith.constant 0 : index
    %c0_0 = arith.constant 0 : index
    %1 = vector.load %arg9[%c0, %c0_0] : memref<26x128xf32, #tpu.memory_space<vmem>>, vector<8x128xf32>
    tpu.vector_store %arg9[%c0, %c0_0], %0 {strides = array<i32>} : memref<26x128xf32, #tpu.memory_space<vmem>>, vector<8x128xf32>,
    %cst_1 = arith.constant 0.000000e+00 : f32
    %2 = vector.broadcast %cst_1 : f32 to vector<2x128xf32>
    %c24 = arith.constant 24 : index
    %c0_2 = arith.constant 0 : index
    %3 = vector.load %arg9[%c24, %c0_2] : memref<26x128xf32, #tpu.memory_space<vmem>>, vector<2x128xf32>
    tpu.vector_store %arg9[%c24, %c0_2], %2 {strides = array<i32>} : memref<26x128xf32, #tpu.memory_space<vmem>>, vector<2x128xf32>,
    %c0_3 = arith.constant 0 : index
    %c0_4 = arith.constant 0 : index
    %c0_5 = arith.constant 0 : index
    %4 = vector.load %arg1[%c0_3, %c0_4, %c0_5] : memref<1x16x128xf32, #tpu.memory_space<vmem>>, vector<1x16x128xf32>
    %5 = vector.shape_cast %4 : vector<1x16x128xf32> to vector<16x128xf32>
    %c8 = arith.constant 8 : index
    %c0_6 = arith.constant 0 : index
    %6 = vector.load %arg9[%c8, %c0_6] : memref<26x128xf32, #tpu.memory_space<vmem>>, vector<16x128xf32>
    tpu.vector_store %arg9[%c8, %c0_6], %5 {strides = array<i32>} : memref<26x128xf32, #tpu.memory_space<vmem>>, vector<16x128xf32>,
    %c0_7 = arith.constant 0 : index
    %c0_8 = arith.constant 0 : index
    %7 = vector.load %arg3[%c0_7, %c0_8] : memref<1x128xf32, #tpu.memory_space<vmem>>, vector<1x128xf32>
    %8 = vector.shape_cast %7 : vector<1x128xf32> to vector<1x128xf32>
    %9 = vector.broadcast %8 : vector<1x128xf32> to vector<16x128xf32>
    %c6 = arith.constant 6 : index
    %c0_9 = arith.constant 0 : index
    %10 = vector.load %arg9[%c6, %c0_9] : memref<26x128xf32, #tpu.memory_space<vmem>>, vector<16x128xf32>
    %c0_10 = arith.constant 0 : index
    %c0_11 = arith.constant 0 : index
    %c0_12 = arith.constant 0 : index
    %11 = vector.load %arg2[%c0_10, %c0_11, %c0_12] : memref<5x128x128xf32, #tpu.memory_space<vmem>>, vector<1x128x128xf32>
    %12 = vector.shape_cast %11 : vector<1x128x128xf32> to vector<128x128xf32>
    %cst_13 = arith.constant dense<0.000000e+00> : vector<16x128xf32>
    %13 = tpu.matmul %10, %12, %cst_13 {dimension_numbers = #tpu.dot_dimension_numbers<[1], [0], [0], [1], [0, 0, 1, 1], [], []>} : vector<16x128xf32>, vector<128x128xf32>, vector<16x128xf32> -> vector<16x128xf32>
    %14 = arith.addf %9, %13 : vector<16x128xf32>
    %c7 = arith.constant 7 : index
    %c0_14 = arith.constant 0 : index
    %15 = vector.load %arg9[%c7, %c0_14] : memref<26x128xf32, #tpu.memory_space<vmem>>, vector<16x128xf32>
    %c1 = arith.constant 1 : index
    %c0_15 = arith.constant 0 : index
    %c0_16 = arith.constant 0 : index
    %16 = vector.load %arg2[%c1, %c0_15, %c0_16] : memref<5x128x128xf32, #tpu.memory_space<vmem>>, vector<1x128x128xf32>
    %17 = vector.shape_cast %16 : vector<1x128x128xf32> to vector<128x128xf32>
    %cst_17 = arith.constant dense<0.000000e+00> : vector<16x128xf32>
    %18 = tpu.matmul %15, %17, %cst_17 {dimension_numbers = #tpu.dot_dimension_numbers<[1], [0], [0], [1], [0, 0, 1, 1], [], []>} : vector<16x128xf32>, vector<128x128xf32>, vector<16x128xf32> -> vector<16x128xf32>
    %19 = arith.addf %14, %18 : vector<16x128xf32>
    %c8_18 = arith.constant 8 : index
    %c0_19 = arith.constant 0 : index
    %20 = vector.load %arg9[%c8_18, %c0_19] : memref<26x128xf32, #tpu.memory_space<vmem>>, vector<16x128xf32>
    %c2 = arith.constant 2 : index
    %c0_20 = arith.constant 0 : index
    %c0_21 = arith.constant 0 : index
    %21 = vector.load %arg2[%c2, %c0_20, %c0_21] : memref<5x128x128xf32, #tpu.memory_space<vmem>>, vector<1x128x128xf32>
    %22 = vector.shape_cast %21 : vector<1x128x128xf32> to vector<128x128xf32>
    %cst_22 = arith.constant dense<0.000000e+00> : vector<16x128xf32>
    %23 = tpu.matmul %20, %22, %cst_22 {dimension_numbers = #tpu.dot_dimension_numbers<[1], [0], [0], [1], [0, 0, 1, 1], [], []>} : vector<16x128xf32>, vector<128x128xf32>, vector<16x128xf32> -> vector<16x128xf32>
    %24 = arith.addf %19, %23 : vector<16x128xf32>
    %c9 = arith.constant 9 : index
    %c0_23 = arith.constant 0 : index
    %25 = vector.load %arg9[%c9, %c0_23] : memref<26x128xf32, #tpu.memory_space<vmem>>, vector<16x128xf32>
    %c3 = arith.constant 3 : index
    %c0_24 = arith.constant 0 : index
    %c0_25 = arith.constant 0 : index
    %26 = vector.load %arg2[%c3, %c0_24, %c0_25] : memref<5x128x128xf32, #tpu.memory_space<vmem>>, vector<1x128x128xf32>
    %27 = vector.shape_cast %26 : vector<1x128x128xf32> to vector<128x128xf32>
    %cst_26 = arith.constant dense<0.000000e+00> : vector<16x128xf32>
    %28 = tpu.matmul %25, %27, %cst_26 {dimension_numbers = #tpu.dot_dimension_numbers<[1], [0], [0], [1], [0, 0, 1, 1], [], []>} : vector<16x128xf32>, vector<128x128xf32>, vector<16x128xf32> -> vector<16x128xf32>
    %29 = arith.addf %24, %28 : vector<16x128xf32>
    %c10 = arith.constant 10 : index
    %c0_27 = arith.constant 0 : index
    %30 = vector.load %arg9[%c10, %c0_27] : memref<26x128xf32, #tpu.memory_space<vmem>>, vector<16x128xf32>
    %c4 = arith.constant 4 : index
    %c0_28 = arith.constant 0 : index
    %c0_29 = arith.constant 0 : index
    %31 = vector.load %arg2[%c4, %c0_28, %c0_29] : memref<5x128x128xf32, #tpu.memory_space<vmem>>, vector<1x128x128xf32>
    %32 = vector.shape_cast %31 : vector<1x128x128xf32> to vector<128x128xf32>
    %cst_30 = arith.constant dense<0.000000e+00> : vector<16x128xf32>
    %33 = tpu.matmul %30, %32, %cst_30 {dimension_numbers = #tpu.dot_dimension_numbers<[1], [0], [0], [1], [0, 0, 1, 1], [], []>} : vector<16x128xf32>, vector<128x128xf32>, vector<16x128xf32> -> vector<16x128xf32>
    %34 = arith.addf %29, %33 : vector<16x128xf32>
    %35 = math.tanh %34 : vector<16x128xf32>
    %c8_31 = arith.constant 8 : index
    %c0_32 = arith.constant 0 : index
    %36 = vector.load %arg9[%c8_31, %c0_32] : memref<26x128xf32, #tpu.memory_space<vmem>>, vector<16x128xf32>
    tpu.vector_store %arg9[%c8_31, %c0_32], %35 {strides = array<i32>} : memref<26x128xf32, #tpu.memory_space<vmem>>, vector<16x128xf32>,
    %c0_33 = arith.constant 0 : index
    %c0_34 = arith.constant 0 : index
    %37 = vector.load %arg5[%c0_33, %c0_34] : memref<1x128xf32, #tpu.memory_space<vmem>>, vector<1x128xf32>
    %38 = vector.shape_cast %37 : vector<1x128xf32> to vector<1x128xf32>
    %39 = vector.broadcast %38 : vector<1x128xf32> to vector<16x128xf32>
    %c6_35 = arith.constant 6 : index
    %c0_36 = arith.constant 0 : index
    %40 = vector.load %arg9[%c6_35, %c0_36] : memref<26x128xf32, #tpu.memory_space<vmem>>, vector<16x128xf32>
    %c0_37 = arith.constant 0 : index
    %c0_38 = arith.constant 0 : index
    %c0_39 = arith.constant 0 : index
    %41 = vector.load %arg4[%c0_37, %c0_38, %c0_39] : memref<5x128x128xf32, #tpu.memory_space<vmem>>, vector<1x128x128xf32>
    %42 = vector.shape_cast %41 : vector<1x128x128xf32> to vector<128x128xf32>
    %cst_40 = arith.constant dense<0.000000e+00> : vector<16x128xf32>
    %43 = tpu.matmul %40, %42, %cst_40 {dimension_numbers = #tpu.dot_dimension_numbers<[1], [0], [0], [1], [0, 0, 1, 1], [], []>} : vector<16x128xf32>, vector<128x128xf32>, vector<16x128xf32> -> vector<16x128xf32>
    %44 = arith.addf %39, %43 : vector<16x128xf32>
    %c7_41 = arith.constant 7 : index
    %c0_42 = arith.constant 0 : index
    %45 = vector.load %arg9[%c7_41, %c0_42] : memref<26x128xf32, #tpu.memory_space<vmem>>, vector<16x128xf32>
    %c1_43 = arith.constant 1 : index
    %c0_44 = arith.constant 0 : index
    %c0_45 = arith.constant 0 : index
    %46 = vector.load %arg4[%c1_43, %c0_44, %c0_45] : memref<5x128x128xf32, #tpu.memory_space<vmem>>, vector<1x128x128xf32>
    %47 = vector.shape_cast %46 : vector<1x128x128xf32> to vector<128x128xf32>
    %cst_46 = arith.constant dense<0.000000e+00> : vector<16x128xf32>
    %48 = tpu.matmul %45, %47, %cst_46 {dimension_numbers = #tpu.dot_dimension_numbers<[1], [0], [0], [1], [0, 0, 1, 1], [], []>} : vector<16x128xf32>, vector<128x128xf32>, vector<16x128xf32> -> vector<16x128xf32>
    %49 = arith.addf %44, %48 : vector<16x128xf32>
    %c8_47 = arith.constant 8 : index
    %c0_48 = arith.constant 0 : index
    %50 = vector.load %arg9[%c8_47, %c0_48] : memref<26x128xf32, #tpu.memory_space<vmem>>, vector<16x128xf32>
    %c2_49 = arith.constant 2 : index
    %c0_50 = arith.constant 0 : index
    %c0_51 = arith.constant 0 : index
    %51 = vector.load %arg4[%c2_49, %c0_50, %c0_51] : memref<5x128x128xf32, #tpu.memory_space<vmem>>, vector<1x128x128xf32>
    %52 = vector.shape_cast %51 : vector<1x128x128xf32> to vector<128x128xf32>
    %cst_52 = arith.constant dense<0.000000e+00> : vector<16x128xf32>
    %53 = tpu.matmul %50, %52, %cst_52 {dimension_numbers = #tpu.dot_dimension_numbers<[1], [0], [0], [1], [0, 0, 1, 1], [], []>} : vector<16x128xf32>, vector<128x128xf32>, vector<16x128xf32> -> vector<16x128xf32>
    %54 = arith.addf %49, %53 : vector<16x128xf32>
    %c9_53 = arith.constant 9 : index
    %c0_54 = arith.constant 0 : index
    %55 = vector.load %arg9[%c9_53, %c0_54] : memref<26x128xf32, #tpu.memory_space<vmem>>, vector<16x128xf32>
    %c3_55 = arith.constant 3 : index
    %c0_56 = arith.constant 0 : index
    %c0_57 = arith.constant 0 : index
    %56 = vector.load %arg4[%c3_55, %c0_56, %c0_57] : memref<5x128x128xf32, #tpu.memory_space<vmem>>, vector<1x128x128xf32>
    %57 = vector.shape_cast %56 : vector<1x128x128xf32> to vector<128x128xf32>
    %cst_58 = arith.constant dense<0.000000e+00> : vector<16x128xf32>
    %58 = tpu.matmul %55, %57, %cst_58 {dimension_numbers = #tpu.dot_dimension_numbers<[1], [0], [0], [1], [0, 0, 1, 1], [], []>} : vector<16x128xf32>, vector<128x128xf32>, vector<16x128xf32> -> vector<16x128xf32>
    %59 = arith.addf %54, %58 : vector<16x128xf32>
    %c10_59 = arith.constant 10 : index
    %c0_60 = arith.constant 0 : index
    %60 = vector.load %arg9[%c10_59, %c0_60] : memref<26x128xf32, #tpu.memory_space<vmem>>, vector<16x128xf32>
    %c4_61 = arith.constant 4 : index
    %c0_62 = arith.constant 0 : index
    %c0_63 = arith.constant 0 : index
    %61 = vector.load %arg4[%c4_61, %c0_62, %c0_63] : memref<5x128x128xf32, #tpu.memory_space<vmem>>, vector<1x128x128xf32>
    %62 = vector.shape_cast %61 : vector<1x128x128xf32> to vector<128x128xf32>
    %cst_64 = arith.constant dense<0.000000e+00> : vector<16x128xf32>
    %63 = tpu.matmul %60, %62, %cst_64 {dimension_numbers = #tpu.dot_dimension_numbers<[1], [0], [0], [1], [0, 0, 1, 1], [], []>} : vector<16x128xf32>, vector<128x128xf32>, vector<16x128xf32> -> vector<16x128xf32>
    %64 = arith.addf %59, %63 : vector<16x128xf32>
    %65 = math.tanh %64 : vector<16x128xf32>
    %c8_65 = arith.constant 8 : index
    %c0_66 = arith.constant 0 : index
    %66 = vector.load %arg9[%c8_65, %c0_66] : memref<26x128xf32, #tpu.memory_space<vmem>>, vector<16x128xf32>
    tpu.vector_store %arg9[%c8_65, %c0_66], %65 {strides = array<i32>} : memref<26x128xf32, #tpu.memory_space<vmem>>, vector<16x128xf32>,
    %c0_67 = arith.constant 0 : index
    %c0_68 = arith.constant 0 : index
    %67 = vector.load %arg7[%c0_67, %c0_68] : memref<1x128xf32, #tpu.memory_space<vmem>>, vector<1x128xf32>
    %68 = vector.shape_cast %67 : vector<1x128xf32> to vector<1x128xf32>
    %69 = vector.broadcast %68 : vector<1x128xf32> to vector<16x128xf32>
    %c6_69 = arith.constant 6 : index
    %c0_70 = arith.constant 0 : index
    %70 = vector.load %arg9[%c6_69, %c0_70] : memref<26x128xf32, #tpu.memory_space<vmem>>, vector<16x128xf32>
    %c0_71 = arith.constant 0 : index
    %c0_72 = arith.constant 0 : index
    %c0_73 = arith.constant 0 : index
    %71 = vector.load %arg6[%c0_71, %c0_72, %c0_73] : memref<5x128x128xf32, #tpu.memory_space<vmem>>, vector<1x128x128xf32>
    %72 = vector.shape_cast %71 : vector<1x128x128xf32> to vector<128x128xf32>
    %cst_74 = arith.constant dense<0.000000e+00> : vector<16x128xf32>
    %73 = tpu.matmul %70, %72, %cst_74 {dimension_numbers = #tpu.dot_dimension_numbers<[1], [0], [0], [1], [0, 0, 1, 1], [], []>} : vector<16x128xf32>, vector<128x128xf32>, vector<16x128xf32> -> vector<16x128xf32>
    %74 = arith.addf %69, %73 : vector<16x128xf32>
    %c7_75 = arith.constant 7 : index
    %c0_76 = arith.constant 0 : index
    %75 = vector.load %arg9[%c7_75, %c0_76] : memref<26x128xf32, #tpu.memory_space<vmem>>, vector<16x128xf32>
    %c1_77 = arith.constant 1 : index
    %c0_78 = arith.constant 0 : index
    %c0_79 = arith.constant 0 : index
    %76 = vector.load %arg6[%c1_77, %c0_78, %c0_79] : memref<5x128x128xf32, #tpu.memory_space<vmem>>, vector<1x128x128xf32>
    %77 = vector.shape_cast %76 : vector<1x128x128xf32> to vector<128x128xf32>
    %cst_80 = arith.constant dense<0.000000e+00> : vector<16x128xf32>
    %78 = tpu.matmul %75, %77, %cst_80 {dimension_numbers = #tpu.dot_dimension_numbers<[1], [0], [0], [1], [0, 0, 1, 1], [], []>} : vector<16x128xf32>, vector<128x128xf32>, vector<16x128xf32> -> vector<16x128xf32>
    %79 = arith.addf %74, %78 : vector<16x128xf32>
    %c8_81 = arith.constant 8 : index
    %c0_82 = arith.constant 0 : index
    %80 = vector.load %arg9[%c8_81, %c0_82] : memref<26x128xf32, #tpu.memory_space<vmem>>, vector<16x128xf32>
    %c2_83 = arith.constant 2 : index
    %c0_84 = arith.constant 0 : index
    %c0_85 = arith.constant 0 : index
    %81 = vector.load %arg6[%c2_83, %c0_84, %c0_85] : memref<5x128x128xf32, #tpu.memory_space<vmem>>, vector<1x128x128xf32>
    %82 = vector.shape_cast %81 : vector<1x128x128xf32> to vector<128x128xf32>
    %cst_86 = arith.constant dense<0.000000e+00> : vector<16x128xf32>
    %83 = tpu.matmul %80, %82, %cst_86 {dimension_numbers = #tpu.dot_dimension_numbers<[1], [0], [0], [1], [0, 0, 1, 1], [], []>} : vector<16x128xf32>, vector<128x128xf32>, vector<16x128xf32> -> vector<16x128xf32>
    %84 = arith.addf %79, %83 : vector<16x128xf32>
    %c9_87 = arith.constant 9 : index
    %c0_88 = arith.constant 0 : index
    %85 = vector.load %arg9[%c9_87, %c0_88] : memref<26x128xf32, #tpu.memory_space<vmem>>, vector<16x128xf32>
    %c3_89 = arith.constant 3 : index
    %c0_90 = arith.constant 0 : index
    %c0_91 = arith.constant 0 : index
    %86 = vector.load %arg6[%c3_89, %c0_90, %c0_91] : memref<5x128x128xf32, #tpu.memory_space<vmem>>, vector<1x128x128xf32>
    %87 = vector.shape_cast %86 : vector<1x128x128xf32> to vector<128x128xf32>
    %cst_92 = arith.constant dense<0.000000e+00> : vector<16x128xf32>
    %88 = tpu.matmul %85, %87, %cst_92 {dimension_numbers = #tpu.dot_dimension_numbers<[1], [0], [0], [1], [0, 0, 1, 1], [], []>} : vector<16x128xf32>, vector<128x128xf32>, vector<16x128xf32> -> vector<16x128xf32>
    %89 = arith.addf %84, %88 : vector<16x128xf32>
    %c10_93 = arith.constant 10 : index
    %c0_94 = arith.constant 0 : index
    %90 = vector.load %arg9[%c10_93, %c0_94] : memref<26x128xf32, #tpu.memory_space<vmem>>, vector<16x128xf32>
    %c4_95 = arith.constant 4 : index
    %c0_96 = arith.constant 0 : index
    %c0_97 = arith.constant 0 : index
    %91 = vector.load %arg6[%c4_95, %c0_96, %c0_97] : memref<5x128x128xf32, #tpu.memory_space<vmem>>, vector<1x128x128xf32>
    %92 = vector.shape_cast %91 : vector<1x128x128xf32> to vector<128x128xf32>
    %cst_98 = arith.constant dense<0.000000e+00> : vector<16x128xf32>
    %93 = tpu.matmul %90, %92, %cst_98 {dimension_numbers = #tpu.dot_dimension_numbers<[1], [0], [0], [1], [0, 0, 1, 1], [], []>} : vector<16x128xf32>, vector<128x128xf32>, vector<16x128xf32> -> vector<16x128xf32>
    %94 = arith.addf %89, %93 : vector<16x128xf32>
    %c0_99 = arith.constant 0 : index
    %c0_100 = arith.constant 0 : index
    %c0_101 = arith.constant 0 : index
    %95 = vector.load %arg8[%c0_99, %c0_100, %c0_101] : memref<1x16x128xf32, #tpu.memory_space<vmem>>, vector<1x16x128xf32>
    %96 = vector.shape_cast %95 : vector<1x16x128xf32> to vector<16x128xf32>
    %97 = vector.shape_cast %94 : vector<16x128xf32> to vector<1x16x128xf32>
    tpu.vector_store %arg8[%c0_99, %c0_100, %c0_101], %97 {strides = array<i32>} : memref<1x16x128xf32, #tpu.memory_space<vmem>>, vector<1x16x128xf32>,
    return
  }
  func.func @transform_0(%arg0: i32) -> (i32, i32, i32) {
    %c0_i32 = arith.constant 0 : i32
    %c0_i32_0 = arith.constant 0 : i32
    %c0_i32_1 = arith.constant 0 : i32
    return %arg0, %c0_i32, %c0_i32_0 : i32, i32, i32
  }
  func.func @transform_1(%arg0: i32) -> (i32, i32, i32) {
    %c0_i32 = arith.constant 0 : i32
    %c0_i32_0 = arith.constant 0 : i32
    %c0_i32_1 = arith.constant 0 : i32
    %c0_i32_2 = arith.constant 0 : i32
    return %c0_i32, %c0_i32_0, %c0_i32_1 : i32, i32, i32
  }
  func.func @transform_2(%arg0: i32) -> (i32, i32) {
    %c0_i32 = arith.constant 0 : i32
    %c0_i32_0 = arith.constant 0 : i32
    %c0_i32_1 = arith.constant 0 : i32
    return %c0_i32, %c0_i32_0 : i32, i32
  }
  func.func @transform_3(%arg0: i32) -> (i32, i32, i32) {
    %c0_i32 = arith.constant 0 : i32
    %c0_i32_0 = arith.constant 0 : i32
    %c0_i32_1 = arith.constant 0 : i32
    %c0_i32_2 = arith.constant 0 : i32
    return %c0_i32, %c0_i32_0, %c0_i32_1 : i32, i32, i32
  }
  func.func @transform_4(%arg0: i32) -> (i32, i32) {
    %c0_i32 = arith.constant 0 : i32
    %c0_i32_0 = arith.constant 0 : i32
    %c0_i32_1 = arith.constant 0 : i32
    return %c0_i32, %c0_i32_0 : i32, i32
  }
  func.func @transform_5(%arg0: i32) -> (i32, i32, i32) {
    %c0_i32 = arith.constant 0 : i32
    %c0_i32_0 = arith.constant 0 : i32
    %c0_i32_1 = arith.constant 0 : i32
    %c0_i32_2 = arith.constant 0 : i32
    return %c0_i32, %c0_i32_0, %c0_i32_1 : i32, i32, i32
  }
  func.func @transform_6(%arg0: i32) -> (i32, i32) {
    %c0_i32 = arith.constant 0 : i32
    %c0_i32_0 = arith.constant 0 : i32
    %c0_i32_1 = arith.constant 0 : i32
    return %c0_i32, %c0_i32_0 : i32, i32
  }
  func.func @transform_7(%arg0: i32) -> (i32, i32, i32) {
    %c0_i32 = arith.constant 0 : i32
    %c0_i32_0 = arith.constant 0 : i32
    %c0_i32_1 = arith.constant 0 : i32
    return %arg0, %c0_i32, %c0_i32_0 : i32, i32, i32
  }
}

</mosaic_0001>

<llo_original>
// kernel: tpu_custom_call.1
$region0: #{tpu_custom_call.1}
  #allocation0 [shape = 'u32[]', space=smem, size = 0x4, offset = 0x4, fixed_abs, tag = 'smem constant byte address 0x4 - core index']
  #allocation1 [shape = 'u32[144,128]{1,0:T(1,128)}', space=vmem, size = 0x12000, scoped, tag = 'internal scratch']
  #allocation2 [shape = 'f32[26,128]{1,0:T(8,128)}', space=vmem, size = 0x4000, scoped, tag = 'scratch operand']
  %s0 = inlined_call_operand.hbm [shape: f32[2,16,128], index: 0, kind: input, shape index: {}]
  %s1 = inlined_call_operand.hbm [shape: f32[5,128,128], index: 1, kind: input, shape index: {}]
  %s2 = inlined_call_operand.vmem [shape: f32[1,128], index: 2, kind: input, shape index: {}]
  %s3 = inlined_call_operand.hbm [shape: f32[5,128,128], index: 3, kind: input, shape index: {}]
  %s4 = inlined_call_operand.vmem [shape: f32[1,128], index: 4, kind: input, shape index: {}]
  %s5 = inlined_call_operand.hbm [shape: f32[5,128,128], index: 5, kind: input, shape index: {}]
  %s6 = inlined_call_operand.vmem [shape: f32[1,128], index: 6, kind: input, shape index: {}]
  %s7 = inlined_call_operand.hbm [shape: f32[2,16,128], index: 7, kind: output, shape index: {}]
  %s8 = sld [smem:[#allocation0]]
  $region77: #{tpu_custom_call.1} parent=0
    _
  %s10 = ssub.s32 1, %s8
  %s11 = scalar_select 0, %s10, %s8
  $region1: #{tpu_custom_call.1} parent=0
    #allocation3 [shape = 'u8[16384]{0}', space=vmem, size = 0x4000, scoped, tag = 'input window, operand 0']
    #allocation4 [shape = 's32[2]{0}', space=sflag, size = 0x8, scoped, tag = 'scoped memory for tpu_custom_call.1']
    #allocation5 [shape = 's32[2]{0}', space=sflag, size = 0x8, scoped, tag = 'scoped memory for tpu_custom_call.1']
    #allocation6 [shape = 'u8[327680]{0}', space=vmem, size = 0x50000, scoped, tag = 'input window, operand 1, single buffered']
    #allocation7 [shape = 's32[1]{0}', space=sflag, size = 0x4, scoped, tag = 'scoped memory for tpu_custom_call.1']
    #allocation8 [shape = 'u8[327680]{0}', space=vmem, size = 0x50000, scoped, tag = 'input window, operand 3, single buffered']
    #allocation9 [shape = 'u8[327680]{0}', space=vmem, size = 0x50000, scoped, tag = 'input window, operand 5, single buffered']
    #allocation10 [shape = 's32[1]{0}', space=sflag, size = 0x4, scoped, tag = 'scoped memory for tpu_custom_call.1']
    #allocation11 [shape = 'u8[16384]{0}', space=vmem, size = 0x4000, scoped, tag = 'output window, operand 0']
    %12 = vsyncpa [#allocation4], 0
    %s13 = scalar_lea.sflag [#allocation4], 1
    %14 = vsyncpa %s13, 0
    %15 = vsyncpa [#allocation7], 0
    %16 = vsyncpa [#allocation10], 0
    %17 = vsyncpa [#allocation5], 0
    %s18 = scalar_lea.sflag [#allocation5], 1
    %19 = vsyncpa %s18, 0
    loop: start=0, step=1, limit=4
    $region2: #{tpu_custom_call.1} parent=1 // loop_pre_header
      _
    $region3: #{tpu_custom_call.1} parent=1 // loop_header
      %s21 = sphi 0, %s25
      %p22 = scmp.ge.s32.totalorder %s21, 4
      %s31 = sphi 0, %s33
      %s34 = sphi 0, %s31
      %s35 = sphi 0, %s34
      %s51 = sphi 0, %s35
      %s55 = sphi 0, %s55
      %s57 = sphi 0, %s55
      %s58 = sphi 0, %s57
      %s72 = sphi 0, %s58
      %s76 = sphi 0, %s76
      %s78 = sphi 0, %s76
      %s79 = sphi 0, %s78
      %s93 = sphi 0, %s79
      %s97 = sphi 0, %s97
      %s99 = sphi 0, %s97
      %s100 = sphi 0, %s99
      %s114 = sphi 0, %s100
      %s118 = sphi 0, %s118
      %s120 = sphi 0, %s118
      %s121 = sphi 0, %s120
      %s135 = sphi 0, %s121
      %s139 = sphi 0, %s139
      %s141 = sphi 0, %s139
      %s142 = sphi 0, %s141
      %s156 = sphi 0, %s142
      %s160 = sphi 0, %s160
      %s162 = sphi 0, %s160
      %s163 = sphi 0, %s162
      %s177 = sphi 0, %s163
      %s183 = sphi 0, %s185
      %s186 = sphi 0, %s183
      %s187 = sphi 0, %s186
      %s203 = sphi 0, %s187
    $region4: #{tpu_custom_call.1} parent=1 // loop_header_branch
      %24 = sbr.rel (%p22) target = $region8
    $region5: #{tpu_custom_call.1} parent=1 // loop_body
      %s26 = ssub.s32 %s21, 1
      %s27 = ssub.s32 %s21, 2
      %s28 = sadd.s32 %s21, 1
      %s29 = ssub.s32 %s21, %s28
      %p30 = scmp.eq.s32.totalorder %s29, 0
      %s32 = sadd.s32 %s31, 1
      %s33 = scalar_select %p30, %s31, %s32
      %p36 = pneg %p30
      %p37 = scmp.eq.s32.totalorder %s21, 1
      %p38 = por %p36, %p37
      %p39 = scmp.ne.s32.totalorder %s31, %s34
      %p40 = scmp.eq.s32.totalorder %s21, 0
      %p41 = por %p39, %p40
      %p42 = scmp.ne.s32.totalorder %s31, %s34
      %p43 = scmp.eq.s32.totalorder %s26, 1
      %p44 = por %p42, %p43
      %p45 = scmp.ne.s32.totalorder %s34, %s35
      %p46 = scmp.eq.s32.totalorder %s26, 0
      %p47 = por %p45, %p46
      %p48 = scmp.ne.s32.totalorder %s34, %s35
      %p49 = scmp.eq.s32.totalorder %s27, 1
      %p50 = por %p48, %p49
      %p52 = scmp.ne.s32.totalorder %s35, %s51
      %p53 = scmp.eq.s32.totalorder %s27, 0
      %p54 = por %p52, %p53
      %s56 = sadd.s32 %s55, 1
      %p59 = scmp.eq.s32.totalorder %s21, 1
      %p60 = scmp.ne.s32.totalorder %s55, %s57
      %p61 = scmp.eq.s32.totalorder %s21, 0
      %p62 = por %p60, %p61
      %p63 = scmp.ne.s32.totalorder %s55, %s57
      %p64 = scmp.eq.s32.totalorder %s26, 1
      %p65 = por %p63, %p64
      %p66 = scmp.ne.s32.totalorder %s57, %s58
      %p67 = scmp.eq.s32.totalorder %s26, 0
      %p68 = por %p66, %p67
      %p69 = scmp.ne.s32.totalorder %s57, %s58
      %p70 = scmp.eq.s32.totalorder %s27, 1
      %p71 = por %p69, %p70
      %p73 = scmp.ne.s32.totalorder %s58, %s72
      %p74 = scmp.eq.s32.totalorder %s27, 0
      %p75 = por %p73, %p74
      %s77 = sadd.s32 %s76, 1
      %p80 = scmp.eq.s32.totalorder %s21, 1
      %p81 = scmp.ne.s32.totalorder %s76, %s78
      %p82 = scmp.eq.s32.totalorder %s21, 0
      %p83 = por %p81, %p82
      %p84 = scmp.ne.s32.totalorder %s76, %s78
      %p85 = scmp.eq.s32.totalorder %s26, 1
      %p86 = por %p84, %p85
      %p87 = scmp.ne.s32.totalorder %s78, %s79
      %p88 = scmp.eq.s32.totalorder %s26, 0
      %p89 = por %p87, %p88
      %p90 = scmp.ne.s32.totalorder %s78, %s79
      %p91 = scmp.eq.s32.totalorder %s27, 1
      %p92 = por %p90, %p91
      %p94 = scmp.ne.s32.totalorder %s79, %s93
      %p95 = scmp.eq.s32.totalorder %s27, 0
      %p96 = por %p94, %p95
      %s98 = sadd.s32 %s97, 1
      %p101 = scmp.eq.s32.totalorder %s21, 1
      %p102 = scmp.ne.s32.totalorder %s97, %s99
      %p103 = scmp.eq.s32.totalorder %s21, 0
      %p104 = por %p102, %p103
      %p105 = scmp.ne.s32.totalorder %s97, %s99
      %p106 = scmp.eq.s32.totalorder %s26, 1
      %p107 = por %p105, %p106
      %p108 = scmp.ne.s32.totalorder %s99, %s100
      %p109 = scmp.eq.s32.totalorder %s26, 0
      %p110 = por %p108, %p109
      %p111 = scmp.ne.s32.totalorder %s99, %s100
      %p112 = scmp.eq.s32.totalorder %s27, 1
      %p113 = por %p111, %p112
      %p115 = scmp.ne.s32.totalorder %s100, %s114
      %p116 = scmp.eq.s32.totalorder %s27, 0
      %p117 = por %p115, %p116
      %s119 = sadd.s32 %s118, 1
      %p122 = scmp.eq.s32.totalorder %s21, 1
      %p123 = scmp.ne.s32.totalorder %s118, %s120
      %p124 = scmp.eq.s32.totalorder %s21, 0
      %p125 = por %p123, %p124
      %p126 = scmp.ne.s32.totalorder %s118, %s120
      %p127 = scmp.eq.s32.totalorder %s26, 1
      %p128 = por %p126, %p127
      %p129 = scmp.ne.s32.totalorder %s120, %s121
      %p130 = scmp.eq.s32.totalorder %s26, 0
      %p131 = por %p129, %p130
      %p132 = scmp.ne.s32.totalorder %s120, %s121
      %p133 = scmp.eq.s32.totalorder %s27, 1
      %p134 = por %p132, %p133
      %p136 = scmp.ne.s32.totalorder %s121, %s135
      %p137 = scmp.eq.s32.totalorder %s27, 0
      %p138 = por %p136, %p137
      %s140 = sadd.s32 %s139, 1
      %p143 = scmp.eq.s32.totalorder %s21, 1
      %p144 = scmp.ne.s32.totalorder %s139, %s141
      %p145 = scmp.eq.s32.totalorder %s21, 0
      %p146 = por %p144, %p145
      %p147 = scmp.ne.s32.totalorder %s139, %s141
      %p148 = scmp.eq.s32.totalorder %s26, 1
      %p149 = por %p147, %p148
      %p150 = scmp.ne.s32.totalorder %s141, %s142
      %p151 = scmp.eq.s32.totalorder %s26, 0
      %p152 = por %p150, %p151
      %p153 = scmp.ne.s32.totalorder %s141, %s142
      %p154 = scmp.eq.s32.totalorder %s27, 1
      %p155 = por %p153, %p154
      %p157 = scmp.ne.s32.totalorder %s142, %s156
      %p158 = scmp.eq.s32.totalorder %s27, 0
      %p159 = por %p157, %p158
      %s161 = sadd.s32 %s160, 1
      %p164 = scmp.eq.s32.totalorder %s21, 1
      %p165 = scmp.ne.s32.totalorder %s160, %s162
      %p166 = scmp.eq.s32.totalorder %s21, 0
      %p167 = por %p165, %p166
      %p168 = scmp.ne.s32.totalorder %s160, %s162
      %p169 = scmp.eq.s32.totalorder %s26, 1
      %p170 = por %p168, %p169
      %p171 = scmp.ne.s32.totalorder %s162, %s163
      %p172 = scmp.eq.s32.totalorder %s26, 0
      %p173 = por %p171, %p172
      %p174 = scmp.ne.s32.totalorder %s162, %s163
      %p175 = scmp.eq.s32.totalorder %s27, 1
      %p176 = por %p174, %p175
      %p178 = scmp.ne.s32.totalorder %s163, %s177
      %p179 = scmp.eq.s32.totalorder %s27, 0
      %p180 = por %p178, %p179
      %s181 = ssub.s32 %s21, %s28
      %p182 = scmp.eq.s32.totalorder %s181, 0
      %s184 = sadd.s32 %s183, 1
      %s185 = scalar_select %p182, %s183, %s184
      %p188 = pneg %p182
      %p189 = scmp.eq.s32.totalorder %s21, 1
      %p190 = por %p188, %p189
      %p191 = scmp.ne.s32.totalorder %s183, %s186
      %p192 = scmp.eq.s32.totalorder %s21, 0
      %p193 = por %p191, %p192
      %p194 = scmp.ne.s32.totalorder %s183, %s186
      %p195 = scmp.eq.s32.totalorder %s26, 1
      %p196 = por %p194, %p195
      %p197 = scmp.ne.s32.totalorder %s186, %s187
      %p198 = scmp.eq.s32.totalorder %s26, 0
      %p199 = por %p197, %p198
      %p200 = scmp.ne.s32.totalorder %s186, %s187
      %p201 = scmp.eq.s32.totalorder %s27, 1
      %p202 = por %p200, %p201
      %p204 = scmp.ne.s32.totalorder %s187, %s203
      %p205 = scmp.eq.s32.totalorder %s27, 0
      %p206 = por %p204, %p205
      %p207 = scmp.le.s32.totalorder 1, %s21
      %p208 = scmp.lt.s32.totalorder %s21, 3
      %p209 = pnand %p207, %p208
      %p210 = pneg %p209
      // Predicated region
      $region9: #{tpu_custom_call.1} parent=5 // pred_check
        _
      $region10: #{tpu_custom_call.1} parent=5 // pred_check_branch
        %212 = sbr.rel (%p209) target = $region12
      $region11: #{tpu_custom_call.1} parent=5 // pred_region
        %s213 = ssub.s32 %s21, 1
        // Predicated region
        $region13: #{tpu_custom_call.1} parent=11 // pred_check
          %p214 = pneg %p68
        $region14: #{tpu_custom_call.1} parent=11 // pred_check_branch
          %216 = sbr.rel (%p214) target = $region16
        $region15: #{tpu_custom_call.1} parent=11 // pred_region
          %s218 = ssub.s32 10240, 10240
          %219 = vsyncadd [#allocation7], %s218
          %s220 = sshll.u32 [#allocation6], 4
          %s221 = int_to_ptr.vmem [resolvable:$true] %s220
          %226 = dma.hbm_to_vmem [thread:$0]  %s1, 10240, %s221, [#allocation7], 128, 128, 8
        $region16: #{tpu_custom_call.1} parent=11 // pred_fallthru
          _
        // Predicated region
        $region17: #{tpu_custom_call.1} parent=11 // pred_check
          %p227 = pneg %p89
        $region18: #{tpu_custom_call.1} parent=11 // pred_check_branch
          %229 = sbr.rel (%p227) target = $region20
        $region19: #{tpu_custom_call.1} parent=11 // pred_region
          _
        $region20: #{tpu_custom_call.1} parent=11 // pred_fallthru
          _
        // Predicated region
        $region21: #{tpu_custom_call.1} parent=11 // pred_check
          %p230 = pneg %p110
        $region22: #{tpu_custom_call.1} parent=11 // pred_check_branch
          %232 = sbr.rel (%p230) target = $region24
        $region23: #{tpu_custom_call.1} parent=11 // pred_region
          %s234 = ssub.s32 10240, 10240
          %235 = vsyncadd [#allocation7], %s234
          %s236 = sshll.u32 [#allocation8], 4
          %s237 = int_to_ptr.vmem [resolvable:$true] %s236
          %242 = dma.hbm_to_vmem [thread:$0]  %s3, 10240, %s237, [#allocation7], 128, 128, 8
        $region24: #{tpu_custom_call.1} parent=11 // pred_fallthru
          _
        // Predicated region
        $region25: #{tpu_custom_call.1} parent=11 // pred_check
          %p243 = pneg %p131
        $region26: #{tpu_custom_call.1} parent=11 // pred_check_branch
          %245 = sbr.rel (%p243) target = $region28
        $region27: #{tpu_custom_call.1} parent=11 // pred_region
          _
        $region28: #{tpu_custom_call.1} parent=11 // pred_fallthru
          _
        // Predicated region
        $region29: #{tpu_custom_call.1} parent=11 // pred_check
          %p246 = pneg %p152
        $region30: #{tpu_custom_call.1} parent=11 // pred_check_branch
          %248 = sbr.rel (%p246) target = $region32
        $region31: #{tpu_custom_call.1} parent=11 // pred_region
          %s250 = ssub.s32 10240, 10240
          %251 = vsyncadd [#allocation10], %s250
          %s252 = sshll.u32 [#allocation9], 4
          %s253 = int_to_ptr.vmem [resolvable:$true] %s252
          %258 = dma.hbm_to_vmem [thread:$0]  %s5, 10240, %s253, [#allocation10], 128, 128, 8
        $region32: #{tpu_custom_call.1} parent=11 // pred_fallthru
          _
        // Predicated region
        $region33: #{tpu_custom_call.1} parent=11 // pred_check
          %p259 = pneg %p173
        $region34: #{tpu_custom_call.1} parent=11 // pred_check_branch
          %261 = sbr.rel (%p259) target = $region36
        $region35: #{tpu_custom_call.1} parent=11 // pred_region
          _
        $region36: #{tpu_custom_call.1} parent=11 // pred_fallthru
          _
      $region12: #{tpu_custom_call.1} parent=5 // pred_fallthru
        _
      %p262 = scmp.lt.s32.totalorder %s21, 2
      // Predicated region
      $region37: #{tpu_custom_call.1} parent=5 // pred_check
        %p263 = pneg %p262
      $region38: #{tpu_custom_call.1} parent=5 // pred_check_branch
        %265 = sbr.rel (%p263) target = $region40
      $region39: #{tpu_custom_call.1} parent=5 // pred_region
        // Predicated region
        $region41: #{tpu_custom_call.1} parent=39 // pred_check
          %p266 = pneg %p41
        $region42: #{tpu_custom_call.1} parent=39 // pred_check_branch
          %268 = sbr.rel (%p266) target = $region44
        $region43: #{tpu_custom_call.1} parent=39 // pred_region
          %s269 = sand.u32 %s31, 1
          %s270 = scalar_lea.sflag [#allocation4], %s269
          %s271 = sand.u32 %s31, 1
          %s272 = smul.addr %s271, 16
          %s273 = scalar_lea.vmem [#allocation3], %s272
          %s275 = ssub.s32 256, 256
          %276 = vsyncadd %s270, %s275
          %s277 = smul.addr %s21, 2
          %s278 = smul.addr %s277, 128
          %s279 = scalar_lea.hbm %s0, %s278
          %s280 = sshll.u32 %s273, 4
          %s281 = int_to_ptr.vmem [resolvable:$true] %s280
          %286 = dma.hbm_to_vmem [thread:$0]  %s279, 256, %s281, %s270, 128, 128, 8
        $region44: #{tpu_custom_call.1} parent=39 // pred_fallthru
          _
      $region40: #{tpu_custom_call.1} parent=5 // pred_fallthru
        _
      %p287 = scmp.le.s32.totalorder 1, %s21
      %p288 = scmp.lt.s32.totalorder %s21, 3
      %p289 = pnand %p287, %p288
      %p290 = pneg %p289
      // Predicated region
      $region45: #{tpu_custom_call.1} parent=5 // pred_check
        _
      $region46: #{tpu_custom_call.1} parent=5 // pred_check_branch
        %292 = sbr.rel (%p289) target = $region48
      $region47: #{tpu_custom_call.1} parent=5 // pred_region
        %s293 = ssub.s32 %s21, 1
        %s294 = sand.u32 %s34, 1
        %s295 = scalar_lea.sflag [#allocation4], %s294
        %s296 = sand.u32 %s34, 1
        %s297 = smul.addr %s296, 16
        %s298 = scalar_lea.vmem [#allocation3], %s297
        // Predicated region
        $region49: #{tpu_custom_call.1} parent=47 // pred_check
          %p299 = pneg %p47
        $region50: #{tpu_custom_call.1} parent=47 // pred_check_branch
          %301 = sbr.rel (%p299) target = $region52
        $region51: #{tpu_custom_call.1} parent=47 // pred_region
          %302 = dma.done %s295, 256
        $region52: #{tpu_custom_call.1} parent=47 // pred_fallthru
          _
        // Predicated region
        $region53: #{tpu_custom_call.1} parent=47 // pred_check
          %p303 = pneg %p68
        $region54: #{tpu_custom_call.1} parent=47 // pred_check_branch
          %305 = sbr.rel (%p303) target = $region56
        $region55: #{tpu_custom_call.1} parent=47 // pred_region
          %306 = dma.done [#allocation7], 10240
        $region56: #{tpu_custom_call.1} parent=47 // pred_fallthru
          _
        // Predicated region
        $region57: #{tpu_custom_call.1} parent=47 // pred_check
          %p307 = pneg %p110
        $region58: #{tpu_custom_call.1} parent=47 // pred_check_branch
          %309 = sbr.rel (%p307) target = $region60
        $region59: #{tpu_custom_call.1} parent=47 // pred_region
          %310 = dma.done [#allocation7], 10240
        $region60: #{tpu_custom_call.1} parent=47 // pred_fallthru
          _
        // Predicated region
        $region61: #{tpu_custom_call.1} parent=47 // pred_check
          %p311 = pneg %p152
        $region62: #{tpu_custom_call.1} parent=47 // pred_check_branch
          %313 = sbr.rel (%p311) target = $region64
        $region63: #{tpu_custom_call.1} parent=47 // pred_region
          %314 = dma.done [#allocation10], 10240
        $region64: #{tpu_custom_call.1} parent=47 // pred_fallthru
          _
        %s315 = sand.u32 %s34, 1
        %s316 = scalar_lea.sflag [#allocation4], %s315
        %s317 = sand.u32 %s34, 1
        %s318 = smul.addr %s317, 16
        %s319 = scalar_lea.vmem [#allocation3], %s318
        %p320 = pneg %p47
        %p321 = pneg %p44
        %p322 = pneg %p68
        %p323 = pneg %p65
        %p324 = pneg %p89
        %p325 = pneg %p86
        %p326 = pneg %p110
        %p327 = pneg %p107
        %p328 = pneg %p131
        %p329 = pneg %p128
        %p330 = pneg %p152
        %p331 = pneg %p149
        %p332 = pneg %p173
        %p333 = pneg %p170
        %p334 = pneg %p199
        %p335 = pneg %p196
        %s336 = sand.u32 %s186, 1
        %s337 = scalar_lea.sflag [#allocation5], %s336
        %s338 = sand.u32 %s186, 1
        %s339 = smul.addr %s338, 16
        %s340 = scalar_lea.vmem [#allocation11], %s339
        %341 = vst [vmem:[#allocation2] sm:$0xff] 0.0
        %342 = vst [vmem:[#allocation2 + $0x18] sm:$0x3] 0.0
        %v343 = vld [vmem:[%s298] sm:$0xff]
        %v344 = vld [vmem:[%s298 + $0x8] sm:$0xff]
        %345 = vst [vmem:[#allocation2 + $0x8] sm:$0xff] %v343
        %346 = vst [vmem:[#allocation2 + $0x10] sm:$0xff] %v344
        %v347 = vld [vmem:[%s2] sm:$0x1]
        %v349 = vlaneseq
        %v350 = vshrl.u32 %v349, 7
        %v351 = vsub.s32 0, %v350
        %v352 = vrot.slane %v347, %v351
        %v354 = vld [vmem:[#allocation2 + $0x6] sm:$0xff]
        %v355 = vld [vmem:[#allocation2 + $0xe] sm:$0xff]
        %v356 = vld [vmem:[#allocation6] sm:$0xff]
        %v357 = vld [vmem:[#allocation6 + $0x8] sm:$0xff]
        %v358 = vld [vmem:[#allocation6 + $0x10] sm:$0xff]
        %v359 = vld [vmem:[#allocation6 + $0x18] sm:$0xff]
        %v360 = vld [vmem:[#allocation6 + $0x20] sm:$0xff]
        %v361 = vld [vmem:[#allocation6 + $0x28] sm:$0xff]
        %v362 = vld [vmem:[#allocation6 + $0x30] sm:$0xff]
        %v363 = vld [vmem:[#allocation6 + $0x38] sm:$0xff]
        %v364 = vld [vmem:[#allocation6 + $0x40] sm:$0xff]
        %v365 = vld [vmem:[#allocation6 + $0x48] sm:$0xff]
        %v366 = vld [vmem:[#allocation6 + $0x50] sm:$0xff]
        %v367 = vld [vmem:[#allocation6 + $0x58] sm:$0xff]
        %v368 = vld [vmem:[#allocation6 + $0x60] sm:$0xff]
        %v369 = vld [vmem:[#allocation6 + $0x68] sm:$0xff]
        %v370 = vld [vmem:[#allocation6 + $0x70] sm:$0xff]
        %v371 = vld [vmem:[#allocation6 + $0x78] sm:$0xff]
        %372 = vmatprep.subr.mxu0 0.0
        %373 = vmatpush1.msra.mxu0 %v356
        %374 = vmatprep.subr.mxu0 0.0
        %375 = vmatpush1.msra.mxu0 %v357
        %376 = vmatprep.subr.mxu0 0.0
        %377 = vmatpush1.msra.mxu0 %v358
        %378 = vmatprep.subr.mxu0 0.0
        %379 = vmatpush1.msra.mxu0 %v359
        %380 = vmatprep.subr.mxu0 0.0
        %381 = vmatpush1.msra.mxu0 %v360
        %382 = vmatprep.subr.mxu0 0.0
        %383 = vmatpush1.msra.mxu0 %v361
        %384 = vmatprep.subr.mxu0 0.0
        %385 = vmatpush1.msra.mxu0 %v362
        %386 = vmatprep.subr.mxu0 0.0
        %387 = vmatpush1.msra.mxu0 %v363
        %388 = vmatprep.subr.mxu0 0.0
        %389 = vmatpush1.msra.mxu0 %v364
        %390 = vmatprep.subr.mxu0 0.0
        %391 = vmatpush1.msra.mxu0 %v365
        %392 = vmatprep.subr.mxu0 0.0
        %393 = vmatpush1.msra.mxu0 %v366
        %394 = vmatprep.subr.mxu0 0.0
        %395 = vmatpush1.msra.mxu0 %v367
        %396 = vmatprep.subr.mxu0 0.0
        %397 = vmatpush1.msra.mxu0 %v368
        %398 = vmatprep.subr.mxu0 0.0
        %399 = vmatpush1.msra.mxu0 %v369
        %400 = vmatprep.subr.mxu0 0.0
        %401 = vmatpush1.msra.mxu0 %v370
        %402 = vmatprep.subr.mxu0 0.0
        %403 = vmatpush1.msra.mxu0 %v371
        %404 = vmatprep.subr.mxu0 0.0
        %405 = vmatpush1.msra.mxu0 0.0
        %406 = vmatprep.subr.mxu0 0.0
        %407 = vmatpush1.msra.mxu0 0.0
        %408 = vmatprep.subr.mxu0 0.0
        %409 = vmatpush1.msra.mxu0 0.0
        %410 = vmatprep.subr.mxu0 0.0
        %411 = vmatpush1.msra.mxu0 0.0
        %412 = vmatprep.subr.mxu0 0.0
        %413 = vmatpush1.msra.mxu0 0.0
        %414 = vmatprep.subr.mxu0 0.0
        %415 = vmatpush1.msra.mxu0 0.0
        %416 = vmatprep.subr.mxu0 0.0
        %417 = vmatpush1.msra.mxu0 0.0
        %418 = vmatprep.subr.mxu0 0.0
        %419 = vmatpush1.msra.mxu0 0.0
        %420 = vmatprep.subr.mxu0 0.0
        %421 = vmatpush1.msra.mxu0 0.0
        %422 = vmatprep.subr.mxu0 0.0
        %423 = vmatpush1.msra.mxu0 0.0
        %424 = vmatprep.subr.mxu0 0.0
        %425 = vmatpush1.msra.mxu0 0.0
        %426 = vmatprep.subr.mxu0 0.0
        %427 = vmatpush1.msra.mxu0 0.0
        %428 = vmatprep.subr.mxu0 0.0
        %429 = vmatpush1.msra.mxu0 0.0
        %430 = vmatprep.subr.mxu0 0.0
        %431 = vmatpush1.msra.mxu0 0.0
        %432 = vmatprep.subr.mxu0 0.0
        %433 = vmatpush1.msra.mxu0 0.0
        %434 = vmatprep.subr.mxu0 0.0
        %435 = vmatpush1.msra.mxu0 0.0
        %436 = vmatprep.mubr.f32.mxu0 0.0
        %437 = vmatmul.mubr.f32.gmra.mrb[0].mxu0 %v354
        %v438 = vpop.f32.mrb[0].mxu0
        %v439 = vadd.f32 0.0, %v438
        %v440 = vpop.f32.mrb[0].mxu0
        %441 = vmatprep.mubr.f32.mxu0 0.0
        %442 = vmatmul.mubr.f32.gmra.mrb[0].mxu0 %v355
        %v443 = vpop.f32.mrb[0].mxu0
        %v444 = vadd.f32 0.0, %v443
        %v445 = vpop.f32.mrb[0].mxu0
        %446 = vdwg.mxu0
        %v447 = vadd.f32 %v352, %v439
        %v448 = vadd.f32 %v352, %v444
        %v449 = vld [vmem:[#allocation2 + $0x7] sm:$0xff]
        %v450 = vld [vmem:[#allocation2 + $0xf] sm:$0xff]
        %s451 = scalar_lea.vmem [#allocation6], 128
        %v452 = vld [vmem:[%s451] sm:$0xff]
        %v453 = vld [vmem:[%s451 + $0x8] sm:$0xff]
        %v454 = vld [vmem:[%s451 + $0x10] sm:$0xff]
        %v455 = vld [vmem:[%s451 + $0x18] sm:$0xff]
        %v456 = vld [vmem:[%s451 + $0x20] sm:$0xff]
        %v457 = vld [vmem:[%s451 + $0x28] sm:$0xff]
        %v458 = vld [vmem:[%s451 + $0x30] sm:$0xff]
        %v459 = vld [vmem:[%s451 + $0x38] sm:$0xff]
        %v460 = vld [vmem:[%s451 + $0x40] sm:$0xff]
        %v461 = vld [vmem:[%s451 + $0x48] sm:$0xff]
        %v462 = vld [vmem:[%s451 + $0x50] sm:$0xff]
        %v463 = vld [vmem:[%s451 + $0x58] sm:$0xff]
        %v464 = vld [vmem:[%s451 + $0x60] sm:$0xff]
        %v465 = vld [vmem:[%s451 + $0x68] sm:$0xff]
        %v466 = vld [vmem:[%s451 + $0x70] sm:$0xff]
        %v467 = vld [vmem:[%s451 + $0x78] sm:$0xff]
        %468 = vmatprep.subr.mxu0 0.0
        %469 = vmatpush1.msra.mxu0 %v452
        %470 = vmatprep.subr.mxu0 0.0
        %471 = vmatpush1.msra.mxu0 %v453
        %472 = vmatprep.subr.mxu0 0.0
        %473 = vmatpush1.msra.mxu0 %v454
        %474 = vmatprep.subr.mxu0 0.0
        %475 = vmatpush1.msra.mxu0 %v455
        %476 = vmatprep.subr.mxu0 0.0
        %477 = vmatpush1.msra.mxu0 %v456
        %478 = vmatprep.subr.mxu0 0.0
        %479 = vmatpush1.msra.mxu0 %v457
        %480 = vmatprep.subr.mxu0 0.0
        %481 = vmatpush1.msra.mxu0 %v458
        %482 = vmatprep.subr.mxu0 0.0
        %483 = vmatpush1.msra.mxu0 %v459
        %484 = vmatprep.subr.mxu0 0.0
        %485 = vmatpush1.msra.mxu0 %v460
        %486 = vmatprep.subr.mxu0 0.0
        %487 = vmatpush1.msra.mxu0 %v461
        %488 = vmatprep.subr.mxu0 0.0
        %489 = vmatpush1.msra.mxu0 %v462
        %490 = vmatprep.subr.mxu0 0.0
        %491 = vmatpush1.msra.mxu0 %v463
        %492 = vmatprep.subr.mxu0 0.0
        %493 = vmatpush1.msra.mxu0 %v464
        %494 = vmatprep.subr.mxu0 0.0
        %495 = vmatpush1.msra.mxu0 %v465
        %496 = vmatprep.subr.mxu0 0.0
        %497 = vmatpush1.msra.mxu0 %v466
        %498 = vmatprep.subr.mxu0 0.0
        %499 = vmatpush1.msra.mxu0 %v467
        %500 = vmatprep.subr.mxu0 0.0
        %501 = vmatpush1.msra.mxu0 0.0
        %502 = vmatprep.subr.mxu0 0.0
        %503 = vmatpush1.msra.mxu0 0.0
        %504 = vmatprep.subr.mxu0 0.0
        %505 = vmatpush1.msra.mxu0 0.0
        %506 = vmatprep.subr.mxu0 0.0
        %507 = vmatpush1.msra.mxu0 0.0
        %508 = vmatprep.subr.mxu0 0.0
        %509 = vmatpush1.msra.mxu0 0.0
        %510 = vmatprep.subr.mxu0 0.0
        %511 = vmatpush1.msra.mxu0 0.0
        %512 = vmatprep.subr.mxu0 0.0
        %513 = vmatpush1.msra.mxu0 0.0
        %514 = vmatprep.subr.mxu0 0.0
        %515 = vmatpush1.msra.mxu0 0.0
        %516 = vmatprep.subr.mxu0 0.0
        %517 = vmatpush1.msra.mxu0 0.0
        %518 = vmatprep.subr.mxu0 0.0
        %519 = vmatpush1.msra.mxu0 0.0
        %520 = vmatprep.subr.mxu0 0.0
        %521 = vmatpush1.msra.mxu0 0.0
        %522 = vmatprep.subr.mxu0 0.0
        %523 = vmatpush1.msra.mxu0 0.0
        %524 = vmatprep.subr.mxu0 0.0
        %525 = vmatpush1.msra.mxu0 0.0
        %526 = vmatprep.subr.mxu0 0.0
        %527 = vmatpush1.msra.mxu0 0.0
        %528 = vmatprep.subr.mxu0 0.0
        %529 = vmatpush1.msra.mxu0 0.0
        %530 = vmatprep.subr.mxu0 0.0
        %531 = vmatpush1.msra.mxu0 0.0
        %532 = vmatprep.mubr.f32.mxu0 0.0
        %533 = vmatmul.mubr.f32.gmra.mrb[0].mxu0 %v449
        %v534 = vpop.f32.mrb[0].mxu0
        %v535 = vadd.f32 0.0, %v534
        %v536 = vpop.f32.mrb[0].mxu0
        %537 = vmatprep.mubr.f32.mxu0 0.0
        %538 = vmatmul.mubr.f32.gmra.mrb[0].mxu0 %v450
        %v539 = vpop.f32.mrb[0].mxu0
        %v540 = vadd.f32 0.0, %v539
        %v541 = vpop.f32.mrb[0].mxu0
        %542 = vdwg.mxu0
        %v543 = vadd.f32 %v447, %v535
        %v544 = vadd.f32 %v448, %v540
        %v545 = vld [vmem:[#allocation2 + $0x8] sm:$0xff]
        %v546 = vld [vmem:[#allocation2 + $0x10] sm:$0xff]
        %s547 = scalar_lea.vmem [#allocation6], 256
        %v548 = vld [vmem:[%s547] sm:$0xff]
        %v549 = vld [vmem:[%s547 + $0x8] sm:$0xff]
        %v550 = vld [vmem:[%s547 + $0x10] sm:$0xff]
        %v551 = vld [vmem:[%s547 + $0x18] sm:$0xff]
        %v552 = vld [vmem:[%s547 + $0x20] sm:$0xff]
        %v553 = vld [vmem:[%s547 + $0x28] sm:$0xff]
        %v554 = vld [vmem:[%s547 + $0x30] sm:$0xff]
        %v555 = vld [vmem:[%s547 + $0x38] sm:$0xff]
        %v556 = vld [vmem:[%s547 + $0x40] sm:$0xff]
        %v557 = vld [vmem:[%s547 + $0x48] sm:$0xff]
        %v558 = vld [vmem:[%s547 + $0x50] sm:$0xff]
        %v559 = vld [vmem:[%s547 + $0x58] sm:$0xff]
        %v560 = vld [vmem:[%s547 + $0x60] sm:$0xff]
        %v561 = vld [vmem:[%s547 + $0x68] sm:$0xff]
        %v562 = vld [vmem:[%s547 + $0x70] sm:$0xff]
        %v563 = vld [vmem:[%s547 + $0x78] sm:$0xff]
        %564 = vmatprep.subr.mxu0 0.0
        %565 = vmatpush1.msra.mxu0 %v548
        %566 = vmatprep.subr.mxu0 0.0
        %567 = vmatpush1.msra.mxu0 %v549
        %568 = vmatprep.subr.mxu0 0.0
        %569 = vmatpush1.msra.mxu0 %v550
        %570 = vmatprep.subr.mxu0 0.0
        %571 = vmatpush1.msra.mxu0 %v551
        %572 = vmatprep.subr.mxu0 0.0
        %573 = vmatpush1.msra.mxu0 %v552
        %574 = vmatprep.subr.mxu0 0.0
        %575 = vmatpush1.msra.mxu0 %v553
        %576 = vmatprep.subr.mxu0 0.0
        %577 = vmatpush1.msra.mxu0 %v554
        %578 = vmatprep.subr.mxu0 0.0
        %579 = vmatpush1.msra.mxu0 %v555
        %580 = vmatprep.subr.mxu0 0.0
        %581 = vmatpush1.msra.mxu0 %v556
        %582 = vmatprep.subr.mxu0 0.0
        %583 = vmatpush1.msra.mxu0 %v557
        %584 = vmatprep.subr.mxu0 0.0
        %585 = vmatpush1.msra.mxu0 %v558
        %586 = vmatprep.subr.mxu0 0.0
        %587 = vmatpush1.msra.mxu0 %v559
        %588 = vmatprep.subr.mxu0 0.0
        %589 = vmatpush1.msra.mxu0 %v560
        %590 = vmatprep.subr.mxu0 0.0
        %591 = vmatpush1.msra.mxu0 %v561
        %592 = vmatprep.subr.mxu0 0.0
        %593 = vmatpush1.msra.mxu0 %v562
        %594 = vmatprep.subr.mxu0 0.0
        %595 = vmatpush1.msra.mxu0 %v563
        %596 = vmatprep.subr.mxu0 0.0
        %597 = vmatpush1.msra.mxu0 0.0
        %598 = vmatprep.subr.mxu0 0.0
        %599 = vmatpush1.msra.mxu0 0.0
        %600 = vmatprep.subr.mxu0 0.0
        %601 = vmatpush1.msra.mxu0 0.0
        %602 = vmatprep.subr.mxu0 0.0
        %603 = vmatpush1.msra.mxu0 0.0
        %604 = vmatprep.subr.mxu0 0.0
        %605 = vmatpush1.msra.mxu0 0.0
        %606 = vmatprep.subr.mxu0 0.0
        %607 = vmatpush1.msra.mxu0 0.0
        %608 = vmatprep.subr.mxu0 0.0
        %609 = vmatpush1.msra.mxu0 0.0
        %610 = vmatprep.subr.mxu0 0.0
        %611 = vmatpush1.msra.mxu0 0.0
        %612 = vmatprep.subr.mxu0 0.0
        %613 = vmatpush1.msra.mxu0 0.0
        %614 = vmatprep.subr.mxu0 0.0
        %615 = vmatpush1.msra.mxu0 0.0
        %616 = vmatprep.subr.mxu0 0.0
        %617 = vmatpush1.msra.mxu0 0.0
        %618 = vmatprep.subr.mxu0 0.0
        %619 = vmatpush1.msra.mxu0 0.0
        %620 = vmatprep.subr.mxu0 0.0
        %621 = vmatpush1.msra.mxu0 0.0
        %622 = vmatprep.subr.mxu0 0.0
        %623 = vmatpush1.msra.mxu0 0.0
        %624 = vmatprep.subr.mxu0 0.0
        %625 = vmatpush1.msra.mxu0 0.0
        %626 = vmatprep.subr.mxu0 0.0
        %627 = vmatpush1.msra.mxu0 0.0
        %628 = vmatprep.mubr.f32.mxu0 0.0
        %629 = vmatmul.mubr.f32.gmra.mrb[0].mxu0 %v545
        %v630 = vpop.f32.mrb[0].mxu0
        %v631 = vadd.f32 0.0, %v630
        %v632 = vpop.f32.mrb[0].mxu0
        %633 = vmatprep.mubr.f32.mxu0 0.0
        %634 = vmatmul.mubr.f32.gmra.mrb[0].mxu0 %v546
        %v635 = vpop.f32.mrb[0].mxu0
        %v636 = vadd.f32 0.0, %v635
        %v637 = vpop.f32.mrb[0].mxu0
        %638 = vdwg.mxu0
        %v639 = vadd.f32 %v543, %v631
        %v640 = vadd.f32 %v544, %v636
        %v641 = vld [vmem:[#allocation2 + $0x9] sm:$0xff]
        %v642 = vld [vmem:[#allocation2 + $0x11] sm:$0xff]
        %s643 = scalar_lea.vmem [#allocation6], 384
        %v644 = vld [vmem:[%s643] sm:$0xff]
        %v645 = vld [vmem:[%s643 + $0x8] sm:$0xff]
        %v646 = vld [vmem:[%s643 + $0x10] sm:$0xff]
        %v647 = vld [vmem:[%s643 + $0x18] sm:$0xff]
        %v648 = vld [vmem:[%s643 + $0x20] sm:$0xff]
        %v649 = vld [vmem:[%s643 + $0x28] sm:$0xff]
        %v650 = vld [vmem:[%s643 + $0x30] sm:$0xff]
        %v651 = vld [vmem:[%s643 + $0x38] sm:$0xff]
        %v652 = vld [vmem:[%s643 + $0x40] sm:$0xff]
        %v653 = vld [vmem:[%s643 + $0x48] sm:$0xff]
        %v654 = vld [vmem:[%s643 + $0x50] sm:$0xff]
        %v655 = vld [vmem:[%s643 + $0x58] sm:$0xff]
        %v656 = vld [vmem:[%s643 + $0x60] sm:$0xff]
        %v657 = vld [vmem:[%s643 + $0x68] sm:$0xff]
        %v658 = vld [vmem:[%s643 + $0x70] sm:$0xff]
        %v659 = vld [vmem:[%s643 + $0x78] sm:$0xff]
        %660 = vmatprep.subr.mxu0 0.0
        %661 = vmatpush1.msra.mxu0 %v644
        %662 = vmatprep.subr.mxu0 0.0
        %663 = vmatpush1.msra.mxu0 %v645
        %664 = vmatprep.subr.mxu0 0.0
        %665 = vmatpush1.msra.mxu0 %v646
        %666 = vmatprep.subr.mxu0 0.0
        %667 = vmatpush1.msra.mxu0 %v647
        %668 = vmatprep.subr.mxu0 0.0
        %669 = vmatpush1.msra.mxu0 %v648
        %670 = vmatprep.subr.mxu0 0.0
        %671 = vmatpush1.msra.mxu0 %v649
        %672 = vmatprep.subr.mxu0 0.0
        %673 = vmatpush1.msra.mxu0 %v650
        %674 = vmatprep.subr.mxu0 0.0
        %675 = vmatpush1.msra.mxu0 %v651
        %676 = vmatprep.subr.mxu0 0.0
        %677 = vmatpush1.msra.mxu0 %v652
        %678 = vmatprep.subr.mxu0 0.0
        %679 = vmatpush1.msra.mxu0 %v653
        %680 = vmatprep.subr.mxu0 0.0
        %681 = vmatpush1.msra.mxu0 %v654
        %682 = vmatprep.subr.mxu0 0.0
        %683 = vmatpush1.msra.mxu0 %v655
        %684 = vmatprep.subr.mxu0 0.0
        %685 = vmatpush1.msra.mxu0 %v656
        %686 = vmatprep.subr.mxu0 0.0
        %687 = vmatpush1.msra.mxu0 %v657
        %688 = vmatprep.subr.mxu0 0.0
        %689 = vmatpush1.msra.mxu0 %v658
        %690 = vmatprep.subr.mxu0 0.0
        %691 = vmatpush1.msra.mxu0 %v659
        %692 = vmatprep.subr.mxu0 0.0
        %693 = vmatpush1.msra.mxu0 0.0
        %694 = vmatprep.subr.mxu0 0.0
        %695 = vmatpush1.msra.mxu0 0.0
        %696 = vmatprep.subr.mxu0 0.0
        %697 = vmatpush1.msra.mxu0 0.0
        %698 = vmatprep.subr.mxu0 0.0
        %699 = vmatpush1.msra.mxu0 0.0
        %700 = vmatprep.subr.mxu0 0.0
        %701 = vmatpush1.msra.mxu0 0.0
        %702 = vmatprep.subr.mxu0 0.0
        %703 = vmatpush1.msra.mxu0 0.0
        %704 = vmatprep.subr.mxu0 0.0
        %705 = vmatpush1.msra.mxu0 0.0
        %706 = vmatprep.subr.mxu0 0.0
        %707 = vmatpush1.msra.mxu0 0.0
        %708 = vmatprep.subr.mxu0 0.0
        %709 = vmatpush1.msra.mxu0 0.0
        %710 = vmatprep.subr.mxu0 0.0
        %711 = vmatpush1.msra.mxu0 0.0
        %712 = vmatprep.subr.mxu0 0.0
        %713 = vmatpush1.msra.mxu0 0.0
        %714 = vmatprep.subr.mxu0 0.0
        %715 = vmatpush1.msra.mxu0 0.0
        %716 = vmatprep.subr.mxu0 0.0
        %717 = vmatpush1.msra.mxu0 0.0
        %718 = vmatprep.subr.mxu0 0.0
        %719 = vmatpush1.msra.mxu0 0.0
        %720 = vmatprep.subr.mxu0 0.0
        %721 = vmatpush1.msra.mxu0 0.0
        %722 = vmatprep.subr.mxu0 0.0
        %723 = vmatpush1.msra.mxu0 0.0
        %724 = vmatprep.mubr.f32.mxu0 0.0
        %725 = vmatmul.mubr.f32.gmra.mrb[0].mxu0 %v641
        %v726 = vpop.f32.mrb[0].mxu0
        %v727 = vadd.f32 0.0, %v726
        %v728 = vpop.f32.mrb[0].mxu0
        %729 = vmatprep.mubr.f32.mxu0 0.0
        %730 = vmatmul.mubr.f32.gmra.mrb[0].mxu0 %v642
        %v731 = vpop.f32.mrb[0].mxu0
        %v732 = vadd.f32 0.0, %v731
        %v733 = vpop.f32.mrb[0].mxu0
        %734 = vdwg.mxu0
        %v735 = vadd.f32 %v639, %v727
        %v736 = vadd.f32 %v640, %v732
        %v737 = vld [vmem:[#allocation2 + $0xa] sm:$0xff]
        %v738 = vld [vmem:[#allocation2 + $0x12] sm:$0xff]
        %s739 = scalar_lea.vmem [#allocation6], 512
        %v740 = vld [vmem:[%s739] sm:$0xff]
        %v741 = vld [vmem:[%s739 + $0x8] sm:$0xff]
        %v742 = vld [vmem:[%s739 + $0x10] sm:$0xff]
        %v743 = vld [vmem:[%s739 + $0x18] sm:$0xff]
        %v744 = vld [vmem:[%s739 + $0x20] sm:$0xff]
        %v745 = vld [vmem:[%s739 + $0x28] sm:$0xff]
        %v746 = vld [vmem:[%s739 + $0x30] sm:$0xff]
        %v747 = vld [vmem:[%s739 + $0x38] sm:$0xff]
        %v748 = vld [vmem:[%s739 + $0x40] sm:$0xff]
        %v749 = vld [vmem:[%s739 + $0x48] sm:$0xff]
        %v750 = vld [vmem:[%s739 + $0x50] sm:$0xff]
        %v751 = vld [vmem:[%s739 + $0x58] sm:$0xff]
        %v752 = vld [vmem:[%s739 + $0x60] sm:$0xff]
        %v753 = vld [vmem:[%s739 + $0x68] sm:$0xff]
        %v754 = vld [vmem:[%s739 + $0x70] sm:$0xff]
        %v755 = vld [vmem:[%s739 + $0x78] sm:$0xff]
        %756 = vmatprep.subr.mxu0 0.0
        %757 = vmatpush1.msra.mxu0 %v740
        %758 = vmatprep.subr.mxu0 0.0
        %759 = vmatpush1.msra.mxu0 %v741
        %760 = vmatprep.subr.mxu0 0.0
        %761 = vmatpush1.msra.mxu0 %v742
        %762 = vmatprep.subr.mxu0 0.0
        %763 = vmatpush1.msra.mxu0 %v743
        %764 = vmatprep.subr.mxu0 0.0
        %765 = vmatpush1.msra.mxu0 %v744
        %766 = vmatprep.subr.mxu0 0.0
        %767 = vmatpush1.msra.mxu0 %v745
        %768 = vmatprep.subr.mxu0 0.0
        %769 = vmatpush1.msra.mxu0 %v746
        %770 = vmatprep.subr.mxu0 0.0
        %771 = vmatpush1.msra.mxu0 %v747
        %772 = vmatprep.subr.mxu0 0.0
        %773 = vmatpush1.msra.mxu0 %v748
        %774 = vmatprep.subr.mxu0 0.0
        %775 = vmatpush1.msra.mxu0 %v749
        %776 = vmatprep.subr.mxu0 0.0
        %777 = vmatpush1.msra.mxu0 %v750
        %778 = vmatprep.subr.mxu0 0.0
        %779 = vmatpush1.msra.mxu0 %v751
        %780 = vmatprep.subr.mxu0 0.0
        %781 = vmatpush1.msra.mxu0 %v752
        %782 = vmatprep.subr.mxu0 0.0
        %783 = vmatpush1.msra.mxu0 %v753
        %784 = vmatprep.subr.mxu0 0.0
        %785 = vmatpush1.msra.mxu0 %v754
        %786 = vmatprep.subr.mxu0 0.0
        %787 = vmatpush1.msra.mxu0 %v755
        %788 = vmatprep.subr.mxu0 0.0
        %789 = vmatpush1.msra.mxu0 0.0
        %790 = vmatprep.subr.mxu0 0.0
        %791 = vmatpush1.msra.mxu0 0.0
        %792 = vmatprep.subr.mxu0 0.0
        %793 = vmatpush1.msra.mxu0 0.0
        %794 = vmatprep.subr.mxu0 0.0
        %795 = vmatpush1.msra.mxu0 0.0
        %796 = vmatprep.subr.mxu0 0.0
        %797 = vmatpush1.msra.mxu0 0.0
        %798 = vmatprep.subr.mxu0 0.0
        %799 = vmatpush1.msra.mxu0 0.0
        %800 = vmatprep.subr.mxu0 0.0
        %801 = vmatpush1.msra.mxu0 0.0
        %802 = vmatprep.subr.mxu0 0.0
        %803 = vmatpush1.msra.mxu0 0.0
        %804 = vmatprep.subr.mxu0 0.0
        %805 = vmatpush1.msra.mxu0 0.0
        %806 = vmatprep.subr.mxu0 0.0
        %807 = vmatpush1.msra.mxu0 0.0
        %808 = vmatprep.subr.mxu0 0.0
        %809 = vmatpush1.msra.mxu0 0.0
        %810 = vmatprep.subr.mxu0 0.0
        %811 = vmatpush1.msra.mxu0 0.0
        %812 = vmatprep.subr.mxu0 0.0
        %813 = vmatpush1.msra.mxu0 0.0
        %814 = vmatprep.subr.mxu0 0.0
        %815 = vmatpush1.msra.mxu0 0.0
        %816 = vmatprep.subr.mxu0 0.0
        %817 = vmatpush1.msra.mxu0 0.0
        %818 = vmatprep.subr.mxu0 0.0
        %819 = vmatpush1.msra.mxu0 0.0
        %820 = vmatprep.mubr.f32.mxu0 0.0
        %821 = vmatmul.mubr.f32.gmra.mrb[0].mxu0 %v737
        %v822 = vpop.f32.mrb[0].mxu0
        %v823 = vadd.f32 0.0, %v822
        %v824 = vpop.f32.mrb[0].mxu0
        %825 = vmatprep.mubr.f32.mxu0 0.0
        %826 = vmatmul.mubr.f32.gmra.mrb[0].mxu0 %v738
        %v827 = vpop.f32.mrb[0].mxu0
        %v828 = vadd.f32 0.0, %v827
        %v829 = vpop.f32.mrb[0].mxu0
        %830 = vdwg.mxu0
        %v831 = vadd.f32 %v735, %v823
        %v832 = vadd.f32 %v736, %v828
        %v833 = vtanh.pop %v831
        %v834 = vtanh.pop %v832
        %835 = vst [vmem:[#allocation2 + $0x8] sm:$0xff] %v833
        %836 = vst [vmem:[#allocation2 + $0x10] sm:$0xff] %v834
        %v837 = vld [vmem:[%s4] sm:$0x1]
        %v839 = vlaneseq
        %v840 = vshrl.u32 %v839, 7
        %v841 = vsub.s32 0, %v840
        %v842 = vrot.slane %v837, %v841
        %v844 = vld [vmem:[#allocation2 + $0x6] sm:$0xff]
        %v845 = vld [vmem:[#allocation2 + $0xe] sm:$0xff]
        %v846 = vld [vmem:[#allocation8] sm:$0xff]
        %v847 = vld [vmem:[#allocation8 + $0x8] sm:$0xff]
        %v848 = vld [vmem:[#allocation8 + $0x10] sm:$0xff]
        %v849 = vld [vmem:[#allocation8 + $0x18] sm:$0xff]
        %v850 = vld [vmem:[#allocation8 + $0x20] sm:$0xff]
        %v851 = vld [vmem:[#allocation8 + $0x28] sm:$0xff]
        %v852 = vld [vmem:[#allocation8 + $0x30] sm:$0xff]
        %v853 = vld [vmem:[#allocation8 + $0x38] sm:$0xff]
        %v854 = vld [vmem:[#allocation8 + $0x40] sm:$0xff]
        %v855 = vld [vmem:[#allocation8 + $0x48] sm:$0xff]
        %v856 = vld [vmem:[#allocation8 + $0x50] sm:$0xff]
        %v857 = vld [vmem:[#allocation8 + $0x58] sm:$0xff]
        %v858 = vld [vmem:[#allocation8 + $0x60] sm:$0xff]
        %v859 = vld [vmem:[#allocation8 + $0x68] sm:$0xff]
        %v860 = vld [vmem:[#allocation8 + $0x70] sm:$0xff]
        %v861 = vld [vmem:[#allocation8 + $0x78] sm:$0xff]
        %862 = vmatprep.subr.mxu0 0.0
        %863 = vmatpush1.msra.mxu0 %v846
        %864 = vmatprep.subr.mxu0 0.0
        %865 = vmatpush1.msra.mxu0 %v847
        %866 = vmatprep.subr.mxu0 0.0
        %867 = vmatpush1.msra.mxu0 %v848
        %868 = vmatprep.subr.mxu0 0.0
        %869 = vmatpush1.msra.mxu0 %v849
        %870 = vmatprep.subr.mxu0 0.0
        %871 = vmatpush1.msra.mxu0 %v850
        %872 = vmatprep.subr.mxu0 0.0
        %873 = vmatpush1.msra.mxu0 %v851
        %874 = vmatprep.subr.mxu0 0.0
        %875 = vmatpush1.msra.mxu0 %v852
        %876 = vmatprep.subr.mxu0 0.0
        %877 = vmatpush1.msra.mxu0 %v853
        %878 = vmatprep.subr.mxu0 0.0
        %879 = vmatpush1.msra.mxu0 %v854
        %880 = vmatprep.subr.mxu0 0.0
        %881 = vmatpush1.msra.mxu0 %v855
        %882 = vmatprep.subr.mxu0 0.0
        %883 = vmatpush1.msra.mxu0 %v856
        %884 = vmatprep.subr.mxu0 0.0
        %885 = vmatpush1.msra.mxu0 %v857
        %886 = vmatprep.subr.mxu0 0.0
        %887 = vmatpush1.msra.mxu0 %v858
        %888 = vmatprep.subr.mxu0 0.0
        %889 = vmatpush1.msra.mxu0 %v859
        %890 = vmatprep.subr.mxu0 0.0
        %891 = vmatpush1.msra.mxu0 %v860
        %892 = vmatprep.subr.mxu0 0.0
        %893 = vmatpush1.msra.mxu0 %v861
        %894 = vmatprep.subr.mxu0 0.0
        %895 = vmatpush1.msra.mxu0 0.0
        %896 = vmatprep.subr.mxu0 0.0
        %897 = vmatpush1.msra.mxu0 0.0
        %898 = vmatprep.subr.mxu0 0.0
        %899 = vmatpush1.msra.mxu0 0.0
        %900 = vmatprep.subr.mxu0 0.0
        %901 = vmatpush1.msra.mxu0 0.0
        %902 = vmatprep.subr.mxu0 0.0
        %903 = vmatpush1.msra.mxu0 0.0
        %904 = vmatprep.subr.mxu0 0.0
        %905 = vmatpush1.msra.mxu0 0.0
        %906 = vmatprep.subr.mxu0 0.0
        %907 = vmatpush1.msra.mxu0 0.0
        %908 = vmatprep.subr.mxu0 0.0
        %909 = vmatpush1.msra.mxu0 0.0
        %910 = vmatprep.subr.mxu0 0.0
        %911 = vmatpush1.msra.mxu0 0.0
        %912 = vmatprep.subr.mxu0 0.0
        %913 = vmatpush1.msra.mxu0 0.0
        %914 = vmatprep.subr.mxu0 0.0
        %915 = vmatpush1.msra.mxu0 0.0
        %916 = vmatprep.subr.mxu0 0.0
        %917 = vmatpush1.msra.mxu0 0.0
        %918 = vmatprep.subr.mxu0 0.0
        %919 = vmatpush1.msra.mxu0 0.0
        %920 = vmatprep.subr.mxu0 0.0
        %921 = vmatpush1.msra.mxu0 0.0
        %922 = vmatprep.subr.mxu0 0.0
        %923 = vmatpush1.msra.mxu0 0.0
        %924 = vmatprep.subr.mxu0 0.0
        %925 = vmatpush1.msra.mxu0 0.0
        %926 = vmatprep.mubr.f32.mxu0 0.0
        %927 = vmatmul.mubr.f32.gmra.mrb[0].mxu0 %v844
        %v928 = vpop.f32.mrb[0].mxu0
        %v929 = vadd.f32 0.0, %v928
        %v930 = vpop.f32.mrb[0].mxu0
        %931 = vmatprep.mubr.f32.mxu0 0.0
        %932 = vmatmul.mubr.f32.gmra.mrb[0].mxu0 %v845
        %v933 = vpop.f32.mrb[0].mxu0
        %v934 = vadd.f32 0.0, %v933
        %v935 = vpop.f32.mrb[0].mxu0
        %936 = vdwg.mxu0
        %v937 = vadd.f32 %v842, %v929
        %v938 = vadd.f32 %v842, %v934
        %v939 = vld [vmem:[#allocation2 + $0x7] sm:$0xff]
        %v940 = vld [vmem:[#allocation2 + $0xf] sm:$0xff]
        %s941 = scalar_lea.vmem [#allocation8], 128
        %v942 = vld [vmem:[%s941] sm:$0xff]
        %v943 = vld [vmem:[%s941 + $0x8] sm:$0xff]
        %v944 = vld [vmem:[%s941 + $0x10] sm:$0xff]
        %v945 = vld [vmem:[%s941 + $0x18] sm:$0xff]
        %v946 = vld [vmem:[%s941 + $0x20] sm:$0xff]
        %v947 = vld [vmem:[%s941 + $0x28] sm:$0xff]
        %v948 = vld [vmem:[%s941 + $0x30] sm:$0xff]
        %v949 = vld [vmem:[%s941 + $0x38] sm:$0xff]
        %v950 = vld [vmem:[%s941 + $0x40] sm:$0xff]
        %v951 = vld [vmem:[%s941 + $0x48] sm:$0xff]
        %v952 = vld [vmem:[%s941 + $0x50] sm:$0xff]
        %v953 = vld [vmem:[%s941 + $0x58] sm:$0xff]
        %v954 = vld [vmem:[%s941 + $0x60] sm:$0xff]
        %v955 = vld [vmem:[%s941 + $0x68] sm:$0xff]
        %v956 = vld [vmem:[%s941 + $0x70] sm:$0xff]
        %v957 = vld [vmem:[%s941 + $0x78] sm:$0xff]
        %958 = vmatprep.subr.mxu0 0.0
        %959 = vmatpush1.msra.mxu0 %v942
        %960 = vmatprep.subr.mxu0 0.0
        %961 = vmatpush1.msra.mxu0 %v943
        %962 = vmatprep.subr.mxu0 0.0
        %963 = vmatpush1.msra.mxu0 %v944
        %964 = vmatprep.subr.mxu0 0.0
        %965 = vmatpush1.msra.mxu0 %v945
        %966 = vmatprep.subr.mxu0 0.0
        %967 = vmatpush1.msra.mxu0 %v946
        %968 = vmatprep.subr.mxu0 0.0
        %969 = vmatpush1.msra.mxu0 %v947
        %970 = vmatprep.subr.mxu0 0.0
        %971 = vmatpush1.msra.mxu0 %v948
        %972 = vmatprep.subr.mxu0 0.0
        %973 = vmatpush1.msra.mxu0 %v949
        %974 = vmatprep.subr.mxu0 0.0
        %975 = vmatpush1.msra.mxu0 %v950
        %976 = vmatprep.subr.mxu0 0.0
        %977 = vmatpush1.msra.mxu0 %v951
        %978 = vmatprep.subr.mxu0 0.0
        %979 = vmatpush1.msra.mxu0 %v952
        %980 = vmatprep.subr.mxu0 0.0
        %981 = vmatpush1.msra.mxu0 %v953
        %982 = vmatprep.subr.mxu0 0.0
        %983 = vmatpush1.msra.mxu0 %v954
        %984 = vmatprep.subr.mxu0 0.0
        %985 = vmatpush1.msra.mxu0 %v955
        %986 = vmatprep.subr.mxu0 0.0
        %987 = vmatpush1.msra.mxu0 %v956
        %988 = vmatprep.subr.mxu0 0.0
        %989 = vmatpush1.msra.mxu0 %v957
        %990 = vmatprep.subr.mxu0 0.0
        %991 = vmatpush1.msra.mxu0 0.0
        %992 = vmatprep.subr.mxu0 0.0
        %993 = vmatpush1.msra.mxu0 0.0
        %994 = vmatprep.subr.mxu0 0.0
        %995 = vmatpush1.msra.mxu0 0.0
        %996 = vmatprep.subr.mxu0 0.0
        %997 = vmatpush1.msra.mxu0 0.0
        %998 = vmatprep.subr.mxu0 0.0
        %999 = vmatpush1.msra.mxu0 0.0
        %1000 = vmatprep.subr.mxu0 0.0
        %1001 = vmatpush1.msra.mxu0 0.0
        %1002 = vmatprep.subr.mxu0 0.0
        %1003 = vmatpush1.msra.mxu0 0.0
        %1004 = vmatprep.subr.mxu0 0.0
        %1005 = vmatpush1.msra.mxu0 0.0
        %1006 = vmatprep.subr.mxu0 0.0
        %1007 = vmatpush1.msra.mxu0 0.0
        %1008 = vmatprep.subr.mxu0 0.0
        %1009 = vmatpush1.msra.mxu0 0.0
        %1010 = vmatprep.subr.mxu0 0.0
        %1011 = vmatpush1.msra.mxu0 0.0
        %1012 = vmatprep.subr.mxu0 0.0
        %1013 = vmatpush1.msra.mxu0 0.0
        %1014 = vmatprep.subr.mxu0 0.0
        %1015 = vmatpush1.msra.mxu0 0.0
        %1016 = vmatprep.subr.mxu0 0.0
        %1017 = vmatpush1.msra.mxu0 0.0
        %1018 = vmatprep.subr.mxu0 0.0
        %1019 = vmatpush1.msra.mxu0 0.0
        %1020 = vmatprep.subr.mxu0 0.0
        %1021 = vmatpush1.msra.mxu0 0.0
        %1022 = vmatprep.mubr.f32.mxu0 0.0
        %1023 = vmatmul.mubr.f32.gmra.mrb[0].mxu0 %v939
        %v1024 = vpop.f32.mrb[0].mxu0
        %v1025 = vadd.f32 0.0, %v1024
        %v1026 = vpop.f32.mrb[0].mxu0
        %1027 = vmatprep.mubr.f32.mxu0 0.0
        %1028 = vmatmul.mubr.f32.gmra.mrb[0].mxu0 %v940
        %v1029 = vpop.f32.mrb[0].mxu0
        %v1030 = vadd.f32 0.0, %v1029
        %v1031 = vpop.f32.mrb[0].mxu0
        %1032 = vdwg.mxu0
        %v1033 = vadd.f32 %v937, %v1025
        %v1034 = vadd.f32 %v938, %v1030
        %v1035 = vld [vmem:[#allocation2 + $0x8] sm:$0xff]
        %v1036 = vld [vmem:[#allocation2 + $0x10] sm:$0xff]
        %s1037 = scalar_lea.vmem [#allocation8], 256
        %v1038 = vld [vmem:[%s1037] sm:$0xff]
        %v1039 = vld [vmem:[%s1037 + $0x8] sm:$0xff]
        %v1040 = vld [vmem:[%s1037 + $0x10] sm:$0xff]
        %v1041 = vld [vmem:[%s1037 + $0x18] sm:$0xff]
        %v1042 = vld [vmem:[%s1037 + $0x20] sm:$0xff]
        %v1043 = vld [vmem:[%s1037 + $0x28] sm:$0xff]
        %v1044 = vld [vmem:[%s1037 + $0x30] sm:$0xff]
        %v1045 = vld [vmem:[%s1037 + $0x38] sm:$0xff]
        %v1046 = vld [vmem:[%s1037 + $0x40] sm:$0xff]
        %v1047 = vld [vmem:[%s1037 + $0x48] sm:$0xff]
        %v1048 = vld [vmem:[%s1037 + $0x50] sm:$0xff]
        %v1049 = vld [vmem:[%s1037 + $0x58] sm:$0xff]
        %v1050 = vld [vmem:[%s1037 + $0x60] sm:$0xff]
        %v1051 = vld [vmem:[%s1037 + $0x68] sm:$0xff]
        %v1052 = vld [vmem:[%s1037 + $0x70] sm:$0xff]
        %v1053 = vld [vmem:[%s1037 + $0x78] sm:$0xff]
        %1054 = vmatprep.subr.mxu0 0.0
        %1055 = vmatpush1.msra.mxu0 %v1038
        %1056 = vmatprep.subr.mxu0 0.0
        %1057 = vmatpush1.msra.mxu0 %v1039
        %1058 = vmatprep.subr.mxu0 0.0
        %1059 = vmatpush1.msra.mxu0 %v1040
        %1060 = vmatprep.subr.mxu0 0.0
        %1061 = vmatpush1.msra.mxu0 %v1041
        %1062 = vmatprep.subr.mxu0 0.0
        %1063 = vmatpush1.msra.mxu0 %v1042
        %1064 = vmatprep.subr.mxu0 0.0
        %1065 = vmatpush1.msra.mxu0 %v1043
        %1066 = vmatprep.subr.mxu0 0.0
        %1067 = vmatpush1.msra.mxu0 %v1044
        %1068 = vmatprep.subr.mxu0 0.0
        %1069 = vmatpush1.msra.mxu0 %v1045
        %1070 = vmatprep.subr.mxu0 0.0
        %1071 = vmatpush1.msra.mxu0 %v1046
        %1072 = vmatprep.subr.mxu0 0.0
        %1073 = vmatpush1.msra.mxu0 %v1047
        %1074 = vmatprep.subr.mxu0 0.0
        %1075 = vmatpush1.msra.mxu0 %v1048
        %1076 = vmatprep.subr.mxu0 0.0
        %1077 = vmatpush1.msra.mxu0 %v1049
        %1078 = vmatprep.subr.mxu0 0.0
        %1079 = vmatpush1.msra.mxu0 %v1050
        %1080 = vmatprep.subr.mxu0 0.0
        %1081 = vmatpush1.msra.mxu0 %v1051
        %1082 = vmatprep.subr.mxu0 0.0
        %1083 = vmatpush1.msra.mxu0 %v1052
        %1084 = vmatprep.subr.mxu0 0.0
        %1085 = vmatpush1.msra.mxu0 %v1053
        %1086 = vmatprep.subr.mxu0 0.0
        %1087 = vmatpush1.msra.mxu0 0.0
        %1088 = vmatprep.subr.mxu0 0.0
        %1089 = vmatpush1.msra.mxu0 0.0
        %1090 = vmatprep.subr.mxu0 0.0
        %1091 = vmatpush1.msra.mxu0 0.0
        %1092 = vmatprep.subr.mxu0 0.0
        %1093 = vmatpush1.msra.mxu0 0.0
        %1094 = vmatprep.subr.mxu0 0.0
        %1095 = vmatpush1.msra.mxu0 0.0
        %1096 = vmatprep.subr.mxu0 0.0
        %1097 = vmatpush1.msra.mxu0 0.0
        %1098 = vmatprep.subr.mxu0 0.0
        %1099 = vmatpush1.msra.mxu0 0.0
        %1100 = vmatprep.subr.mxu0 0.0
        %1101 = vmatpush1.msra.mxu0 0.0
        %1102 = vmatprep.subr.mxu0 0.0
        %1103 = vmatpush1.msra.mxu0 0.0
        %1104 = vmatprep.subr.mxu0 0.0
        %1105 = vmatpush1.msra.mxu0 0.0
        %1106 = vmatprep.subr.mxu0 0.0
        %1107 = vmatpush1.msra.mxu0 0.0
        %1108 = vmatprep.subr.mxu0 0.0
        %1109 = vmatpush1.msra.mxu0 0.0
        %1110 = vmatprep.subr.mxu0 0.0
        %1111 = vmatpush1.msra.mxu0 0.0
        %1112 = vmatprep.subr.mxu0 0.0
        %1113 = vmatpush1.msra.mxu0 0.0
        %1114 = vmatprep.subr.mxu0 0.0
        %1115 = vmatpush1.msra.mxu0 0.0
        %1116 = vmatprep.subr.mxu0 0.0
        %1117 = vmatpush1.msra.mxu0 0.0
        %1118 = vmatprep.mubr.f32.mxu0 0.0
        %1119 = vmatmul.mubr.f32.gmra.mrb[0].mxu0 %v1035
        %v1120 = vpop.f32.mrb[0].mxu0
        %v1121 = vadd.f32 0.0, %v1120
        %v1122 = vpop.f32.mrb[0].mxu0
        %1123 = vmatprep.mubr.f32.mxu0 0.0
        %1124 = vmatmul.mubr.f32.gmra.mrb[0].mxu0 %v1036
        %v1125 = vpop.f32.mrb[0].mxu0
        %v1126 = vadd.f32 0.0, %v1125
        %v1127 = vpop.f32.mrb[0].mxu0
        %1128 = vdwg.mxu0
        %v1129 = vadd.f32 %v1033, %v1121
        %v1130 = vadd.f32 %v1034, %v1126
        %v1131 = vld [vmem:[#allocation2 + $0x9] sm:$0xff]
        %v1132 = vld [vmem:[#allocation2 + $0x11] sm:$0xff]
        %s1133 = scalar_lea.vmem [#allocation8], 384
        %v1134 = vld [vmem:[%s1133] sm:$0xff]
        %v1135 = vld [vmem:[%s1133 + $0x8] sm:$0xff]
        %v1136 = vld [vmem:[%s1133 + $0x10] sm:$0xff]
        %v1137 = vld [vmem:[%s1133 + $0x18] sm:$0xff]
        %v1138 = vld [vmem:[%s1133 + $0x20] sm:$0xff]
        %v1139 = vld [vmem:[%s1133 + $0x28] sm:$0xff]
        %v1140 = vld [vmem:[%s1133 + $0x30] sm:$0xff]
        %v1141 = vld [vmem:[%s1133 + $0x38] sm:$0xff]
        %v1142 = vld [vmem:[%s1133 + $0x40] sm:$0xff]
        %v1143 = vld [vmem:[%s1133 + $0x48] sm:$0xff]
        %v1144 = vld [vmem:[%s1133 + $0x50] sm:$0xff]
        %v1145 = vld [vmem:[%s1133 + $0x58] sm:$0xff]
        %v1146 = vld [vmem:[%s1133 + $0x60] sm:$0xff]
        %v1147 = vld [vmem:[%s1133 + $0x68] sm:$0xff]
        %v1148 = vld [vmem:[%s1133 + $0x70] sm:$0xff]
        %v1149 = vld [vmem:[%s1133 + $0x78] sm:$0xff]
        %1150 = vmatprep.subr.mxu0 0.0
        %1151 = vmatpush1.msra.mxu0 %v1134
        %1152 = vmatprep.subr.mxu0 0.0
        %1153 = vmatpush1.msra.mxu0 %v1135
        %1154 = vmatprep.subr.mxu0 0.0
        %1155 = vmatpush1.msra.mxu0 %v1136
        %1156 = vmatprep.subr.mxu0 0.0
        %1157 = vmatpush1.msra.mxu0 %v1137
        %1158 = vmatprep.subr.mxu0 0.0
        %1159 = vmatpush1.msra.mxu0 %v1138
        %1160 = vmatprep.subr.mxu0 0.0
        %1161 = vmatpush1.msra.mxu0 %v1139
        %1162 = vmatprep.subr.mxu0 0.0
        %1163 = vmatpush1.msra.mxu0 %v1140
        %1164 = vmatprep.subr.mxu0 0.0
        %1165 = vmatpush1.msra.mxu0 %v1141
        %1166 = vmatprep.subr.mxu0 0.0
        %1167 = vmatpush1.msra.mxu0 %v1142
        %1168 = vmatprep.subr.mxu0 0.0
        %1169 = vmatpush1.msra.mxu0 %v1143
        %1170 = vmatprep.subr.mxu0 0.0
        %1171 = vmatpush1.msra.mxu0 %v1144
        %1172 = vmatprep.subr.mxu0 0.0
        %1173 = vmatpush1.msra.mxu0 %v1145
        %1174 = vmatprep.subr.mxu0 0.0
        %1175 = vmatpush1.msra.mxu0 %v1146
        %1176 = vmatprep.subr.mxu0 0.0
        %1177 = vmatpush1.msra.mxu0 %v1147
        %1178 = vmatprep.subr.mxu0 0.0
        %1179 = vmatpush1.msra.mxu0 %v1148
        %1180 = vmatprep.subr.mxu0 0.0
        %1181 = vmatpush1.msra.mxu0 %v1149
        %1182 = vmatprep.subr.mxu0 0.0
        %1183 = vmatpush1.msra.mxu0 0.0
        %1184 = vmatprep.subr.mxu0 0.0
        %1185 = vmatpush1.msra.mxu0 0.0
        %1186 = vmatprep.subr.mxu0 0.0
        %1187 = vmatpush1.msra.mxu0 0.0
        %1188 = vmatprep.subr.mxu0 0.0
        %1189 = vmatpush1.msra.mxu0 0.0
        %1190 = vmatprep.subr.mxu0 0.0
        %1191 = vmatpush1.msra.mxu0 0.0
        %1192 = vmatprep.subr.mxu0 0.0
        %1193 = vmatpush1.msra.mxu0 0.0
        %1194 = vmatprep.subr.mxu0 0.0
        %1195 = vmatpush1.msra.mxu0 0.0
        %1196 = vmatprep.subr.mxu0 0.0
        %1197 = vmatpush1.msra.mxu0 0.0
        %1198 = vmatprep.subr.mxu0 0.0
        %1199 = vmatpush1.msra.mxu0 0.0
        %1200 = vmatprep.subr.mxu0 0.0
        %1201 = vmatpush1.msra.mxu0 0.0
        %1202 = vmatprep.subr.mxu0 0.0
        %1203 = vmatpush1.msra.mxu0 0.0
        %1204 = vmatprep.subr.mxu0 0.0
        %1205 = vmatpush1.msra.mxu0 0.0
        %1206 = vmatprep.subr.mxu0 0.0
        %1207 = vmatpush1.msra.mxu0 0.0
        %1208 = vmatprep.subr.mxu0 0.0
        %1209 = vmatpush1.msra.mxu0 0.0
        %1210 = vmatprep.subr.mxu0 0.0
        %1211 = vmatpush1.msra.mxu0 0.0
        %1212 = vmatprep.subr.mxu0 0.0
        %1213 = vmatpush1.msra.mxu0 0.0
        %1214 = vmatprep.mubr.f32.mxu0 0.0
        %1215 = vmatmul.mubr.f32.gmra.mrb[0].mxu0 %v1131
        %v1216 = vpop.f32.mrb[0].mxu0
        %v1217 = vadd.f32 0.0, %v1216
        %v1218 = vpop.f32.mrb[0].mxu0
        %1219 = vmatprep.mubr.f32.mxu0 0.0
        %1220 = vmatmul.mubr.f32.gmra.mrb[0].mxu0 %v1132
        %v1221 = vpop.f32.mrb[0].mxu0
        %v1222 = vadd.f32 0.0, %v1221
        %v1223 = vpop.f32.mrb[0].mxu0
        %1224 = vdwg.mxu0
        %v1225 = vadd.f32 %v1129, %v1217
        %v1226 = vadd.f32 %v1130, %v1222
        %v1227 = vld [vmem:[#allocation2 + $0xa] sm:$0xff]
        %v1228 = vld [vmem:[#allocation2 + $0x12] sm:$0xff]
        %s1229 = scalar_lea.vmem [#allocation8], 512
        %v1230 = vld [vmem:[%s1229] sm:$0xff]
        %v1231 = vld [vmem:[%s1229 + $0x8] sm:$0xff]
        %v1232 = vld [vmem:[%s1229 + $0x10] sm:$0xff]
        %v1233 = vld [vmem:[%s1229 + $0x18] sm:$0xff]
        %v1234 = vld [vmem:[%s1229 + $0x20] sm:$0xff]
        %v1235 = vld [vmem:[%s1229 + $0x28] sm:$0xff]
        %v1236 = vld [vmem:[%s1229 + $0x30] sm:$0xff]
        %v1237 = vld [vmem:[%s1229 + $0x38] sm:$0xff]
        %v1238 = vld [vmem:[%s1229 + $0x40] sm:$0xff]
        %v1239 = vld [vmem:[%s1229 + $0x48] sm:$0xff]
        %v1240 = vld [vmem:[%s1229 + $0x50] sm:$0xff]
        %v1241 = vld [vmem:[%s1229 + $0x58] sm:$0xff]
        %v1242 = vld [vmem:[%s1229 + $0x60] sm:$0xff]
        %v1243 = vld [vmem:[%s1229 + $0x68] sm:$0xff]
        %v1244 = vld [vmem:[%s1229 + $0x70] sm:$0xff]
        %v1245 = vld [vmem:[%s1229 + $0x78] sm:$0xff]
        %1246 = vmatprep.subr.mxu0 0.0
        %1247 = vmatpush1.msra.mxu0 %v1230
        %1248 = vmatprep.subr.mxu0 0.0
        %1249 = vmatpush1.msra.mxu0 %v1231
        %1250 = vmatprep.subr.mxu0 0.0
        %1251 = vmatpush1.msra.mxu0 %v1232
        %1252 = vmatprep.subr.mxu0 0.0
        %1253 = vmatpush1.msra.mxu0 %v1233
        %1254 = vmatprep.subr.mxu0 0.0
        %1255 = vmatpush1.msra.mxu0 %v1234
        %1256 = vmatprep.subr.mxu0 0.0
        %1257 = vmatpush1.msra.mxu0 %v1235
        %1258 = vmatprep.subr.mxu0 0.0
        %1259 = vmatpush1.msra.mxu0 %v1236
        %1260 = vmatprep.subr.mxu0 0.0
        %1261 = vmatpush1.msra.mxu0 %v1237
        %1262 = vmatprep.subr.mxu0 0.0
        %1263 = vmatpush1.msra.mxu0 %v1238
        %1264 = vmatprep.subr.mxu0 0.0
        %1265 = vmatpush1.msra.mxu0 %v1239
        %1266 = vmatprep.subr.mxu0 0.0
        %1267 = vmatpush1.msra.mxu0 %v1240
        %1268 = vmatprep.subr.mxu0 0.0
        %1269 = vmatpush1.msra.mxu0 %v1241
        %1270 = vmatprep.subr.mxu0 0.0
        %1271 = vmatpush1.msra.mxu0 %v1242
        %1272 = vmatprep.subr.mxu0 0.0
        %1273 = vmatpush1.msra.mxu0 %v1243
        %1274 = vmatprep.subr.mxu0 0.0
        %1275 = vmatpush1.msra.mxu0 %v1244
        %1276 = vmatprep.subr.mxu0 0.0
        %1277 = vmatpush1.msra.mxu0 %v1245
        %1278 = vmatprep.subr.mxu0 0.0
        %1279 = vmatpush1.msra.mxu0 0.0
        %1280 = vmatprep.subr.mxu0 0.0
        %1281 = vmatpush1.msra.mxu0 0.0
        %1282 = vmatprep.subr.mxu0 0.0
        %1283 = vmatpush1.msra.mxu0 0.0
        %1284 = vmatprep.subr.mxu0 0.0
        %1285 = vmatpush1.msra.mxu0 0.0
        %1286 = vmatprep.subr.mxu0 0.0
        %1287 = vmatpush1.msra.mxu0 0.0
        %1288 = vmatprep.subr.mxu0 0.0
        %1289 = vmatpush1.msra.mxu0 0.0
        %1290 = vmatprep.subr.mxu0 0.0
        %1291 = vmatpush1.msra.mxu0 0.0
        %1292 = vmatprep.subr.mxu0 0.0
        %1293 = vmatpush1.msra.mxu0 0.0
        %1294 = vmatprep.subr.mxu0 0.0
        %1295 = vmatpush1.msra.mxu0 0.0
        %1296 = vmatprep.subr.mxu0 0.0
        %1297 = vmatpush1.msra.mxu0 0.0
        %1298 = vmatprep.subr.mxu0 0.0
        %1299 = vmatpush1.msra.mxu0 0.0
        %1300 = vmatprep.subr.mxu0 0.0
        %1301 = vmatpush1.msra.mxu0 0.0
        %1302 = vmatprep.subr.mxu0 0.0
        %1303 = vmatpush1.msra.mxu0 0.0
        %1304 = vmatprep.subr.mxu0 0.0
        %1305 = vmatpush1.msra.mxu0 0.0
        %1306 = vmatprep.subr.mxu0 0.0
        %1307 = vmatpush1.msra.mxu0 0.0
        %1308 = vmatprep.subr.mxu0 0.0
        %1309 = vmatpush1.msra.mxu0 0.0
        %1310 = vmatprep.mubr.f32.mxu0 0.0
        %1311 = vmatmul.mubr.f32.gmra.mrb[0].mxu0 %v1227
        %v1312 = vpop.f32.mrb[0].mxu0
        %v1313 = vadd.f32 0.0, %v1312
        %v1314 = vpop.f32.mrb[0].mxu0
        %1315 = vmatprep.mubr.f32.mxu0 0.0
        %1316 = vmatmul.mubr.f32.gmra.mrb[0].mxu0 %v1228
        %v1317 = vpop.f32.mrb[0].mxu0
        %v1318 = vadd.f32 0.0, %v1317
        %v1319 = vpop.f32.mrb[0].mxu0
        %1320 = vdwg.mxu0
        %v1321 = vadd.f32 %v1225, %v1313
        %v1322 = vadd.f32 %v1226, %v1318
        %v1323 = vtanh.pop %v1321
        %v1324 = vtanh.pop %v1322
        %1325 = vst [vmem:[#allocation2 + $0x8] sm:$0xff] %v1323
        %1326 = vst [vmem:[#allocation2 + $0x10] sm:$0xff] %v1324
        %v1327 = vld [vmem:[%s6] sm:$0x1]
        %v1329 = vlaneseq
        %v1330 = vshrl.u32 %v1329, 7
        %v1331 = vsub.s32 0, %v1330
        %v1332 = vrot.slane %v1327, %v1331
        %v1334 = vld [vmem:[#allocation2 + $0x6] sm:$0xff]
        %v1335 = vld [vmem:[#allocation2 + $0xe] sm:$0xff]
        %v1336 = vld [vmem:[#allocation9] sm:$0xff]
        %v1337 = vld [vmem:[#allocation9 + $0x8] sm:$0xff]
        %v1338 = vld [vmem:[#allocation9 + $0x10] sm:$0xff]
        %v1339 = vld [vmem:[#allocation9 + $0x18] sm:$0xff]
        %v1340 = vld [vmem:[#allocation9 + $0x20] sm:$0xff]
        %v1341 = vld [vmem:[#allocation9 + $0x28] sm:$0xff]
        %v1342 = vld [vmem:[#allocation9 + $0x30] sm:$0xff]
        %v1343 = vld [vmem:[#allocation9 + $0x38] sm:$0xff]
        %v1344 = vld [vmem:[#allocation9 + $0x40] sm:$0xff]
        %v1345 = vld [vmem:[#allocation9 + $0x48] sm:$0xff]
        %v1346 = vld [vmem:[#allocation9 + $0x50] sm:$0xff]
        %v1347 = vld [vmem:[#allocation9 + $0x58] sm:$0xff]
        %v1348 = vld [vmem:[#allocation9 + $0x60] sm:$0xff]
        %v1349 = vld [vmem:[#allocation9 + $0x68] sm:$0xff]
        %v1350 = vld [vmem:[#allocation9 + $0x70] sm:$0xff]
        %v1351 = vld [vmem:[#allocation9 + $0x78] sm:$0xff]
        %1352 = vmatprep.subr.mxu0 0.0
        %1353 = vmatpush1.msra.mxu0 %v1336
        %1354 = vmatprep.subr.mxu0 0.0
        %1355 = vmatpush1.msra.mxu0 %v1337
        %1356 = vmatprep.subr.mxu0 0.0
        %1357 = vmatpush1.msra.mxu0 %v1338
        %1358 = vmatprep.subr.mxu0 0.0
        %1359 = vmatpush1.msra.mxu0 %v1339
        %1360 = vmatprep.subr.mxu0 0.0
        %1361 = vmatpush1.msra.mxu0 %v1340
        %1362 = vmatprep.subr.mxu0 0.0
        %1363 = vmatpush1.msra.mxu0 %v1341
        %1364 = vmatprep.subr.mxu0 0.0
        %1365 = vmatpush1.msra.mxu0 %v1342
        %1366 = vmatprep.subr.mxu0 0.0
        %1367 = vmatpush1.msra.mxu0 %v1343
        %1368 = vmatprep.subr.mxu0 0.0
        %1369 = vmatpush1.msra.mxu0 %v1344
        %1370 = vmatprep.subr.mxu0 0.0
        %1371 = vmatpush1.msra.mxu0 %v1345
        %1372 = vmatprep.subr.mxu0 0.0
        %1373 = vmatpush1.msra.mxu0 %v1346
        %1374 = vmatprep.subr.mxu0 0.0
        %1375 = vmatpush1.msra.mxu0 %v1347
        %1376 = vmatprep.subr.mxu0 0.0
        %1377 = vmatpush1.msra.mxu0 %v1348
        %1378 = vmatprep.subr.mxu0 0.0
        %1379 = vmatpush1.msra.mxu0 %v1349
        %1380 = vmatprep.subr.mxu0 0.0
        %1381 = vmatpush1.msra.mxu0 %v1350
        %1382 = vmatprep.subr.mxu0 0.0
        %1383 = vmatpush1.msra.mxu0 %v1351
        %1384 = vmatprep.subr.mxu0 0.0
        %1385 = vmatpush1.msra.mxu0 0.0
        %1386 = vmatprep.subr.mxu0 0.0
        %1387 = vmatpush1.msra.mxu0 0.0
        %1388 = vmatprep.subr.mxu0 0.0
        %1389 = vmatpush1.msra.mxu0 0.0
        %1390 = vmatprep.subr.mxu0 0.0
        %1391 = vmatpush1.msra.mxu0 0.0
        %1392 = vmatprep.subr.mxu0 0.0
        %1393 = vmatpush1.msra.mxu0 0.0
        %1394 = vmatprep.subr.mxu0 0.0
        %1395 = vmatpush1.msra.mxu0 0.0
        %1396 = vmatprep.subr.mxu0 0.0
        %1397 = vmatpush1.msra.mxu0 0.0
        %1398 = vmatprep.subr.mxu0 0.0
        %1399 = vmatpush1.msra.mxu0 0.0
        %1400 = vmatprep.subr.mxu0 0.0
        %1401 = vmatpush1.msra.mxu0 0.0
        %1402 = vmatprep.subr.mxu0 0.0
        %1403 = vmatpush1.msra.mxu0 0.0
        %1404 = vmatprep.subr.mxu0 0.0
        %1405 = vmatpush1.msra.mxu0 0.0
        %1406 = vmatprep.subr.mxu0 0.0
        %1407 = vmatpush1.msra.mxu0 0.0
        %1408 = vmatprep.subr.mxu0 0.0
        %1409 = vmatpush1.msra.mxu0 0.0
        %1410 = vmatprep.subr.mxu0 0.0
        %1411 = vmatpush1.msra.mxu0 0.0
        %1412 = vmatprep.subr.mxu0 0.0
        %1413 = vmatpush1.msra.mxu0 0.0
        %1414 = vmatprep.subr.mxu0 0.0
        %1415 = vmatpush1.msra.mxu0 0.0
        %1416 = vmatprep.mubr.f32.mxu0 0.0
        %1417 = vmatmul.mubr.f32.gmra.mrb[0].mxu0 %v1334
        %v1418 = vpop.f32.mrb[0].mxu0
        %v1419 = vadd.f32 0.0, %v1418
        %v1420 = vpop.f32.mrb[0].mxu0
        %1421 = vmatprep.mubr.f32.mxu0 0.0
        %1422 = vmatmul.mubr.f32.gmra.mrb[0].mxu0 %v1335
        %v1423 = vpop.f32.mrb[0].mxu0
        %v1424 = vadd.f32 0.0, %v1423
        %v1425 = vpop.f32.mrb[0].mxu0
        %1426 = vdwg.mxu0
        %v1427 = vadd.f32 %v1332, %v1419
        %v1428 = vadd.f32 %v1332, %v1424
        %v1429 = vld [vmem:[#allocation2 + $0x7] sm:$0xff]
        %v1430 = vld [vmem:[#allocation2 + $0xf] sm:$0xff]
        %s1431 = scalar_lea.vmem [#allocation9], 128
        %v1432 = vld [vmem:[%s1431] sm:$0xff]
        %v1433 = vld [vmem:[%s1431 + $0x8] sm:$0xff]
        %v1434 = vld [vmem:[%s1431 + $0x10] sm:$0xff]
        %v1435 = vld [vmem:[%s1431 + $0x18] sm:$0xff]
        %v1436 = vld [vmem:[%s1431 + $0x20] sm:$0xff]
        %v1437 = vld [vmem:[%s1431 + $0x28] sm:$0xff]
        %v1438 = vld [vmem:[%s1431 + $0x30] sm:$0xff]
        %v1439 = vld [vmem:[%s1431 + $0x38] sm:$0xff]
        %v1440 = vld [vmem:[%s1431 + $0x40] sm:$0xff]
        %v1441 = vld [vmem:[%s1431 + $0x48] sm:$0xff]
        %v1442 = vld [vmem:[%s1431 + $0x50] sm:$0xff]
        %v1443 = vld [vmem:[%s1431 + $0x58] sm:$0xff]
        %v1444 = vld [vmem:[%s1431 + $0x60] sm:$0xff]
        %v1445 = vld [vmem:[%s1431 + $0x68] sm:$0xff]
        %v1446 = vld [vmem:[%s1431 + $0x70] sm:$0xff]
        %v1447 = vld [vmem:[%s1431 + $0x78] sm:$0xff]
        %1448 = vmatprep.subr.mxu0 0.0
        %1449 = vmatpush1.msra.mxu0 %v1432
        %1450 = vmatprep.subr.mxu0 0.0
        %1451 = vmatpush1.msra.mxu0 %v1433
        %1452 = vmatprep.subr.mxu0 0.0
        %1453 = vmatpush1.msra.mxu0 %v1434
        %1454 = vmatprep.subr.mxu0 0.0
        %1455 = vmatpush1.msra.mxu0 %v1435
        %1456 = vmatprep.subr.mxu0 0.0
        %1457 = vmatpush1.msra.mxu0 %v1436
        %1458 = vmatprep.subr.mxu0 0.0
        %1459 = vmatpush1.msra.mxu0 %v1437
        %1460 = vmatprep.subr.mxu0 0.0
        %1461 = vmatpush1.msra.mxu0 %v1438
        %1462 = vmatprep.subr.mxu0 0.0
        %1463 = vmatpush1.msra.mxu0 %v1439
        %1464 = vmatprep.subr.mxu0 0.0
        %1465 = vmatpush1.msra.mxu0 %v1440
        %1466 = vmatprep.subr.mxu0 0.0
        %1467 = vmatpush1.msra.mxu0 %v1441
        %1468 = vmatprep.subr.mxu0 0.0
        %1469 = vmatpush1.msra.mxu0 %v1442
        %1470 = vmatprep.subr.mxu0 0.0
        %1471 = vmatpush1.msra.mxu0 %v1443
        %1472 = vmatprep.subr.mxu0 0.0
        %1473 = vmatpush1.msra.mxu0 %v1444
        %1474 = vmatprep.subr.mxu0 0.0
        %1475 = vmatpush1.msra.mxu0 %v1445
        %1476 = vmatprep.subr.mxu0 0.0
        %1477 = vmatpush1.msra.mxu0 %v1446
        %1478 = vmatprep.subr.mxu0 0.0
        %1479 = vmatpush1.msra.mxu0 %v1447
        %1480 = vmatprep.subr.mxu0 0.0
        %1481 = vmatpush1.msra.mxu0 0.0
        %1482 = vmatprep.subr.mxu0 0.0
        %1483 = vmatpush1.msra.mxu0 0.0
        %1484 = vmatprep.subr.mxu0 0.0
        %1485 = vmatpush1.msra.mxu0 0.0
        %1486 = vmatprep.subr.mxu0 0.0
        %1487 = vmatpush1.msra.mxu0 0.0
        %1488 = vmatprep.subr.mxu0 0.0
        %1489 = vmatpush1.msra.mxu0 0.0
        %1490 = vmatprep.subr.mxu0 0.0
        %1491 = vmatpush1.msra.mxu0 0.0
        %1492 = vmatprep.subr.mxu0 0.0
        %1493 = vmatpush1.msra.mxu0 0.0
        %1494 = vmatprep.subr.mxu0 0.0
        %1495 = vmatpush1.msra.mxu0 0.0
        %1496 = vmatprep.subr.mxu0 0.0
        %1497 = vmatpush1.msra.mxu0 0.0
        %1498 = vmatprep.subr.mxu0 0.0
        %1499 = vmatpush1.msra.mxu0 0.0
        %1500 = vmatprep.subr.mxu0 0.0
        %1501 = vmatpush1.msra.mxu0 0.0
        %1502 = vmatprep.subr.mxu0 0.0
        %1503 = vmatpush1.msra.mxu0 0.0
        %1504 = vmatprep.subr.mxu0 0.0
        %1505 = vmatpush1.msra.mxu0 0.0
        %1506 = vmatprep.subr.mxu0 0.0
        %1507 = vmatpush1.msra.mxu0 0.0
        %1508 = vmatprep.subr.mxu0 0.0
        %1509 = vmatpush1.msra.mxu0 0.0
        %1510 = vmatprep.subr.mxu0 0.0
        %1511 = vmatpush1.msra.mxu0 0.0
        %1512 = vmatprep.mubr.f32.mxu0 0.0
        %1513 = vmatmul.mubr.f32.gmra.mrb[0].mxu0 %v1429
        %v1514 = vpop.f32.mrb[0].mxu0
        %v1515 = vadd.f32 0.0, %v1514
        %v1516 = vpop.f32.mrb[0].mxu0
        %1517 = vmatprep.mubr.f32.mxu0 0.0
        %1518 = vmatmul.mubr.f32.gmra.mrb[0].mxu0 %v1430
        %v1519 = vpop.f32.mrb[0].mxu0
        %v1520 = vadd.f32 0.0, %v1519
        %v1521 = vpop.f32.mrb[0].mxu0
        %1522 = vdwg.mxu0
        %v1523 = vadd.f32 %v1427, %v1515
        %v1524 = vadd.f32 %v1428, %v1520
        %v1525 = vld [vmem:[#allocation2 + $0x8] sm:$0xff]
        %v1526 = vld [vmem:[#allocation2 + $0x10] sm:$0xff]
        %s1527 = scalar_lea.vmem [#allocation9], 256
        %v1528 = vld [vmem:[%s1527] sm:$0xff]
        %v1529 = vld [vmem:[%s1527 + $0x8] sm:$0xff]
        %v1530 = vld [vmem:[%s1527 + $0x10] sm:$0xff]
        %v1531 = vld [vmem:[%s1527 + $0x18] sm:$0xff]
        %v1532 = vld [vmem:[%s1527 + $0x20] sm:$0xff]
        %v1533 = vld [vmem:[%s1527 + $0x28] sm:$0xff]
        %v1534 = vld [vmem:[%s1527 + $0x30] sm:$0xff]
        %v1535 = vld [vmem:[%s1527 + $0x38] sm:$0xff]
        %v1536 = vld [vmem:[%s1527 + $0x40] sm:$0xff]
        %v1537 = vld [vmem:[%s1527 + $0x48] sm:$0xff]
        %v1538 = vld [vmem:[%s1527 + $0x50] sm:$0xff]
        %v1539 = vld [vmem:[%s1527 + $0x58] sm:$0xff]
        %v1540 = vld [vmem:[%s1527 + $0x60] sm:$0xff]
        %v1541 = vld [vmem:[%s1527 + $0x68] sm:$0xff]
        %v1542 = vld [vmem:[%s1527 + $0x70] sm:$0xff]
        %v1543 = vld [vmem:[%s1527 + $0x78] sm:$0xff]
        %1544 = vmatprep.subr.mxu0 0.0
        %1545 = vmatpush1.msra.mxu0 %v1528
        %1546 = vmatprep.subr.mxu0 0.0
        %1547 = vmatpush1.msra.mxu0 %v1529
        %1548 = vmatprep.subr.mxu0 0.0
        %1549 = vmatpush1.msra.mxu0 %v1530
        %1550 = vmatprep.subr.mxu0 0.0
        %1551 = vmatpush1.msra.mxu0 %v1531
        %1552 = vmatprep.subr.mxu0 0.0
        %1553 = vmatpush1.msra.mxu0 %v1532
        %1554 = vmatprep.subr.mxu0 0.0
        %1555 = vmatpush1.msra.mxu0 %v1533
        %1556 = vmatprep.subr.mxu0 0.0
        %1557 = vmatpush1.msra.mxu0 %v1534
        %1558 = vmatprep.subr.mxu0 0.0
        %1559 = vmatpush1.msra.mxu0 %v1535
        %1560 = vmatprep.subr.mxu0 0.0
        %1561 = vmatpush1.msra.mxu0 %v1536
        %1562 = vmatprep.subr.mxu0 0.0
        %1563 = vmatpush1.msra.mxu0 %v1537
        %1564 = vmatprep.subr.mxu0 0.0
        %1565 = vmatpush1.msra.mxu0 %v1538
        %1566 = vmatprep.subr.mxu0 0.0
        %1567 = vmatpush1.msra.mxu0 %v1539
        %1568 = vmatprep.subr.mxu0 0.0
        %1569 = vmatpush1.msra.mxu0 %v1540
        %1570 = vmatprep.subr.mxu0 0.0
        %1571 = vmatpush1.msra.mxu0 %v1541
        %1572 = vmatprep.subr.mxu0 0.0
        %1573 = vmatpush1.msra.mxu0 %v1542
        %1574 = vmatprep.subr.mxu0 0.0
        %1575 = vmatpush1.msra.mxu0 %v1543
        %1576 = vmatprep.subr.mxu0 0.0
        %1577 = vmatpush1.msra.mxu0 0.0
        %1578 = vmatprep.subr.mxu0 0.0
        %1579 = vmatpush1.msra.mxu0 0.0
        %1580 = vmatprep.subr.mxu0 0.0
        %1581 = vmatpush1.msra.mxu0 0.0
        %1582 = vmatprep.subr.mxu0 0.0
        %1583 = vmatpush1.msra.mxu0 0.0
        %1584 = vmatprep.subr.mxu0 0.0
        %1585 = vmatpush1.msra.mxu0 0.0
        %1586 = vmatprep.subr.mxu0 0.0
        %1587 = vmatpush1.msra.mxu0 0.0
        %1588 = vmatprep.subr.mxu0 0.0
        %1589 = vmatpush1.msra.mxu0 0.0
        %1590 = vmatprep.subr.mxu0 0.0
        %1591 = vmatpush1.msra.mxu0 0.0
        %1592 = vmatprep.subr.mxu0 0.0
        %1593 = vmatpush1.msra.mxu0 0.0
        %1594 = vmatprep.subr.mxu0 0.0
        %1595 = vmatpush1.msra.mxu0 0.0
        %1596 = vmatprep.subr.mxu0 0.0
        %1597 = vmatpush1.msra.mxu0 0.0
        %1598 = vmatprep.subr.mxu0 0.0
        %1599 = vmatpush1.msra.mxu0 0.0
        %1600 = vmatprep.subr.mxu0 0.0
        %1601 = vmatpush1.msra.mxu0 0.0
        %1602 = vmatprep.subr.mxu0 0.0
        %1603 = vmatpush1.msra.mxu0 0.0
        %1604 = vmatprep.subr.mxu0 0.0
        %1605 = vmatpush1.msra.mxu0 0.0
        %1606 = vmatprep.subr.mxu0 0.0
        %1607 = vmatpush1.msra.mxu0 0.0
        %1608 = vmatprep.mubr.f32.mxu0 0.0
        %1609 = vmatmul.mubr.f32.gmra.mrb[0].mxu0 %v1525
        %v1610 = vpop.f32.mrb[0].mxu0
        %v1611 = vadd.f32 0.0, %v1610
        %v1612 = vpop.f32.mrb[0].mxu0
        %1613 = vmatprep.mubr.f32.mxu0 0.0
        %1614 = vmatmul.mubr.f32.gmra.mrb[0].mxu0 %v1526
        %v1615 = vpop.f32.mrb[0].mxu0
        %v1616 = vadd.f32 0.0, %v1615
        %v1617 = vpop.f32.mrb[0].mxu0
        %1618 = vdwg.mxu0
        %v1619 = vadd.f32 %v1523, %v1611
        %v1620 = vadd.f32 %v1524, %v1616
        %v1621 = vld [vmem:[#allocation2 + $0x9] sm:$0xff]
        %v1622 = vld [vmem:[#allocation2 + $0x11] sm:$0xff]
        %s1623 = scalar_lea.vmem [#allocation9], 384
        %v1624 = vld [vmem:[%s1623] sm:$0xff]
        %v1625 = vld [vmem:[%s1623 + $0x8] sm:$0xff]
        %v1626 = vld [vmem:[%s1623 + $0x10] sm:$0xff]
        %v1627 = vld [vmem:[%s1623 + $0x18] sm:$0xff]
        %v1628 = vld [vmem:[%s1623 + $0x20] sm:$0xff]
        %v1629 = vld [vmem:[%s1623 + $0x28] sm:$0xff]
        %v1630 = vld [vmem:[%s1623 + $0x30] sm:$0xff]
        %v1631 = vld [vmem:[%s1623 + $0x38] sm:$0xff]
        %v1632 = vld [vmem:[%s1623 + $0x40] sm:$0xff]
        %v1633 = vld [vmem:[%s1623 + $0x48] sm:$0xff]
        %v1634 = vld [vmem:[%s1623 + $0x50] sm:$0xff]
        %v1635 = vld [vmem:[%s1623 + $0x58] sm:$0xff]
        %v1636 = vld [vmem:[%s1623 + $0x60] sm:$0xff]
        %v1637 = vld [vmem:[%s1623 + $0x68] sm:$0xff]
        %v1638 = vld [vmem:[%s1623 + $0x70] sm:$0xff]
        %v1639 = vld [vmem:[%s1623 + $0x78] sm:$0xff]
        %1640 = vmatprep.subr.mxu0 0.0
        %1641 = vmatpush1.msra.mxu0 %v1624
        %1642 = vmatprep.subr.mxu0 0.0
        %1643 = vmatpush1.msra.mxu0 %v1625
        %1644 = vmatprep.subr.mxu0 0.0
        %1645 = vmatpush1.msra.mxu0 %v1626
        %1646 = vmatprep.subr.mxu0 0.0
        %1647 = vmatpush1.msra.mxu0 %v1627
        %1648 = vmatprep.subr.mxu0 0.0
        %1649 = vmatpush1.msra.mxu0 %v1628
        %1650 = vmatprep.subr.mxu0 0.0
        %1651 = vmatpush1.msra.mxu0 %v1629
        %1652 = vmatprep.subr.mxu0 0.0
        %1653 = vmatpush1.msra.mxu0 %v1630
        %1654 = vmatprep.subr.mxu0 0.0
        %1655 = vmatpush1.msra.mxu0 %v1631
        %1656 = vmatprep.subr.mxu0 0.0
        %1657 = vmatpush1.msra.mxu0 %v1632
        %1658 = vmatprep.subr.mxu0 0.0
        %1659 = vmatpush1.msra.mxu0 %v1633
        %1660 = vmatprep.subr.mxu0 0.0
        %1661 = vmatpush1.msra.mxu0 %v1634
        %1662 = vmatprep.subr.mxu0 0.0
        %1663 = vmatpush1.msra.mxu0 %v1635
        %1664 = vmatprep.subr.mxu0 0.0
        %1665 = vmatpush1.msra.mxu0 %v1636
        %1666 = vmatprep.subr.mxu0 0.0
        %1667 = vmatpush1.msra.mxu0 %v1637
        %1668 = vmatprep.subr.mxu0 0.0
        %1669 = vmatpush1.msra.mxu0 %v1638
        %1670 = vmatprep.subr.mxu0 0.0
        %1671 = vmatpush1.msra.mxu0 %v1639
        %1672 = vmatprep.subr.mxu0 0.0
        %1673 = vmatpush1.msra.mxu0 0.0
        %1674 = vmatprep.subr.mxu0 0.0
        %1675 = vmatpush1.msra.mxu0 0.0
        %1676 = vmatprep.subr.mxu0 0.0
        %1677 = vmatpush1.msra.mxu0 0.0
        %1678 = vmatprep.subr.mxu0 0.0
        %1679 = vmatpush1.msra.mxu0 0.0
        %1680 = vmatprep.subr.mxu0 0.0
        %1681 = vmatpush1.msra.mxu0 0.0
        %1682 = vmatprep.subr.mxu0 0.0
        %1683 = vmatpush1.msra.mxu0 0.0
        %1684 = vmatprep.subr.mxu0 0.0
        %1685 = vmatpush1.msra.mxu0 0.0
        %1686 = vmatprep.subr.mxu0 0.0
        %1687 = vmatpush1.msra.mxu0 0.0
        %1688 = vmatprep.subr.mxu0 0.0
        %1689 = vmatpush1.msra.mxu0 0.0
        %1690 = vmatprep.subr.mxu0 0.0
        %1691 = vmatpush1.msra.mxu0 0.0
        %1692 = vmatprep.subr.mxu0 0.0
        %1693 = vmatpush1.msra.mxu0 0.0
        %1694 = vmatprep.subr.mxu0 0.0
        %1695 = vmatpush1.msra.mxu0 0.0
        %1696 = vmatprep.subr.mxu0 0.0
        %1697 = vmatpush1.msra.mxu0 0.0
        %1698 = vmatprep.subr.mxu0 0.0
        %1699 = vmatpush1.msra.mxu0 0.0
        %1700 = vmatprep.subr.mxu0 0.0
        %1701 = vmatpush1.msra.mxu0 0.0
        %1702 = vmatprep.subr.mxu0 0.0
        %1703 = vmatpush1.msra.mxu0 0.0
        %1704 = vmatprep.mubr.f32.mxu0 0.0
        %1705 = vmatmul.mubr.f32.gmra.mrb[0].mxu0 %v1621
        %v1706 = vpop.f32.mrb[0].mxu0
        %v1707 = vadd.f32 0.0, %v1706
        %v1708 = vpop.f32.mrb[0].mxu0
        %1709 = vmatprep.mubr.f32.mxu0 0.0
        %1710 = vmatmul.mubr.f32.gmra.mrb[0].mxu0 %v1622
        %v1711 = vpop.f32.mrb[0].mxu0
        %v1712 = vadd.f32 0.0, %v1711
        %v1713 = vpop.f32.mrb[0].mxu0
        %1714 = vdwg.mxu0
        %v1715 = vadd.f32 %v1619, %v1707
        %v1716 = vadd.f32 %v1620, %v1712
        %v1717 = vld [vmem:[#allocation2 + $0xa] sm:$0xff]
        %v1718 = vld [vmem:[#allocation2 + $0x12] sm:$0xff]
        %s1719 = scalar_lea.vmem [#allocation9], 512
        %v1720 = vld [vmem:[%s1719] sm:$0xff]
        %v1721 = vld [vmem:[%s1719 + $0x8] sm:$0xff]
        %v1722 = vld [vmem:[%s1719 + $0x10] sm:$0xff]
        %v1723 = vld [vmem:[%s1719 + $0x18] sm:$0xff]
        %v1724 = vld [vmem:[%s1719 + $0x20] sm:$0xff]
        %v1725 = vld [vmem:[%s1719 + $0x28] sm:$0xff]
        %v1726 = vld [vmem:[%s1719 + $0x30] sm:$0xff]
        %v1727 = vld [vmem:[%s1719 + $0x38] sm:$0xff]
        %v1728 = vld [vmem:[%s1719 + $0x40] sm:$0xff]
        %v1729 = vld [vmem:[%s1719 + $0x48] sm:$0xff]
        %v1730 = vld [vmem:[%s1719 + $0x50] sm:$0xff]
        %v1731 = vld [vmem:[%s1719 + $0x58] sm:$0xff]
        %v1732 = vld [vmem:[%s1719 + $0x60] sm:$0xff]
        %v1733 = vld [vmem:[%s1719 + $0x68] sm:$0xff]
        %v1734 = vld [vmem:[%s1719 + $0x70] sm:$0xff]
        %v1735 = vld [vmem:[%s1719 + $0x78] sm:$0xff]
        %1736 = vmatprep.subr.mxu0 0.0
        %1737 = vmatpush1.msra.mxu0 %v1720
        %1738 = vmatprep.subr.mxu0 0.0
        %1739 = vmatpush1.msra.mxu0 %v1721
        %1740 = vmatprep.subr.mxu0 0.0
        %1741 = vmatpush1.msra.mxu0 %v1722
        %1742 = vmatprep.subr.mxu0 0.0
        %1743 = vmatpush1.msra.mxu0 %v1723
        %1744 = vmatprep.subr.mxu0 0.0
        %1745 = vmatpush1.msra.mxu0 %v1724
        %1746 = vmatprep.subr.mxu0 0.0
        %1747 = vmatpush1.msra.mxu0 %v1725
        %1748 = vmatprep.subr.mxu0 0.0
        %1749 = vmatpush1.msra.mxu0 %v1726
        %1750 = vmatprep.subr.mxu0 0.0
        %1751 = vmatpush1.msra.mxu0 %v1727
        %1752 = vmatprep.subr.mxu0 0.0
        %1753 = vmatpush1.msra.mxu0 %v1728
        %1754 = vmatprep.subr.mxu0 0.0
        %1755 = vmatpush1.msra.mxu0 %v1729
        %1756 = vmatprep.subr.mxu0 0.0
        %1757 = vmatpush1.msra.mxu0 %v1730
        %1758 = vmatprep.subr.mxu0 0.0
        %1759 = vmatpush1.msra.mxu0 %v1731
        %1760 = vmatprep.subr.mxu0 0.0
        %1761 = vmatpush1.msra.mxu0 %v1732
        %1762 = vmatprep.subr.mxu0 0.0
        %1763 = vmatpush1.msra.mxu0 %v1733
        %1764 = vmatprep.subr.mxu0 0.0
        %1765 = vmatpush1.msra.mxu0 %v1734
        %1766 = vmatprep.subr.mxu0 0.0
        %1767 = vmatpush1.msra.mxu0 %v1735
        %1768 = vmatprep.subr.mxu0 0.0
        %1769 = vmatpush1.msra.mxu0 0.0
        %1770 = vmatprep.subr.mxu0 0.0
        %1771 = vmatpush1.msra.mxu0 0.0
        %1772 = vmatprep.subr.mxu0 0.0
        %1773 = vmatpush1.msra.mxu0 0.0
        %1774 = vmatprep.subr.mxu0 0.0
        %1775 = vmatpush1.msra.mxu0 0.0
        %1776 = vmatprep.subr.mxu0 0.0
        %1777 = vmatpush1.msra.mxu0 0.0
        %1778 = vmatprep.subr.mxu0 0.0
        %1779 = vmatpush1.msra.mxu0 0.0
        %1780 = vmatprep.subr.mxu0 0.0
        %1781 = vmatpush1.msra.mxu0 0.0
        %1782 = vmatprep.subr.mxu0 0.0
        %1783 = vmatpush1.msra.mxu0 0.0
        %1784 = vmatprep.subr.mxu0 0.0
        %1785 = vmatpush1.msra.mxu0 0.0
        %1786 = vmatprep.subr.mxu0 0.0
        %1787 = vmatpush1.msra.mxu0 0.0
        %1788 = vmatprep.subr.mxu0 0.0
        %1789 = vmatpush1.msra.mxu0 0.0
        %1790 = vmatprep.subr.mxu0 0.0
        %1791 = vmatpush1.msra.mxu0 0.0
        %1792 = vmatprep.subr.mxu0 0.0
        %1793 = vmatpush1.msra.mxu0 0.0
        %1794 = vmatprep.subr.mxu0 0.0
        %1795 = vmatpush1.msra.mxu0 0.0
        %1796 = vmatprep.subr.mxu0 0.0
        %1797 = vmatpush1.msra.mxu0 0.0
        %1798 = vmatprep.subr.mxu0 0.0
        %1799 = vmatpush1.msra.mxu0 0.0
        %1800 = vmatprep.mubr.f32.mxu0 0.0
        %1801 = vmatmul.mubr.f32.gmra.mrb[0].mxu0 %v1717
        %v1802 = vpop.f32.mrb[0].mxu0
        %v1803 = vadd.f32 0.0, %v1802
        %v1804 = vpop.f32.mrb[0].mxu0
        %1805 = vmatprep.mubr.f32.mxu0 0.0
        %1806 = vmatmul.mubr.f32.gmra.mrb[0].mxu0 %v1718
        %v1807 = vpop.f32.mrb[0].mxu0
        %v1808 = vadd.f32 0.0, %v1807
        %v1809 = vpop.f32.mrb[0].mxu0
        %1810 = vdwg.mxu0
        %v1811 = vadd.f32 %v1715, %v1803
        %v1812 = vadd.f32 %v1716, %v1808
        %1813 = vst [vmem:[%s340] sm:$0xff] %v1811
        %1814 = vst [vmem:[%s340 + $0x8] sm:$0xff] %v1812
        %s1815 = sand.u32 %s186, 1
        %s1816 = scalar_lea.sflag [#allocation5], %s1815
        %s1817 = sand.u32 %s186, 1
        %s1818 = smul.addr %s1817, 16
        %s1819 = scalar_lea.vmem [#allocation11], %s1818
        // Predicated region
        $region65: #{tpu_custom_call.1} parent=47 // pred_check
          %p1820 = pneg %p196
        $region66: #{tpu_custom_call.1} parent=47 // pred_check_branch
          %1822 = sbr.rel (%p1820) target = $region68
        $region67: #{tpu_custom_call.1} parent=47 // pred_region
          %s1824 = ssub.s32 256, 256
          %1825 = vsyncadd %s1816, %s1824
          %s1826 = smul.addr %s26, 2
          %s1827 = smul.addr %s1826, 128
          %s1828 = scalar_lea.hbm %s7, %s1827
          %s1829 = sshll.u32 %s1819, 4
          %s1830 = int_to_ptr.vmem [resolvable:$true] %s1829
          %1835 = dma.vmem_to_hbm [thread:$0]  %s1830, 256, %s1828, %s1816, 128, 128, 8
        $region68: #{tpu_custom_call.1} parent=47 // pred_fallthru
          _
      $region48: #{tpu_custom_call.1} parent=5 // pred_fallthru
        _
      %p1836 = scmp.le.s32.totalorder 2, %s21
      // Predicated region
      $region69: #{tpu_custom_call.1} parent=5 // pred_check
        %p1837 = pneg %p1836
      $region70: #{tpu_custom_call.1} parent=5 // pred_check_branch
        %1839 = sbr.rel (%p1837) target = $region72
      $region71: #{tpu_custom_call.1} parent=5 // pred_region
        %s1840 = ssub.s32 %s21, 2
        // Predicated region
        $region73: #{tpu_custom_call.1} parent=71 // pred_check
          %p1841 = pneg %p202
        $region74: #{tpu_custom_call.1} parent=71 // pred_check_branch
          %1843 = sbr.rel (%p1841) target = $region76
        $region75: #{tpu_custom_call.1} parent=71 // pred_region
          %s1844 = sand.u32 %s187, 1
          %s1845 = scalar_lea.sflag [#allocation5], %s1844
          %s1846 = sand.u32 %s187, 1
          %s1847 = smul.addr %s1846, 16
          %s1848 = scalar_lea.vmem [#allocation11], %s1847
          %1849 = dma.done %s1845, 256
        $region76: #{tpu_custom_call.1} parent=71 // pred_fallthru
          _
      $region72: #{tpu_custom_call.1} parent=5 // pred_fallthru
        _
    $region6: #{tpu_custom_call.1} parent=1 // loop_footer
      %s25 = sadd.s32 1, %s21
    $region7: #{tpu_custom_call.1} parent=1 // loop_footer_branch
      %20 = sbr.rel target = $region3
    $region8: #{tpu_custom_call.1} parent=1 // loop_exit
      _
    %1850 = vsyncpa [#allocation4], 1
    %s1851 = scalar_lea.sflag [#allocation4], 1
    %1852 = vsyncpa %s1851, 1
    %1853 = vsyncpa [#allocation7], 1
    %1854 = vsyncpa [#allocation10], 1
    %1855 = vsyncpa [#allocation5], 1
    %s1856 = scalar_lea.sflag [#allocation5], 1
    %1857 = vsyncpa %s1856, 1

// kernel: tpu_custom_call.1
$region0: #{tpu_custom_call.1}
  #allocation0 [shape = 'u32[]', space=smem, size = 0x4, offset = 0x4, fixed_abs, tag = 'smem constant byte address 0x4 - core index']
  #allocation1 [shape = 'u32[144,128]{1,0:T(1,128)}', space=vmem, size = 0x12000, scoped, tag = 'internal scratch']
  #allocation2 [shape = 'f32[26,128]{1,0:T(8,128)}', space=vmem, size = 0x4000, scoped, tag = 'scratch operand']
  %s0 = inlined_call_operand.hbm [shape: f32[2,16,128], index: 0, kind: input, shape index: {}]
  %s1 = inlined_call_operand.hbm [shape: f32[5,128,128], index: 1, kind: input, shape index: {}]
  %s2 = inlined_call_operand.vmem [shape: f32[1,128], index: 2, kind: input, shape index: {}]
  %s3 = inlined_call_operand.hbm [shape: f32[5,128,128], index: 3, kind: input, shape index: {}]
  %s4 = inlined_call_operand.vmem [shape: f32[1,128], index: 4, kind: input, shape index: {}]
  %s5 = inlined_call_operand.hbm [shape: f32[5,128,128], index: 5, kind: input, shape index: {}]
  %s6 = inlined_call_operand.vmem [shape: f32[1,128], index: 6, kind: input, shape index: {}]
  %s7 = inlined_call_operand.hbm [shape: f32[2,16,128], index: 7, kind: output, shape index: {}]
  %s8 = sld [smem:[#allocation0]]
  $region77: #{tpu_custom_call.1} parent=0
    _
  %s10 = ssub.s32 1, %s8
  %s11 = scalar_select 0, %s10, %s8
  $region1: #{tpu_custom_call.1} parent=0
    #allocation3 [shape = 'u8[16384]{0}', space=vmem, size = 0x4000, scoped, tag = 'input window, operand 0']
    #allocation4 [shape = 's32[2]{0}', space=sflag, size = 0x8, scoped, tag = 'scoped memory for tpu_custom_call.1']
    #allocation5 [shape = 's32[2]{0}', space=sflag, size = 0x8, scoped, tag = 'scoped memory for tpu_custom_call.1']
    #allocation6 [shape = 'u8[327680]{0}', space=vmem, size = 0x50000, scoped, tag = 'input window, operand 1, single buffered']
    #allocation7 [shape = 's32[1]{0}', space=sflag, size = 0x4, scoped, tag = 'scoped memory for tpu_custom_call.1']
    #allocation8 [shape = 'u8[327680]{0}', space=vmem, size = 0x50000, scoped, tag = 'input window, operand 3, single buffered']
    #allocation9 [shape = 'u8[327680]{0}', space=vmem, size = 0x50000, scoped, tag = 'input window, operand 5, single buffered']
    #allocation10 [shape = 's32[1]{0}', space=sflag, size = 0x4, scoped, tag = 'scoped memory for tpu_custom_call.1']
    #allocation11 [shape = 'u8[16384]{0}', space=vmem, size = 0x4000, scoped, tag = 'output window, operand 0']
    %12 = vsyncpa [#allocation4], 0
    %s13 = scalar_lea.sflag [#allocation4], 1
    %14 = vsyncpa %s13, 0
    %15 = vsyncpa [#allocation7], 0
    %16 = vsyncpa [#allocation10], 0
    %17 = vsyncpa [#allocation5], 0
    %s18 = scalar_lea.sflag [#allocation5], 1
    %19 = vsyncpa %s18, 0
    loop: start=0, step=1, limit=4
    $region2: #{tpu_custom_call.1} parent=1 // loop_pre_header
      _
    $region3: #{tpu_custom_call.1} parent=1 // loop_header
      %s21 = sphi 0, %s25
      %p22 = scmp.ge.s32.totalorder %s21, 4
      %s31 = sphi 0, %s33
      %s34 = sphi 0, %s31
      %s35 = sphi 0, %s34
      %s51 = sphi 0, %s35
      %s55 = sphi 0, %s55
      %s57 = sphi 0, %s55
      %s58 = sphi 0, %s57
      %s72 = sphi 0, %s58
      %s76 = sphi 0, %s76
      %s78 = sphi 0, %s76
      %s79 = sphi 0, %s78
      %s93 = sphi 0, %s79
      %s97 = sphi 0, %s97
      %s99 = sphi 0, %s97
      %s100 = sphi 0, %s99
      %s114 = sphi 0, %s100
      %s118 = sphi 0, %s118
      %s120 = sphi 0, %s118
      %s121 = sphi 0, %s120
      %s135 = sphi 0, %s121
      %s139 = sphi 0, %s139
      %s141 = sphi 0, %s139
      %s142 = sphi 0, %s141
      %s156 = sphi 0, %s142
      %s160 = sphi 0, %s160
      %s162 = sphi 0, %s160
      %s163 = sphi 0, %s162
      %s177 = sphi 0, %s163
      %s183 = sphi 0, %s185
      %s186 = sphi 0, %s183
      %s187 = sphi 0, %s186
      %s203 = sphi 0, %s187
    $region4: #{tpu_custom_call.1} parent=1 // loop_header_branch
      %24 = sbr.rel (%p22) target = $region8
    $region5: #{tpu_custom_call.1} parent=1 // loop_body
      %s26 = ssub.s32 %s21, 1
      %s27 = ssub.s32 %s21, 2
      %s28 = sadd.s32 %s21, 1
      %s29 = ssub.s32 %s21, %s28
      %p30 = scmp.eq.s32.totalorder %s29, 0
      %s32 = sadd.s32 %s31, 1
      %s33 = scalar_select %p30, %s31, %s32
      %p36 = pneg %p30
      %p37 = scmp.eq.s32.totalorder %s21, 1
      %p38 = por %p36, %p37
      %p39 = scmp.ne.s32.totalorder %s31, %s34
      %p40 = scmp.eq.s32.totalorder %s21, 0
      %p41 = por %p39, %p40
      %p42 = scmp.ne.s32.totalorder %s31, %s34
      %p43 = scmp.eq.s32.totalorder %s26, 1
      %p44 = por %p42, %p43
      %p45 = scmp.ne.s32.totalorder %s34, %s35
      %p46 = scmp.eq.s32.totalorder %s26, 0
      %p47 = por %p45, %p46
      %p48 = scmp.ne.s32.totalorder %s34, %s35
      %p49 = scmp.eq.s32.totalorder %s27, 1
      %p50 = por %p48, %p49
      %p52 = scmp.ne.s32.totalorder %s35, %s51
      %p53 = scmp.eq.s32.totalorder %s27, 0
      %p54 = por %p52, %p53
      %s56 = sadd.s32 %s55, 1
      %p59 = scmp.eq.s32.totalorder %s21, 1
      %p60 = scmp.ne.s32.totalorder %s55, %s57
      %p61 = scmp.eq.s32.totalorder %s21, 0
      %p62 = por %p60, %p61
      %p63 = scmp.ne.s32.totalorder %s55, %s57
      %p64 = scmp.eq.s32.totalorder %s26, 1
      %p65 = por %p63, %p64
      %p66 = scmp.ne.s32.totalorder %s57, %s58
      %p67 = scmp.eq.s32.totalorder %s26, 0
      %p68 = por %p66, %p67
      %p69 = scmp.ne.s32.totalorder %s57, %s58
      %p70 = scmp.eq.s32.totalorder %s27, 1
      %p71 = por %p69, %p70
      %p73 = scmp.ne.s32.totalorder %s58, %s72
      %p74 = scmp.eq.s32.totalorder %s27, 0
      %p75 = por %p73, %p74
      %s77 = sadd.s32 %s76, 1
      %p80 = scmp.eq.s32.totalorder %s21, 1
      %p81 = scmp.ne.s32.totalorder %s76, %s78
      %p82 = scmp.eq.s32.totalorder %s21, 0
      %p83 = por %p81, %p82
      %p84 = scmp.ne.s32.totalorder %s76, %s78
      %p85 = scmp.eq.s32.totalorder %s26, 1
      %p86 = por %p84, %p85
      %p87 = scmp.ne.s32.totalorder %s78, %s79
      %p88 = scmp.eq.s32.totalorder %s26, 0
      %p89 = por %p87, %p88
      %p90 = scmp.ne.s32.totalorder %s78, %s79
      %p91 = scmp.eq.s32.totalorder %s27, 1
      %p92 = por %p90, %p91
      %p94 = scmp.ne.s32.totalorder %s79, %s93
      %p95 = scmp.eq.s32.totalorder %s27, 0
      %p96 = por %p94, %p95
      %s98 = sadd.s32 %s97, 1
      %p101 = scmp.eq.s32.totalorder %s21, 1
      %p102 = scmp.ne.s32.totalorder %s97, %s99
      %p103 = scmp.eq.s32.totalorder %s21, 0
      %p104 = por %p102, %p103
      %p105 = scmp.ne.s32.totalorder %s97, %s99
      %p106 = scmp.eq.s32.totalorder %s26, 1
      %p107 = por %p105, %p106
      %p108 = scmp.ne.s32.totalorder %s99, %s100
      %p109 = scmp.eq.s32.totalorder %s26, 0
      %p110 = por %p108, %p109
      %p111 = scmp.ne.s32.totalorder %s99, %s100
      %p112 = scmp.eq.s32.totalorder %s27, 1
      %p113 = por %p111, %p112
      %p115 = scmp.ne.s32.totalorder %s100, %s114
      %p116 = scmp.eq.s32.totalorder %s27, 0
      %p117 = por %p115, %p116
      %s119 = sadd.s32 %s118, 1
      %p122 = scmp.eq.s32.totalorder %s21, 1
      %p123 = scmp.ne.s32.totalorder %s118, %s120
      %p124 = scmp.eq.s32.totalorder %s21, 0
      %p125 = por %p123, %p124
      %p126 = scmp.ne.s32.totalorder %s118, %s120
      %p127 = scmp.eq.s32.totalorder %s26, 1
      %p128 = por %p126, %p127
      %p129 = scmp.ne.s32.totalorder %s120, %s121
      %p130 = scmp.eq.s32.totalorder %s26, 0
      %p131 = por %p129, %p130
      %p132 = scmp.ne.s32.totalorder %s120, %s121
      %p133 = scmp.eq.s32.totalorder %s27, 1
      %p134 = por %p132, %p133
      %p136 = scmp.ne.s32.totalorder %s121, %s135
      %p137 = scmp.eq.s32.totalorder %s27, 0
      %p138 = por %p136, %p137
      %s140 = sadd.s32 %s139, 1
      %p143 = scmp.eq.s32.totalorder %s21, 1
      %p144 = scmp.ne.s32.totalorder %s139, %s141
      %p145 = scmp.eq.s32.totalorder %s21, 0
      %p146 = por %p144, %p145
      %p147 = scmp.ne.s32.totalorder %s139, %s141
      %p148 = scmp.eq.s32.totalorder %s26, 1
      %p149 = por %p147, %p148
      %p150 = scmp.ne.s32.totalorder %s141, %s142
      %p151 = scmp.eq.s32.totalorder %s26, 0
      %p152 = por %p150, %p151
      %p153 = scmp.ne.s32.totalorder %s141, %s142
      %p154 = scmp.eq.s32.totalorder %s27, 1
      %p155 = por %p153, %p154
      %p157 = scmp.ne.s32.totalorder %s142, %s156
      %p158 = scmp.eq.s32.totalorder %s27, 0
      %p159 = por %p157, %p158
      %s161 = sadd.s32 %s160, 1
      %p164 = scmp.eq.s32.totalorder %s21, 1
      %p165 = scmp.ne.s32.totalorder %s160, %s162
      %p166 = scmp.eq.s32.totalorder %s21, 0
      %p167 = por %p165, %p166
      %p168 = scmp.ne.s32.totalorder %s160, %s162
      %p169 = scmp.eq.s32.totalorder %s26, 1
      %p170 = por %p168, %p169
      %p171 = scmp.ne.s32.totalorder %s162, %s163
      %p172 = scmp.eq.s32.totalorder %s26, 0
      %p173 = por %p171, %p172
      %p174 = scmp.ne.s32.totalorder %s162, %s163
      %p175 = scmp.eq.s32.totalorder %s27, 1
      %p176 = por %p174, %p175
      %p178 = scmp.ne.s32.totalorder %s163, %s177
      %p179 = scmp.eq.s32.totalorder %s27, 0
      %p180 = por %p178, %p179
      %s181 = ssub.s32 %s21, %s28
      %p182 = scmp.eq.s32.totalorder %s181, 0
      %s184 = sadd.s32 %s183, 1
      %s185 = scalar_select %p182, %s183, %s184
      %p188 = pneg %p182
      %p189 = scmp.eq.s32.totalorder %s21, 1
      %p190 = por %p188, %p189
      %p191 = scmp.ne.s32.totalorder %s183, %s186
      %p192 = scmp.eq.s32.totalorder %s21, 0
      %p193 = por %p191, %p192
      %p194 = scmp.ne.s32.totalorder %s183, %s186
      %p195 = scmp.eq.s32.totalorder %s26, 1
      %p196 = por %p194, %p195
      %p197 = scmp.ne.s32.totalorder %s186, %s187
      %p198 = scmp.eq.s32.totalorder %s26, 0
      %p199 = por %p197, %p198
      %p200 = scmp.ne.s32.totalorder %s186, %s187
      %p201 = scmp.eq.s32.totalorder %s27, 1
      %p202 = por %p200, %p201
      %p204 = scmp.ne.s32.totalorder %s187, %s203
      %p205 = scmp.eq.s32.totalorder %s27, 0
      %p206 = por %p204, %p205
      %p207 = scmp.le.s32.totalorder 1, %s21
      %p208 = scmp.lt.s32.totalorder %s21, 3
      %p209 = pnand %p207, %p208
      %p210 = pneg %p209
      // Predicated region
      $region9: #{tpu_custom_call.1} parent=5 // pred_check
        _
      $region10: #{tpu_custom_call.1} parent=5 // pred_check_branch
        %212 = sbr.rel (%p209) target = $region12
      $region11: #{tpu_custom_call.1} parent=5 // pred_region
        %s213 = ssub.s32 %s21, 1
        // Predicated region
        $region13: #{tpu_custom_call.1} parent=11 // pred_check
          %p214 = pneg %p68
        $region14: #{tpu_custom_call.1} parent=11 // pred_check_branch
          %216 = sbr.rel (%p214) target = $region16
        $region15: #{tpu_custom_call.1} parent=11 // pred_region
          %s218 = ssub.s32 10240, 10240
          %219 = vsyncadd [#allocation7], %s218
          %s220 = sshll.u32 [#allocation6], 4
          %s221 = int_to_ptr.vmem [resolvable:$true] %s220
          %226 = dma.hbm_to_vmem [thread:$0]  %s1, 10240, %s221, [#allocation7], 128, 128, 8
        $region16: #{tpu_custom_call.1} parent=11 // pred_fallthru
          _
        // Predicated region
        $region17: #{tpu_custom_call.1} parent=11 // pred_check
          %p227 = pneg %p89
        $region18: #{tpu_custom_call.1} parent=11 // pred_check_branch
          %229 = sbr.rel (%p227) target = $region20
        $region19: #{tpu_custom_call.1} parent=11 // pred_region
          _
        $region20: #{tpu_custom_call.1} parent=11 // pred_fallthru
          _
        // Predicated region
        $region21: #{tpu_custom_call.1} parent=11 // pred_check
          %p230 = pneg %p110
        $region22: #{tpu_custom_call.1} parent=11 // pred_check_branch
          %232 = sbr.rel (%p230) target = $region24
        $region23: #{tpu_custom_call.1} parent=11 // pred_region
          %s234 = ssub.s32 10240, 10240
          %235 = vsyncadd [#allocation7], %s234
          %s236 = sshll.u32 [#allocation8], 4
          %s237 = int_to_ptr.vmem [resolvable:$true] %s236
          %242 = dma.hbm_to_vmem [thread:$0]  %s3, 10240, %s237, [#allocation7], 128, 128, 8
        $region24: #{tpu_custom_call.1} parent=11 // pred_fallthru
          _
        // Predicated region
        $region25: #{tpu_custom_call.1} parent=11 // pred_check
          %p243 = pneg %p131
        $region26: #{tpu_custom_call.1} parent=11 // pred_check_branch
          %245 = sbr.rel (%p243) target = $region28
        $region27: #{tpu_custom_call.1} parent=11 // pred_region
          _
        $region28: #{tpu_custom_call.1} parent=11 // pred_fallthru
          _
        // Predicated region
        $region29: #{tpu_custom_call.1} parent=11 // pred_check
          %p246 = pneg %p152
        $region30: #{tpu_custom_call.1} parent=11 // pred_check_branch
          %248 = sbr.rel (%p246) target = $region32
        $region31: #{tpu_custom_call.1} parent=11 // pred_region
          %s250 = ssub.s32 10240, 10240
          %251 = vsyncadd [#allocation10], %s250
          %s252 = sshll.u32 [#allocation9], 4
          %s253 = int_to_ptr.vmem [resolvable:$true] %s252
          %258 = dma.hbm_to_vmem [thread:$0]  %s5, 10240, %s253, [#allocation10], 128, 128, 8
        $region32: #{tpu_custom_call.1} parent=11 // pred_fallthru
          _
        // Predicated region
        $region33: #{tpu_custom_call.1} parent=11 // pred_check
          %p259 = pneg %p173
        $region34: #{tpu_custom_call.1} parent=11 // pred_check_branch
          %261 = sbr.rel (%p259) target = $region36
        $region35: #{tpu_custom_call.1} parent=11 // pred_region
          _
        $region36: #{tpu_custom_call.1} parent=11 // pred_fallthru
          _
      $region12: #{tpu_custom_call.1} parent=5 // pred_fallthru
        _
      %p262 = scmp.lt.s32.totalorder %s21, 2
      // Predicated region
      $region37: #{tpu_custom_call.1} parent=5 // pred_check
        %p263 = pneg %p262
      $region38: #{tpu_custom_call.1} parent=5 // pred_check_branch
        %265 = sbr.rel (%p263) target = $region40
      $region39: #{tpu_custom_call.1} parent=5 // pred_region
        // Predicated region
        $region41: #{tpu_custom_call.1} parent=39 // pred_check
          %p266 = pneg %p41
        $region42: #{tpu_custom_call.1} parent=39 // pred_check_branch
          %268 = sbr.rel (%p266) target = $region44
        $region43: #{tpu_custom_call.1} parent=39 // pred_region
          %s269 = sand.u32 %s31, 1
          %s270 = scalar_lea.sflag [#allocation4], %s269
          %s271 = sand.u32 %s31, 1
          %s272 = smul.addr %s271, 16
          %s273 = scalar_lea.vmem [#allocation3], %s272
          %s275 = ssub.s32 256, 256
          %276 = vsyncadd %s270, %s275
          %s277 = smul.addr %s21, 2
          %s278 = smul.addr %s277, 128
          %s279 = scalar_lea.hbm %s0, %s278
          %s280 = sshll.u32 %s273, 4
          %s281 = int_to_ptr.vmem [resolvable:$true] %s280
          %286 = dma.hbm_to_vmem [thread:$0]  %s279, 256, %s281, %s270, 128, 128, 8
        $region44: #{tpu_custom_call.1} parent=39 // pred_fallthru
          _
      $region40: #{tpu_custom_call.1} parent=5 // pred_fallthru
        _
      %p287 = scmp.le.s32.totalorder 1, %s21
      %p288 = scmp.lt.s32.totalorder %s21, 3
      %p289 = pnand %p287, %p288
      %p290 = pneg %p289
      // Predicated region
      $region45: #{tpu_custom_call.1} parent=5 // pred_check
        _
      $region46: #{tpu_custom_call.1} parent=5 // pred_check_branch
        %292 = sbr.rel (%p289) target = $region48
      $region47: #{tpu_custom_call.1} parent=5 // pred_region
        %s293 = ssub.s32 %s21, 1
        %s294 = sand.u32 %s34, 1
        %s295 = scalar_lea.sflag [#allocation4], %s294
        %s296 = sand.u32 %s34, 1
        %s297 = smul.addr %s296, 16
        %s298 = scalar_lea.vmem [#allocation3], %s297
        // Predicated region
        $region49: #{tpu_custom_call.1} parent=47 // pred_check
          %p299 = pneg %p47
        $region50: #{tpu_custom_call.1} parent=47 // pred_check_branch
          %301 = sbr.rel (%p299) target = $region52
        $region51: #{tpu_custom_call.1} parent=47 // pred_region
          %302 = dma.done %s295, 256
        $region52: #{tpu_custom_call.1} parent=47 // pred_fallthru
          _
        // Predicated region
        $region53: #{tpu_custom_call.1} parent=47 // pred_check
          %p303 = pneg %p68
        $region54: #{tpu_custom_call.1} parent=47 // pred_check_branch
          %305 = sbr.rel (%p303) target = $region56
        $region55: #{tpu_custom_call.1} parent=47 // pred_region
          %306 = dma.done [#allocation7], 10240
        $region56: #{tpu_custom_call.1} parent=47 // pred_fallthru
          _
        // Predicated region
        $region57: #{tpu_custom_call.1} parent=47 // pred_check
          %p307 = pneg %p110
        $region58: #{tpu_custom_call.1} parent=47 // pred_check_branch
          %309 = sbr.rel (%p307) target = $region60
        $region59: #{tpu_custom_call.1} parent=47 // pred_region
          %310 = dma.done [#allocation7], 10240
        $region60: #{tpu_custom_call.1} parent=47 // pred_fallthru
          _
        // Predicated region
        $region61: #{tpu_custom_call.1} parent=47 // pred_check
          %p311 = pneg %p152
        $region62: #{tpu_custom_call.1} parent=47 // pred_check_branch
          %313 = sbr.rel (%p311) target = $region64
        $region63: #{tpu_custom_call.1} parent=47 // pred_region
          %314 = dma.done [#allocation10], 10240
        $region64: #{tpu_custom_call.1} parent=47 // pred_fallthru
          _
        %s315 = sand.u32 %s34, 1
        %s316 = scalar_lea.sflag [#allocation4], %s315
        %s317 = sand.u32 %s34, 1
        %s318 = smul.addr %s317, 16
        %s319 = scalar_lea.vmem [#allocation3], %s318
        %p320 = pneg %p47
        %p321 = pneg %p44
        %p322 = pneg %p68
        %p323 = pneg %p65
        %p324 = pneg %p89
        %p325 = pneg %p86
        %p326 = pneg %p110
        %p327 = pneg %p107
        %p328 = pneg %p131
        %p329 = pneg %p128
        %p330 = pneg %p152
        %p331 = pneg %p149
        %p332 = pneg %p173
        %p333 = pneg %p170
        %p334 = pneg %p199
        %p335 = pneg %p196
        %s336 = sand.u32 %s186, 1
        %s337 = scalar_lea.sflag [#allocation5], %s336
        %s338 = sand.u32 %s186, 1
        %s339 = smul.addr %s338, 16
        %s340 = scalar_lea.vmem [#allocation11], %s339
        %341 = vst [vmem:[#allocation2] sm:$0xff] 0.0
        %342 = vst [vmem:[#allocation2 + $0x18] sm:$0x3] 0.0
        %v343 = vld [vmem:[%s298] sm:$0xff]
        %v344 = vld [vmem:[%s298 + $0x8] sm:$0xff]
        %345 = vst [vmem:[#allocation2 + $0x8] sm:$0xff] %v343
        %346 = vst [vmem:[#allocation2 + $0x10] sm:$0xff] %v344
        %v347 = vld [vmem:[%s2] sm:$0x1]
        %v349 = vlaneseq
        %v350 = vshrl.u32 %v349, 7
        %v351 = vsub.s32 0, %v350
        %v352 = vrot.slane %v347, %v351
        %v354 = vld [vmem:[#allocation2 + $0x6] sm:$0xff]
        %v355 = vld [vmem:[#allocation2 + $0xe] sm:$0xff]
        %v356 = vld [vmem:[#allocation6] sm:$0xff]
        %v357 = vld [vmem:[#allocation6 + $0x8] sm:$0xff]
        %v358 = vld [vmem:[#allocation6 + $0x10] sm:$0xff]
        %v359 = vld [vmem:[#allocation6 + $0x18] sm:$0xff]
        %v360 = vld [vmem:[#allocation6 + $0x20] sm:$0xff]
        %v361 = vld [vmem:[#allocation6 + $0x28] sm:$0xff]
        %v362 = vld [vmem:[#allocation6 + $0x30] sm:$0xff]
        %v363 = vld [vmem:[#allocation6 + $0x38] sm:$0xff]
        %v364 = vld [vmem:[#allocation6 + $0x40] sm:$0xff]
        %v365 = vld [vmem:[#allocation6 + $0x48] sm:$0xff]
        %v366 = vld [vmem:[#allocation6 + $0x50] sm:$0xff]
        %v367 = vld [vmem:[#allocation6 + $0x58] sm:$0xff]
        %v368 = vld [vmem:[#allocation6 + $0x60] sm:$0xff]
        %v369 = vld [vmem:[#allocation6 + $0x68] sm:$0xff]
        %v370 = vld [vmem:[#allocation6 + $0x70] sm:$0xff]
        %v371 = vld [vmem:[#allocation6 + $0x78] sm:$0xff]
        %372 = vmatprep.subr.mxu0 0.0
        %373 = vmatpush1.msra.mxu0 %v356
        %374 = vmatprep.subr.mxu0 0.0
        %375 = vmatpush1.msra.mxu0 %v357
        %376 = vmatprep.subr.mxu0 0.0
        %377 = vmatpush1.msra.mxu0 %v358
        %378 = vmatprep.subr.mxu0 0.0
        %379 = vmatpush1.msra.mxu0 %v359
        %380 = vmatprep.subr.mxu0 0.0
        %381 = vmatpush1.msra.mxu0 %v360
        %382 = vmatprep.subr.mxu0 0.0
        %383 = vmatpush1.msra.mxu0 %v361
        %384 = vmatprep.subr.mxu0 0.0
        %385 = vmatpush1.msra.mxu0 %v362
        %386 = vmatprep.subr.mxu0 0.0
        %387 = vmatpush1.msra.mxu0 %v363
        %388 = vmatprep.subr.mxu0 0.0
        %389 = vmatpush1.msra.mxu0 %v364
        %390 = vmatprep.subr.mxu0 0.0
        %391 = vmatpush1.msra.mxu0 %v365
        %392 = vmatprep.subr.mxu0 0.0
        %393 = vmatpush1.msra.mxu0 %v366
        %394 = vmatprep.subr.mxu0 0.0
        %395 = vmatpush1.msra.mxu0 %v367
        %396 = vmatprep.subr.mxu0 0.0
        %397 = vmatpush1.msra.mxu0 %v368
        %398 = vmatprep.subr.mxu0 0.0
        %399 = vmatpush1.msra.mxu0 %v369
        %400 = vmatprep.subr.mxu0 0.0
        %401 = vmatpush1.msra.mxu0 %v370
        %402 = vmatprep.subr.mxu0 0.0
        %403 = vmatpush1.msra.mxu0 %v371
        %404 = vmatprep.subr.mxu0 0.0
        %405 = vmatpush1.msra.mxu0 0.0
        %406 = vmatprep.subr.mxu0 0.0
        %407 = vmatpush1.msra.mxu0 0.0
        %408 = vmatprep.subr.mxu0 0.0
        %409 = vmatpush1.msra.mxu0 0.0
        %410 = vmatprep.subr.mxu0 0.0
        %411 = vmatpush1.msra.mxu0 0.0
        %412 = vmatprep.subr.mxu0 0.0
        %413 = vmatpush1.msra.mxu0 0.0
        %414 = vmatprep.subr.mxu0 0.0
        %415 = vmatpush1.msra.mxu0 0.0
        %416 = vmatprep.subr.mxu0 0.0
        %417 = vmatpush1.msra.mxu0 0.0
        %418 = vmatprep.subr.mxu0 0.0
        %419 = vmatpush1.msra.mxu0 0.0
        %420 = vmatprep.subr.mxu0 0.0
        %421 = vmatpush1.msra.mxu0 0.0
        %422 = vmatprep.subr.mxu0 0.0
        %423 = vmatpush1.msra.mxu0 0.0
        %424 = vmatprep.subr.mxu0 0.0
        %425 = vmatpush1.msra.mxu0 0.0
        %426 = vmatprep.subr.mxu0 0.0
        %427 = vmatpush1.msra.mxu0 0.0
        %428 = vmatprep.subr.mxu0 0.0
        %429 = vmatpush1.msra.mxu0 0.0
        %430 = vmatprep.subr.mxu0 0.0
        %431 = vmatpush1.msra.mxu0 0.0
        %432 = vmatprep.subr.mxu0 0.0
        %433 = vmatpush1.msra.mxu0 0.0
        %434 = vmatprep.subr.mxu0 0.0
        %435 = vmatpush1.msra.mxu0 0.0
        %436 = vmatprep.mubr.f32.mxu0 0.0
        %437 = vmatmul.mubr.f32.gmra.mrb[0].mxu0 %v354
        %v438 = vpop.f32.mrb[0].mxu0
        %v439 = vadd.f32 0.0, %v438
        %v440 = vpop.f32.mrb[0].mxu0
        %441 = vmatprep.mubr.f32.mxu0 0.0
        %442 = vmatmul.mubr.f32.gmra.mrb[0].mxu0 %v355
        %v443 = vpop.f32.mrb[0].mxu0
        %v444 = vadd.f32 0.0, %v443
        %v445 = vpop.f32.mrb[0].mxu0
        %446 = vdwg.mxu0
        %v447 = vadd.f32 %v352, %v439
        %v448 = vadd.f32 %v352, %v444
        %v449 = vld [vmem:[#allocation2 + $0x7] sm:$0xff]
        %v450 = vld [vmem:[#allocation2 + $0xf] sm:$0xff]
        %s451 = scalar_lea.vmem [#allocation6], 128
        %v452 = vld [vmem:[%s451] sm:$0xff]
        %v453 = vld [vmem:[%s451 + $0x8] sm:$0xff]
        %v454 = vld [vmem:[%s451 + $0x10] sm:$0xff]
        %v455 = vld [vmem:[%s451 + $0x18] sm:$0xff]
        %v456 = vld [vmem:[%s451 + $0x20] sm:$0xff]
        %v457 = vld [vmem:[%s451 + $0x28] sm:$0xff]
        %v458 = vld [vmem:[%s451 + $0x30] sm:$0xff]
        %v459 = vld [vmem:[%s451 + $0x38] sm:$0xff]
        %v460 = vld [vmem:[%s451 + $0x40] sm:$0xff]
        %v461 = vld [vmem:[%s451 + $0x48] sm:$0xff]
        %v462 = vld [vmem:[%s451 + $0x50] sm:$0xff]
        %v463 = vld [vmem:[%s451 + $0x58] sm:$0xff]
        %v464 = vld [vmem:[%s451 + $0x60] sm:$0xff]
        %v465 = vld [vmem:[%s451 + $0x68] sm:$0xff]
        %v466 = vld [vmem:[%s451 + $0x70] sm:$0xff]
        %v467 = vld [vmem:[%s451 + $0x78] sm:$0xff]
        %468 = vmatprep.subr.mxu0 0.0
        %469 = vmatpush1.msra.mxu0 %v452
        %470 = vmatprep.subr.mxu0 0.0
        %471 = vmatpush1.msra.mxu0 %v453
        %472 = vmatprep.subr.mxu0 0.0
        %473 = vmatpush1.msra.mxu0 %v454
        %474 = vmatprep.subr.mxu0 0.0
        %475 = vmatpush1.msra.mxu0 %v455
        %476 = vmatprep.subr.mxu0 0.0
        %477 = vmatpush1.msra.mxu0 %v456
        %478 = vmatprep.subr.mxu0 0.0
        %479 = vmatpush1.msra.mxu0 %v457
        %480 = vmatprep.subr.mxu0 0.0
        %481 = vmatpush1.msra.mxu0 %v458
        %482 = vmatprep.subr.mxu0 0.0
        %483 = vmatpush1.msra.mxu0 %v459
        %484 = vmatprep.subr.mxu0 0.0
        %485 = vmatpush1.msra.mxu0 %v460
        %486 = vmatprep.subr.mxu0 0.0
        %487 = vmatpush1.msra.mxu0 %v461
        %488 = vmatprep.subr.mxu0 0.0
        %489 = vmatpush1.msra.mxu0 %v462
        %490 = vmatprep.subr.mxu0 0.0
        %491 = vmatpush1.msra.mxu0 %v463
        %492 = vmatprep.subr.mxu0 0.0
        %493 = vmatpush1.msra.mxu0 %v464
        %494 = vmatprep.subr.mxu0 0.0
        %495 = vmatpush1.msra.mxu0 %v465
        %496 = vmatprep.subr.mxu0 0.0
        %497 = vmatpush1.msra.mxu0 %v466
        %498 = vmatprep.subr.mxu0 0.0
        %499 = vmatpush1.msra.mxu0 %v467
        %500 = vmatprep.subr.mxu0 0.0
        %501 = vmatpush1.msra.mxu0 0.0
        %502 = vmatprep.subr.mxu0 0.0
        %503 = vmatpush1.msra.mxu0 0.0
        %504 = vmatprep.subr.mxu0 0.0
        %505 = vmatpush1.msra.mxu0 0.0
        %506 = vmatprep.subr.mxu0 0.0
        %507 = vmatpush1.msra.mxu0 0.0
        %508 = vmatprep.subr.mxu0 0.0
        %509 = vmatpush1.msra.mxu0 0.0
        %510 = vmatprep.subr.mxu0 0.0
        %511 = vmatpush1.msra.mxu0 0.0
        %512 = vmatprep.subr.mxu0 0.0
        %513 = vmatpush1.msra.mxu0 0.0
        %514 = vmatprep.subr.mxu0 0.0
        %515 = vmatpush1.msra.mxu0 0.0
        %516 = vmatprep.subr.mxu0 0.0
        %517 = vmatpush1.msra.mxu0 0.0
        %518 = vmatprep.subr.mxu0 0.0
        %519 = vmatpush1.msra.mxu0 0.0
        %520 = vmatprep.subr.mxu0 0.0
        %521 = vmatpush1.msra.mxu0 0.0
        %522 = vmatprep.subr.mxu0 0.0
        %523 = vmatpush1.msra.mxu0 0.0
        %524 = vmatprep.subr.mxu0 0.0
        %525 = vmatpush1.msra.mxu0 0.0
        %526 = vmatprep.subr.mxu0 0.0
        %527 = vmatpush1.msra.mxu0 0.0
        %528 = vmatprep.subr.mxu0 0.0
        %529 = vmatpush1.msra.mxu0 0.0
        %530 = vmatprep.subr.mxu0 0.0
        %531 = vmatpush1.msra.mxu0 0.0
        %532 = vmatprep.mubr.f32.mxu0 0.0
        %533 = vmatmul.mubr.f32.gmra.mrb[0].mxu0 %v449
        %v534 = vpop.f32.mrb[0].mxu0
        %v535 = vadd.f32 0.0, %v534
        %v536 = vpop.f32.mrb[0].mxu0
        %537 = vmatprep.mubr.f32.mxu0 0.0
        %538 = vmatmul.mubr.f32.gmra.mrb[0].mxu0 %v450
        %v539 = vpop.f32.mrb[0].mxu0
        %v540 = vadd.f32 0.0, %v539
        %v541 = vpop.f32.mrb[0].mxu0
        %542 = vdwg.mxu0
        %v543 = vadd.f32 %v447, %v535
        %v544 = vadd.f32 %v448, %v540
        %v545 = vld [vmem:[#allocation2 + $0x8] sm:$0xff]
        %v546 = vld [vmem:[#allocation2 + $0x10] sm:$0xff]
        %s547 = scalar_lea.vmem [#allocation6], 256
        %v548 = vld [vmem:[%s547] sm:$0xff]
        %v549 = vld [vmem:[%s547 + $0x8] sm:$0xff]
        %v550 = vld [vmem:[%s547 + $0x10] sm:$0xff]
        %v551 = vld [vmem:[%s547 + $0x18] sm:$0xff]
        %v552 = vld [vmem:[%s547 + $0x20] sm:$0xff]
        %v553 = vld [vmem:[%s547 + $0x28] sm:$0xff]
        %v554 = vld [vmem:[%s547 + $0x30] sm:$0xff]
        %v555 = vld [vmem:[%s547 + $0x38] sm:$0xff]
        %v556 = vld [vmem:[%s547 + $0x40] sm:$0xff]
        %v557 = vld [vmem:[%s547 + $0x48] sm:$0xff]
        %v558 = vld [vmem:[%s547 + $0x50] sm:$0xff]
        %v559 = vld [vmem:[%s547 + $0x58] sm:$0xff]
        %v560 = vld [vmem:[%s547 + $0x60] sm:$0xff]
        %v561 = vld [vmem:[%s547 + $0x68] sm:$0xff]
        %v562 = vld [vmem:[%s547 + $0x70] sm:$0xff]
        %v563 = vld [vmem:[%s547 + $0x78] sm:$0xff]
        %564 = vmatprep.subr.mxu0 0.0
        %565 = vmatpush1.msra.mxu0 %v548
        %566 = vmatprep.subr.mxu0 0.0
        %567 = vmatpush1.msra.mxu0 %v549
        %568 = vmatprep.subr.mxu0 0.0
        %569 = vmatpush1.msra.mxu0 %v550
        %570 = vmatprep.subr.mxu0 0.0
        %571 = vmatpush1.msra.mxu0 %v551
        %572 = vmatprep.subr.mxu0 0.0
        %573 = vmatpush1.msra.mxu0 %v552
        %574 = vmatprep.subr.mxu0 0.0
        %575 = vmatpush1.msra.mxu0 %v553
        %576 = vmatprep.subr.mxu0 0.0
        %577 = vmatpush1.msra.mxu0 %v554
        %578 = vmatprep.subr.mxu0 0.0
        %579 = vmatpush1.msra.mxu0 %v555
        %580 = vmatprep.subr.mxu0 0.0
        %581 = vmatpush1.msra.mxu0 %v556
        %582 = vmatprep.subr.mxu0 0.0
        %583 = vmatpush1.msra.mxu0 %v557
        %584 = vmatprep.subr.mxu0 0.0
        %585 = vmatpush1.msra.mxu0 %v558
        %586 = vmatprep.subr.mxu0 0.0
        %587 = vmatpush1.msra.mxu0 %v559
        %588 = vmatprep.subr.mxu0 0.0
        %589 = vmatpush1.msra.mxu0 %v560
        %590 = vmatprep.subr.mxu0 0.0
        %591 = vmatpush1.msra.mxu0 %v561
        %592 = vmatprep.subr.mxu0 0.0
        %593 = vmatpush1.msra.mxu0 %v562
        %594 = vmatprep.subr.mxu0 0.0
        %595 = vmatpush1.msra.mxu0 %v563
        %596 = vmatprep.subr.mxu0 0.0
        %597 = vmatpush1.msra.mxu0 0.0
        %598 = vmatprep.subr.mxu0 0.0
        %599 = vmatpush1.msra.mxu0 0.0
        %600 = vmatprep.subr.mxu0 0.0
        %601 = vmatpush1.msra.mxu0 0.0
        %602 = vmatprep.subr.mxu0 0.0
        %603 = vmatpush1.msra.mxu0 0.0
        %604 = vmatprep.subr.mxu0 0.0
        %605 = vmatpush1.msra.mxu0 0.0
        %606 = vmatprep.subr.mxu0 0.0
        %607 = vmatpush1.msra.mxu0 0.0
        %608 = vmatprep.subr.mxu0 0.0
        %609 = vmatpush1.msra.mxu0 0.0
        %610 = vmatprep.subr.mxu0 0.0
        %611 = vmatpush1.msra.mxu0 0.0
        %612 = vmatprep.subr.mxu0 0.0
        %613 = vmatpush1.msra.mxu0 0.0
        %614 = vmatprep.subr.mxu0 0.0
        %615 = vmatpush1.msra.mxu0 0.0
        %616 = vmatprep.subr.mxu0 0.0
        %617 = vmatpush1.msra.mxu0 0.0
        %618 = vmatprep.subr.mxu0 0.0
        %619 = vmatpush1.msra.mxu0 0.0
        %620 = vmatprep.subr.mxu0 0.0
        %621 = vmatpush1.msra.mxu0 0.0
        %622 = vmatprep.subr.mxu0 0.0
        %623 = vmatpush1.msra.mxu0 0.0
        %624 = vmatprep.subr.mxu0 0.0
        %625 = vmatpush1.msra.mxu0 0.0
        %626 = vmatprep.subr.mxu0 0.0
        %627 = vmatpush1.msra.mxu0 0.0
        %628 = vmatprep.mubr.f32.mxu0 0.0
        %629 = vmatmul.mubr.f32.gmra.mrb[0].mxu0 %v545
        %v630 = vpop.f32.mrb[0].mxu0
        %v631 = vadd.f32 0.0, %v630
        %v632 = vpop.f32.mrb[0].mxu0
        %633 = vmatprep.mubr.f32.mxu0 0.0
        %634 = vmatmul.mubr.f32.gmra.mrb[0].mxu0 %v546
        %v635 = vpop.f32.mrb[0].mxu0
        %v636 = vadd.f32 0.0, %v635
        %v637 = vpop.f32.mrb[0].mxu0
        %638 = vdwg.mxu0
        %v639 = vadd.f32 %v543, %v631
        %v640 = vadd.f32 %v544, %v636
        %v641 = vld [vmem:[#allocation2 + $0x9] sm:$0xff]
        %v642 = vld [vmem:[#allocation2 + $0x11] sm:$0xff]
        %s643 = scalar_lea.vmem [#allocation6], 384
        %v644 = vld [vmem:[%s643] sm:$0xff]
        %v645 = vld [vmem:[%s643 + $0x8] sm:$0xff]
        %v646 = vld [vmem:[%s643 + $0x10] sm:$0xff]
        %v647 = vld [vmem:[%s643 + $0x18] sm:$0xff]
        %v648 = vld [vmem:[%s643 + $0x20] sm:$0xff]
        %v649 = vld [vmem:[%s643 + $0x28] sm:$0xff]
        %v650 = vld [vmem:[%s643 + $0x30] sm:$0xff]
        %v651 = vld [vmem:[%s643 + $0x38] sm:$0xff]
        %v652 = vld [vmem:[%s643 + $0x40] sm:$0xff]
        %v653 = vld [vmem:[%s643 + $0x48] sm:$0xff]
        %v654 = vld [vmem:[%s643 + $0x50] sm:$0xff]
        %v655 = vld [vmem:[%s643 + $0x58] sm:$0xff]
        %v656 = vld [vmem:[%s643 + $0x60] sm:$0xff]
        %v657 = vld [vmem:[%s643 + $0x68] sm:$0xff]
        %v658 = vld [vmem:[%s643 + $0x70] sm:$0xff]
        %v659 = vld [vmem:[%s643 + $0x78] sm:$0xff]
        %660 = vmatprep.subr.mxu0 0.0
        %661 = vmatpush1.msra.mxu0 %v644
        %662 = vmatprep.subr.mxu0 0.0
        %663 = vmatpush1.msra.mxu0 %v645
        %664 = vmatprep.subr.mxu0 0.0
        %665 = vmatpush1.msra.mxu0 %v646
        %666 = vmatprep.subr.mxu0 0.0
        %667 = vmatpush1.msra.mxu0 %v647
        %668 = vmatprep.subr.mxu0 0.0
        %669 = vmatpush1.msra.mxu0 %v648
        %670 = vmatprep.subr.mxu0 0.0
        %671 = vmatpush1.msra.mxu0 %v649
        %672 = vmatprep.subr.mxu0 0.0
        %673 = vmatpush1.msra.mxu0 %v650
        %674 = vmatprep.subr.mxu0 0.0
        %675 = vmatpush1.msra.mxu0 %v651
        %676 = vmatprep.subr.mxu0 0.0
        %677 = vmatpush1.msra.mxu0 %v652
        %678 = vmatprep.subr.mxu0 0.0
        %679 = vmatpush1.msra.mxu0 %v653
        %680 = vmatprep.subr.mxu0 0.0
        %681 = vmatpush1.msra.mxu0 %v654
        %682 = vmatprep.subr.mxu0 0.0
        %683 = vmatpush1.msra.mxu0 %v655
        %684 = vmatprep.subr.mxu0 0.0
        %685 = vmatpush1.msra.mxu0 %v656
        %686 = vmatprep.subr.mxu0 0.0
        %687 = vmatpush1.msra.mxu0 %v657
        %688 = vmatprep.subr.mxu0 0.0
        %689 = vmatpush1.msra.mxu0 %v658
        %690 = vmatprep.subr.mxu0 0.0
        %691 = vmatpush1.msra.mxu0 %v659
        %692 = vmatprep.subr.mxu0 0.0
        %693 = vmatpush1.msra.mxu0 0.0
        %694 = vmatprep.subr.mxu0 0.0
        %695 = vmatpush1.msra.mxu0 0.0
        %696 = vmatprep.subr.mxu0 0.0
        %697 = vmatpush1.msra.mxu0 0.0
        %698 = vmatprep.subr.mxu0 0.0
        %699 = vmatpush1.msra.mxu0 0.0
        %700 = vmatprep.subr.mxu0 0.0
        %701 = vmatpush1.msra.mxu0 0.0
        %702 = vmatprep.subr.mxu0 0.0
        %703 = vmatpush1.msra.mxu0 0.0
        %704 = vmatprep.subr.mxu0 0.0
        %705 = vmatpush1.msra.mxu0 0.0
        %706 = vmatprep.subr.mxu0 0.0
        %707 = vmatpush1.msra.mxu0 0.0
        %708 = vmatprep.subr.mxu0 0.0
        %709 = vmatpush1.msra.mxu0 0.0
        %710 = vmatprep.subr.mxu0 0.0
        %711 = vmatpush1.msra.mxu0 0.0
        %712 = vmatprep.subr.mxu0 0.0
        %713 = vmatpush1.msra.mxu0 0.0
        %714 = vmatprep.subr.mxu0 0.0
        %715 = vmatpush1.msra.mxu0 0.0
        %716 = vmatprep.subr.mxu0 0.0
        %717 = vmatpush1.msra.mxu0 0.0
        %718 = vmatprep.subr.mxu0 0.0
        %719 = vmatpush1.msra.mxu0 0.0
        %720 = vmatprep.subr.mxu0 0.0
        %721 = vmatpush1.msra.mxu0 0.0
        %722 = vmatprep.subr.mxu0 0.0
        %723 = vmatpush1.msra.mxu0 0.0
        %724 = vmatprep.mubr.f32.mxu0 0.0
        %725 = vmatmul.mubr.f32.gmra.mrb[0].mxu0 %v641
        %v726 = vpop.f32.mrb[0].mxu0
        %v727 = vadd.f32 0.0, %v726
        %v728 = vpop.f32.mrb[0].mxu0
        %729 = vmatprep.mubr.f32.mxu0 0.0
        %730 = vmatmul.mubr.f32.gmra.mrb[0].mxu0 %v642
        %v731 = vpop.f32.mrb[0].mxu0
        %v732 = vadd.f32 0.0, %v731
        %v733 = vpop.f32.mrb[0].mxu0
        %734 = vdwg.mxu0
        %v735 = vadd.f32 %v639, %v727
        %v736 = vadd.f32 %v640, %v732
        %v737 = vld [vmem:[#allocation2 + $0xa] sm:$0xff]
        %v738 = vld [vmem:[#allocation2 + $0x12] sm:$0xff]
        %s739 = scalar_lea.vmem [#allocation6], 512
        %v740 = vld [vmem:[%s739] sm:$0xff]
        %v741 = vld [vmem:[%s739 + $0x8] sm:$0xff]
        %v742 = vld [vmem:[%s739 + $0x10] sm:$0xff]
        %v743 = vld [vmem:[%s739 + $0x18] sm:$0xff]
        %v744 = vld [vmem:[%s739 + $0x20] sm:$0xff]
        %v745 = vld [vmem:[%s739 + $0x28] sm:$0xff]
        %v746 = vld [vmem:[%s739 + $0x30] sm:$0xff]
        %v747 = vld [vmem:[%s739 + $0x38] sm:$0xff]
        %v748 = vld [vmem:[%s739 + $0x40] sm:$0xff]
        %v749 = vld [vmem:[%s739 + $0x48] sm:$0xff]
        %v750 = vld [vmem:[%s739 + $0x50] sm:$0xff]
        %v751 = vld [vmem:[%s739 + $0x58] sm:$0xff]
        %v752 = vld [vmem:[%s739 + $0x60] sm:$0xff]
        %v753 = vld [vmem:[%s739 + $0x68] sm:$0xff]
        %v754 = vld [vmem:[%s739 + $0x70] sm:$0xff]
        %v755 = vld [vmem:[%s739 + $0x78] sm:$0xff]
        %756 = vmatprep.subr.mxu0 0.0
        %757 = vmatpush1.msra.mxu0 %v740
        %758 = vmatprep.subr.mxu0 0.0
        %759 = vmatpush1.msra.mxu0 %v741
        %760 = vmatprep.subr.mxu0 0.0
        %761 = vmatpush1.msra.mxu0 %v742
        %762 = vmatprep.subr.mxu0 0.0
        %763 = vmatpush1.msra.mxu0 %v743
        %764 = vmatprep.subr.mxu0 0.0
        %765 = vmatpush1.msra.mxu0 %v744
        %766 = vmatprep.subr.mxu0 0.0
        %767 = vmatpush1.msra.mxu0 %v745
        %768 = vmatprep.subr.mxu0 0.0
        %769 = vmatpush1.msra.mxu0 %v746
        %770 = vmatprep.subr.mxu0 0.0
        %771 = vmatpush1.msra.mxu0 %v747
        %772 = vmatprep.subr.mxu0 0.0
        %773 = vmatpush1.msra.mxu0 %v748
        %774 = vmatprep.subr.mxu0 0.0
        %775 = vmatpush1.msra.mxu0 %v749
        %776 = vmatprep.subr.mxu0 0.0
        %777 = vmatpush1.msra.mxu0 %v750
        %778 = vmatprep.subr.mxu0 0.0
        %779 = vmatpush1.msra.mxu0 %v751
        %780 = vmatprep.subr.mxu0 0.0
        %781 = vmatpush1.msra.mxu0 %v752
        %782 = vmatprep.subr.mxu0 0.0
        %783 = vmatpush1.msra.mxu0 %v753
        %784 = vmatprep.subr.mxu0 0.0
        %785 = vmatpush1.msra.mxu0 %v754
        %786 = vmatprep.subr.mxu0 0.0
        %787 = vmatpush1.msra.mxu0 %v755
        %788 = vmatprep.subr.mxu0 0.0
        %789 = vmatpush1.msra.mxu0 0.0
        %790 = vmatprep.subr.mxu0 0.0
        %791 = vmatpush1.msra.mxu0 0.0
        %792 = vmatprep.subr.mxu0 0.0
        %793 = vmatpush1.msra.mxu0 0.0
        %794 = vmatprep.subr.mxu0 0.0
        %795 = vmatpush1.msra.mxu0 0.0
        %796 = vmatprep.subr.mxu0 0.0
        %797 = vmatpush1.msra.mxu0 0.0
        %798 = vmatprep.subr.mxu0 0.0
        %799 = vmatpush1.msra.mxu0 0.0
        %800 = vmatprep.subr.mxu0 0.0
        %801 = vmatpush1.msra.mxu0 0.0
        %802 = vmatprep.subr.mxu0 0.0
        %803 = vmatpush1.msra.mxu0 0.0
        %804 = vmatprep.subr.mxu0 0.0
        %805 = vmatpush1.msra.mxu0 0.0
        %806 = vmatprep.subr.mxu0 0.0
        %807 = vmatpush1.msra.mxu0 0.0
        %808 = vmatprep.subr.mxu0 0.0
        %809 = vmatpush1.msra.mxu0 0.0
        %810 = vmatprep.subr.mxu0 0.0
        %811 = vmatpush1.msra.mxu0 0.0
        %812 = vmatprep.subr.mxu0 0.0
        %813 = vmatpush1.msra.mxu0 0.0
        %814 = vmatprep.subr.mxu0 0.0
        %815 = vmatpush1.msra.mxu0 0.0
        %816 = vmatprep.subr.mxu0 0.0
        %817 = vmatpush1.msra.mxu0 0.0
        %818 = vmatprep.subr.mxu0 0.0
        %819 = vmatpush1.msra.mxu0 0.0
        %820 = vmatprep.mubr.f32.mxu0 0.0
        %821 = vmatmul.mubr.f32.gmra.mrb[0].mxu0 %v737
        %v822 = vpop.f32.mrb[0].mxu0
        %v823 = vadd.f32 0.0, %v822
        %v824 = vpop.f32.mrb[0].mxu0
        %825 = vmatprep.mubr.f32.mxu0 0.0
        %826 = vmatmul.mubr.f32.gmra.mrb[0].mxu0 %v738
        %v827 = vpop.f32.mrb[0].mxu0
        %v828 = vadd.f32 0.0, %v827
        %v829 = vpop.f32.mrb[0].mxu0
        %830 = vdwg.mxu0
        %v831 = vadd.f32 %v735, %v823
        %v832 = vadd.f32 %v736, %v828
        %v833 = vtanh.pop %v831
        %v834 = vtanh.pop %v832
        %835 = vst [vmem:[#allocation2 + $0x8] sm:$0xff] %v833
        %836 = vst [vmem:[#allocation2 + $0x10] sm:$0xff] %v834
        %v837 = vld [vmem:[%s4] sm:$0x1]
        %v839 = vlaneseq
        %v840 = vshrl.u32 %v839, 7
        %v841 = vsub.s32 0, %v840
        %v842 = vrot.slane %v837, %v841
        %v844 = vld [vmem:[#allocation2 + $0x6] sm:$0xff]
        %v845 = vld [vmem:[#allocation2 + $0xe] sm:$0xff]
        %v846 = vld [vmem:[#allocation8] sm:$0xff]
        %v847 = vld [vmem:[#allocation8 + $0x8] sm:$0xff]
        %v848 = vld [vmem:[#allocation8 + $0x10] sm:$0xff]
        %v849 = vld [vmem:[#allocation8 + $0x18] sm:$0xff]
        %v850 = vld [vmem:[#allocation8 + $0x20] sm:$0xff]
        %v851 = vld [vmem:[#allocation8 + $0x28] sm:$0xff]
        %v852 = vld [vmem:[#allocation8 + $0x30] sm:$0xff]
        %v853 = vld [vmem:[#allocation8 + $0x38] sm:$0xff]
        %v854 = vld [vmem:[#allocation8 + $0x40] sm:$0xff]
        %v855 = vld [vmem:[#allocation8 + $0x48] sm:$0xff]
        %v856 = vld [vmem:[#allocation8 + $0x50] sm:$0xff]
        %v857 = vld [vmem:[#allocation8 + $0x58] sm:$0xff]
        %v858 = vld [vmem:[#allocation8 + $0x60] sm:$0xff]
        %v859 = vld [vmem:[#allocation8 + $0x68] sm:$0xff]
        %v860 = vld [vmem:[#allocation8 + $0x70] sm:$0xff]
        %v861 = vld [vmem:[#allocation8 + $0x78] sm:$0xff]
        %862 = vmatprep.subr.mxu0 0.0
        %863 = vmatpush1.msra.mxu0 %v846
        %864 = vmatprep.subr.mxu0 0.0
        %865 = vmatpush1.msra.mxu0 %v847
        %866 = vmatprep.subr.mxu0 0.0
        %867 = vmatpush1.msra.mxu0 %v848
        %868 = vmatprep.subr.mxu0 0.0
        %869 = vmatpush1.msra.mxu0 %v849
        %870 = vmatprep.subr.mxu0 0.0
        %871 = vmatpush1.msra.mxu0 %v850
        %872 = vmatprep.subr.mxu0 0.0
        %873 = vmatpush1.msra.mxu0 %v851
        %874 = vmatprep.subr.mxu0 0.0
        %875 = vmatpush1.msra.mxu0 %v852
        %876 = vmatprep.subr.mxu0 0.0
        %877 = vmatpush1.msra.mxu0 %v853
        %878 = vmatprep.subr.mxu0 0.0
        %879 = vmatpush1.msra.mxu0 %v854
        %880 = vmatprep.subr.mxu0 0.0
        %881 = vmatpush1.msra.mxu0 %v855
        %882 = vmatprep.subr.mxu0 0.0
        %883 = vmatpush1.msra.mxu0 %v856
        %884 = vmatprep.subr.mxu0 0.0
        %885 = vmatpush1.msra.mxu0 %v857
        %886 = vmatprep.subr.mxu0 0.0
        %887 = vmatpush1.msra.mxu0 %v858
        %888 = vmatprep.subr.mxu0 0.0
        %889 = vmatpush1.msra.mxu0 %v859
        %890 = vmatprep.subr.mxu0 0.0
        %891 = vmatpush1.msra.mxu0 %v860
        %892 = vmatprep.subr.mxu0 0.0
        %893 = vmatpush1.msra.mxu0 %v861
        %894 = vmatprep.subr.mxu0 0.0
        %895 = vmatpush1.msra.mxu0 0.0
        %896 = vmatprep.subr.mxu0 0.0
        %897 = vmatpush1.msra.mxu0 0.0
        %898 = vmatprep.subr.mxu0 0.0
        %899 = vmatpush1.msra.mxu0 0.0
        %900 = vmatprep.subr.mxu0 0.0
        %901 = vmatpush1.msra.mxu0 0.0
        %902 = vmatprep.subr.mxu0 0.0
        %903 = vmatpush1.msra.mxu0 0.0
        %904 = vmatprep.subr.mxu0 0.0
        %905 = vmatpush1.msra.mxu0 0.0
        %906 = vmatprep.subr.mxu0 0.0
        %907 = vmatpush1.msra.mxu0 0.0
        %908 = vmatprep.subr.mxu0 0.0
        %909 = vmatpush1.msra.mxu0 0.0
        %910 = vmatprep.subr.mxu0 0.0
        %911 = vmatpush1.msra.mxu0 0.0
        %912 = vmatprep.subr.mxu0 0.0
        %913 = vmatpush1.msra.mxu0 0.0
        %914 = vmatprep.subr.mxu0 0.0
        %915 = vmatpush1.msra.mxu0 0.0
        %916 = vmatprep.subr.mxu0 0.0
        %917 = vmatpush1.msra.mxu0 0.0
        %918 = vmatprep.subr.mxu0 0.0
        %919 = vmatpush1.msra.mxu0 0.0
        %920 = vmatprep.subr.mxu0 0.0
        %921 = vmatpush1.msra.mxu0 0.0
        %922 = vmatprep.subr.mxu0 0.0
        %923 = vmatpush1.msra.mxu0 0.0
        %924 = vmatprep.subr.mxu0 0.0
        %925 = vmatpush1.msra.mxu0 0.0
        %926 = vmatprep.mubr.f32.mxu0 0.0
        %927 = vmatmul.mubr.f32.gmra.mrb[0].mxu0 %v844
        %v928 = vpop.f32.mrb[0].mxu0
        %v929 = vadd.f32 0.0, %v928
        %v930 = vpop.f32.mrb[0].mxu0
        %931 = vmatprep.mubr.f32.mxu0 0.0
        %932 = vmatmul.mubr.f32.gmra.mrb[0].mxu0 %v845
        %v933 = vpop.f32.mrb[0].mxu0
        %v934 = vadd.f32 0.0, %v933
        %v935 = vpop.f32.mrb[0].mxu0
        %936 = vdwg.mxu0
        %v937 = vadd.f32 %v842, %v929
        %v938 = vadd.f32 %v842, %v934
        %v939 = vld [vmem:[#allocation2 + $0x7] sm:$0xff]
        %v940 = vld [vmem:[#allocation2 + $0xf] sm:$0xff]
        %s941 = scalar_lea.vmem [#allocation8], 128
        %v942 = vld [vmem:[%s941] sm:$0xff]
        %v943 = vld [vmem:[%s941 + $0x8] sm:$0xff]
        %v944 = vld [vmem:[%s941 + $0x10] sm:$0xff]
        %v945 = vld [vmem:[%s941 + $0x18] sm:$0xff]
        %v946 = vld [vmem:[%s941 + $0x20] sm:$0xff]
        %v947 = vld [vmem:[%s941 + $0x28] sm:$0xff]
        %v948 = vld [vmem:[%s941 + $0x30] sm:$0xff]
        %v949 = vld [vmem:[%s941 + $0x38] sm:$0xff]
        %v950 = vld [vmem:[%s941 + $0x40] sm:$0xff]
        %v951 = vld [vmem:[%s941 + $0x48] sm:$0xff]
        %v952 = vld [vmem:[%s941 + $0x50] sm:$0xff]
        %v953 = vld [vmem:[%s941 + $0x58] sm:$0xff]
        %v954 = vld [vmem:[%s941 + $0x60] sm:$0xff]
        %v955 = vld [vmem:[%s941 + $0x68] sm:$0xff]
        %v956 = vld [vmem:[%s941 + $0x70] sm:$0xff]
        %v957 = vld [vmem:[%s941 + $0x78] sm:$0xff]
        %958 = vmatprep.subr.mxu0 0.0
        %959 = vmatpush1.msra.mxu0 %v942
        %960 = vmatprep.subr.mxu0 0.0
        %961 = vmatpush1.msra.mxu0 %v943
        %962 = vmatprep.subr.mxu0 0.0
        %963 = vmatpush1.msra.mxu0 %v944
        %964 = vmatprep.subr.mxu0 0.0
        %965 = vmatpush1.msra.mxu0 %v945
        %966 = vmatprep.subr.mxu0 0.0
        %967 = vmatpush1.msra.mxu0 %v946
        %968 = vmatprep.subr.mxu0 0.0
        %969 = vmatpush1.msra.mxu0 %v947
        %970 = vmatprep.subr.mxu0 0.0
        %971 = vmatpush1.msra.mxu0 %v948
        %972 = vmatprep.subr.mxu0 0.0
        %973 = vmatpush1.msra.mxu0 %v949
        %974 = vmatprep.subr.mxu0 0.0
        %975 = vmatpush1.msra.mxu0 %v950
        %976 = vmatprep.subr.mxu0 0.0
        %977 = vmatpush1.msra.mxu0 %v951
        %978 = vmatprep.subr.mxu0 0.0
        %979 = vmatpush1.msra.mxu0 %v952
        %980 = vmatprep.subr.mxu0 0.0
        %981 = vmatpush1.msra.mxu0 %v953
        %982 = vmatprep.subr.mxu0 0.0
        %983 = vmatpush1.msra.mxu0 %v954
        %984 = vmatprep.subr.mxu0 0.0
        %985 = vmatpush1.msra.mxu0 %v955
        %986 = vmatprep.subr.mxu0 0.0
        %987 = vmatpush1.msra.mxu0 %v956
        %988 = vmatprep.subr.mxu0 0.0
        %989 = vmatpush1.msra.mxu0 %v957
        %990 = vmatprep.subr.mxu0 0.0
        %991 = vmatpush1.msra.mxu0 0.0
        %992 = vmatprep.subr.mxu0 0.0
        %993 = vmatpush1.msra.mxu0 0.0
        %994 = vmatprep.subr.mxu0 0.0
        %995 = vmatpush1.msra.mxu0 0.0
        %996 = vmatprep.subr.mxu0 0.0
        %997 = vmatpush1.msra.mxu0 0.0
        %998 = vmatprep.subr.mxu0 0.0
        %999 = vmatpush1.msra.mxu0 0.0
        %1000 = vmatprep.subr.mxu0 0.0
        %1001 = vmatpush1.msra.mxu0 0.0
        %1002 = vmatprep.subr.mxu0 0.0
        %1003 = vmatpush1.msra.mxu0 0.0
        %1004 = vmatprep.subr.mxu0 0.0
        %1005 = vmatpush1.msra.mxu0 0.0
        %1006 = vmatprep.subr.mxu0 0.0
        %1007 = vmatpush1.msra.mxu0 0.0
        %1008 = vmatprep.subr.mxu0 0.0
        %1009 = vmatpush1.msra.mxu0 0.0
        %1010 = vmatprep.subr.mxu0 0.0
        %1011 = vmatpush1.msra.mxu0 0.0
        %1012 = vmatprep.subr.mxu0 0.0
        %1013 = vmatpush1.msra.mxu0 0.0
        %1014 = vmatprep.subr.mxu0 0.0
        %1015 = vmatpush1.msra.mxu0 0.0
        %1016 = vmatprep.subr.mxu0 0.0
        %1017 = vmatpush1.msra.mxu0 0.0
        %1018 = vmatprep.subr.mxu0 0.0
        %1019 = vmatpush1.msra.mxu0 0.0
        %1020 = vmatprep.subr.mxu0 0.0
        %1021 = vmatpush1.msra.mxu0 0.0
        %1022 = vmatprep.mubr.f32.mxu0 0.0
        %1023 = vmatmul.mubr.f32.gmra.mrb[0].mxu0 %v939
        %v1024 = vpop.f32.mrb[0].mxu0
        %v1025 = vadd.f32 0.0, %v1024
        %v1026 = vpop.f32.mrb[0].mxu0
        %1027 = vmatprep.mubr.f32.mxu0 0.0
        %1028 = vmatmul.mubr.f32.gmra.mrb[0].mxu0 %v940
        %v1029 = vpop.f32.mrb[0].mxu0
        %v1030 = vadd.f32 0.0, %v1029
        %v1031 = vpop.f32.mrb[0].mxu0
        %1032 = vdwg.mxu0
        %v1033 = vadd.f32 %v937, %v1025
        %v1034 = vadd.f32 %v938, %v1030
        %v1035 = vld [vmem:[#allocation2 + $0x8] sm:$0xff]
        %v1036 = vld [vmem:[#allocation2 + $0x10] sm:$0xff]
        %s1037 = scalar_lea.vmem [#allocation8], 256
        %v1038 = vld [vmem:[%s1037] sm:$0xff]
        %v1039 = vld [vmem:[%s1037 + $0x8] sm:$0xff]
        %v1040 = vld [vmem:[%s1037 + $0x10] sm:$0xff]
        %v1041 = vld [vmem:[%s1037 + $0x18] sm:$0xff]
        %v1042 = vld [vmem:[%s1037 + $0x20] sm:$0xff]
        %v1043 = vld [vmem:[%s1037 + $0x28] sm:$0xff]
        %v1044 = vld [vmem:[%s1037 + $0x30] sm:$0xff]
        %v1045 = vld [vmem:[%s1037 + $0x38] sm:$0xff]
        %v1046 = vld [vmem:[%s1037 + $0x40] sm:$0xff]
        %v1047 = vld [vmem:[%s1037 + $0x48] sm:$0xff]
        %v1048 = vld [vmem:[%s1037 + $0x50] sm:$0xff]
        %v1049 = vld [vmem:[%s1037 + $0x58] sm:$0xff]
        %v1050 = vld [vmem:[%s1037 + $0x60] sm:$0xff]
        %v1051 = vld [vmem:[%s1037 + $0x68] sm:$0xff]
        %v1052 = vld [vmem:[%s1037 + $0x70] sm:$0xff]
        %v1053 = vld [vmem:[%s1037 + $0x78] sm:$0xff]
        %1054 = vmatprep.subr.mxu0 0.0
        %1055 = vmatpush1.msra.mxu0 %v1038
        %1056 = vmatprep.subr.mxu0 0.0
        %1057 = vmatpush1.msra.mxu0 %v1039
        %1058 = vmatprep.subr.mxu0 0.0
        %1059 = vmatpush1.msra.mxu0 %v1040
        %1060 = vmatprep.subr.mxu0 0.0
        %1061 = vmatpush1.msra.mxu0 %v1041
        %1062 = vmatprep.subr.mxu0 0.0
        %1063 = vmatpush1.msra.mxu0 %v1042
        %1064 = vmatprep.subr.mxu0 0.0
        %1065 = vmatpush1.msra.mxu0 %v1043
        %1066 = vmatprep.subr.mxu0 0.0
        %1067 = vmatpush1.msra.mxu0 %v1044
        %1068 = vmatprep.subr.mxu0 0.0
        %1069 = vmatpush1.msra.mxu0 %v1045
        %1070 = vmatprep.subr.mxu0 0.0
        %1071 = vmatpush1.msra.mxu0 %v1046
        %1072 = vmatprep.subr.mxu0 0.0
        %1073 = vmatpush1.msra.mxu0 %v1047
        %1074 = vmatprep.subr.mxu0 0.0
        %1075 = vmatpush1.msra.mxu0 %v1048
        %1076 = vmatprep.subr.mxu0 0.0
        %1077 = vmatpush1.msra.mxu0 %v1049
        %1078 = vmatprep.subr.mxu0 0.0
        %1079 = vmatpush1.msra.mxu0 %v1050
        %1080 = vmatprep.subr.mxu0 0.0
        %1081 = vmatpush1.msra.mxu0 %v1051
        %1082 = vmatprep.subr.mxu0 0.0
        %1083 = vmatpush1.msra.mxu0 %v1052
        %1084 = vmatprep.subr.mxu0 0.0
        %1085 = vmatpush1.msra.mxu0 %v1053
        %1086 = vmatprep.subr.mxu0 0.0
        %1087 = vmatpush1.msra.mxu0 0.0
        %1088 = vmatprep.subr.mxu0 0.0
        %1089 = vmatpush1.msra.mxu0 0.0
        %1090 = vmatprep.subr.mxu0 0.0
        %1091 = vmatpush1.msra.mxu0 0.0
        %1092 = vmatprep.subr.mxu0 0.0
        %1093 = vmatpush1.msra.mxu0 0.0
        %1094 = vmatprep.subr.mxu0 0.0
        %1095 = vmatpush1.msra.mxu0 0.0
        %1096 = vmatprep.subr.mxu0 0.0
        %1097 = vmatpush1.msra.mxu0 0.0
        %1098 = vmatprep.subr.mxu0 0.0
        %1099 = vmatpush1.msra.mxu0 0.0
        %1100 = vmatprep.subr.mxu0 0.0
        %1101 = vmatpush1.msra.mxu0 0.0
        %1102 = vmatprep.subr.mxu0 0.0
        %1103 = vmatpush1.msra.mxu0 0.0
        %1104 = vmatprep.subr.mxu0 0.0
        %1105 = vmatpush1.msra.mxu0 0.0
        %1106 = vmatprep.subr.mxu0 0.0
        %1107 = vmatpush1.msra.mxu0 0.0
        %1108 = vmatprep.subr.mxu0 0.0
        %1109 = vmatpush1.msra.mxu0 0.0
        %1110 = vmatprep.subr.mxu0 0.0
        %1111 = vmatpush1.msra.mxu0 0.0
        %1112 = vmatprep.subr.mxu0 0.0
        %1113 = vmatpush1.msra.mxu0 0.0
        %1114 = vmatprep.subr.mxu0 0.0
        %1115 = vmatpush1.msra.mxu0 0.0
        %1116 = vmatprep.subr.mxu0 0.0
        %1117 = vmatpush1.msra.mxu0 0.0
        %1118 = vmatprep.mubr.f32.mxu0 0.0
        %1119 = vmatmul.mubr.f32.gmra.mrb[0].mxu0 %v1035
        %v1120 = vpop.f32.mrb[0].mxu0
        %v1121 = vadd.f32 0.0, %v1120
        %v1122 = vpop.f32.mrb[0].mxu0
        %1123 = vmatprep.mubr.f32.mxu0 0.0
        %1124 = vmatmul.mubr.f32.gmra.mrb[0].mxu0 %v1036
        %v1125 = vpop.f32.mrb[0].mxu0
        %v1126 = vadd.f32 0.0, %v1125
        %v1127 = vpop.f32.mrb[0].mxu0
        %1128 = vdwg.mxu0
        %v1129 = vadd.f32 %v1033, %v1121
        %v1130 = vadd.f32 %v1034, %v1126
        %v1131 = vld [vmem:[#allocation2 + $0x9] sm:$0xff]
        %v1132 = vld [vmem:[#allocation2 + $0x11] sm:$0xff]
        %s1133 = scalar_lea.vmem [#allocation8], 384
        %v1134 = vld [vmem:[%s1133] sm:$0xff]
        %v1135 = vld [vmem:[%s1133 + $0x8] sm:$0xff]
        %v1136 = vld [vmem:[%s1133 + $0x10] sm:$0xff]
        %v1137 = vld [vmem:[%s1133 + $0x18] sm:$0xff]
        %v1138 = vld [vmem:[%s1133 + $0x20] sm:$0xff]
        %v1139 = vld [vmem:[%s1133 + $0x28] sm:$0xff]
        %v1140 = vld [vmem:[%s1133 + $0x30] sm:$0xff]
        %v1141 = vld [vmem:[%s1133 + $0x38] sm:$0xff]
        %v1142 = vld [vmem:[%s1133 + $0x40] sm:$0xff]
        %v1143 = vld [vmem:[%s1133 + $0x48] sm:$0xff]
        %v1144 = vld [vmem:[%s1133 + $0x50] sm:$0xff]
        %v1145 = vld [vmem:[%s1133 + $0x58] sm:$0xff]
        %v1146 = vld [vmem:[%s1133 + $0x60] sm:$0xff]
        %v1147 = vld [vmem:[%s1133 + $0x68] sm:$0xff]
        %v1148 = vld [vmem:[%s1133 + $0x70] sm:$0xff]
        %v1149 = vld [vmem:[%s1133 + $0x78] sm:$0xff]
        %1150 = vmatprep.subr.mxu0 0.0
        %1151 = vmatpush1.msra.mxu0 %v1134
        %1152 = vmatprep.subr.mxu0 0.0
        %1153 = vmatpush1.msra.mxu0 %v1135
        %1154 = vmatprep.subr.mxu0 0.0
        %1155 = vmatpush1.msra.mxu0 %v1136
        %1156 = vmatprep.subr.mxu0 0.0
        %1157 = vmatpush1.msra.mxu0 %v1137
        %1158 = vmatprep.subr.mxu0 0.0
        %1159 = vmatpush1.msra.mxu0 %v1138
        %1160 = vmatprep.subr.mxu0 0.0
        %1161 = vmatpush1.msra.mxu0 %v1139
        %1162 = vmatprep.subr.mxu0 0.0
        %1163 = vmatpush1.msra.mxu0 %v1140
        %1164 = vmatprep.subr.mxu0 0.0
        %1165 = vmatpush1.msra.mxu0 %v1141
        %1166 = vmatprep.subr.mxu0 0.0
        %1167 = vmatpush1.msra.mxu0 %v1142
        %1168 = vmatprep.subr.mxu0 0.0
        %1169 = vmatpush1.msra.mxu0 %v1143
        %1170 = vmatprep.subr.mxu0 0.0
        %1171 = vmatpush1.msra.mxu0 %v1144
        %1172 = vmatprep.subr.mxu0 0.0
        %1173 = vmatpush1.msra.mxu0 %v1145
        %1174 = vmatprep.subr.mxu0 0.0
        %1175 = vmatpush1.msra.mxu0 %v1146
        %1176 = vmatprep.subr.mxu0 0.0
        %1177 = vmatpush1.msra.mxu0 %v1147
        %1178 = vmatprep.subr.mxu0 0.0
        %1179 = vmatpush1.msra.mxu0 %v1148
        %1180 = vmatprep.subr.mxu0 0.0
        %1181 = vmatpush1.msra.mxu0 %v1149
        %1182 = vmatprep.subr.mxu0 0.0
        %1183 = vmatpush1.msra.mxu0 0.0
        %1184 = vmatprep.subr.mxu0 0.0
        %1185 = vmatpush1.msra.mxu0 0.0
        %1186 = vmatprep.subr.mxu0 0.0
        %1187 = vmatpush1.msra.mxu0 0.0
        %1188 = vmatprep.subr.mxu0 0.0
        %1189 = vmatpush1.msra.mxu0 0.0
        %1190 = vmatprep.subr.mxu0 0.0
        %1191 = vmatpush1.msra.mxu0 0.0
        %1192 = vmatprep.subr.mxu0 0.0
        %1193 = vmatpush1.msra.mxu0 0.0
        %1194 = vmatprep.subr.mxu0 0.0
        %1195 = vmatpush1.msra.mxu0 0.0
        %1196 = vmatprep.subr.mxu0 0.0
        %1197 = vmatpush1.msra.mxu0 0.0
        %1198 = vmatprep.subr.mxu0 0.0
        %1199 = vmatpush1.msra.mxu0 0.0
        %1200 = vmatprep.subr.mxu0 0.0
        %1201 = vmatpush1.msra.mxu0 0.0
        %1202 = vmatprep.subr.mxu0 0.0
        %1203 = vmatpush1.msra.mxu0 0.0
        %1204 = vmatprep.subr.mxu0 0.0
        %1205 = vmatpush1.msra.mxu0 0.0
        %1206 = vmatprep.subr.mxu0 0.0
        %1207 = vmatpush1.msra.mxu0 0.0
        %1208 = vmatprep.subr.mxu0 0.0
        %1209 = vmatpush1.msra.mxu0 0.0
        %1210 = vmatprep.subr.mxu0 0.0
        %1211 = vmatpush1.msra.mxu0 0.0
        %1212 = vmatprep.subr.mxu0 0.0
        %1213 = vmatpush1.msra.mxu0 0.0
        %1214 = vmatprep.mubr.f32.mxu0 0.0
        %1215 = vmatmul.mubr.f32.gmra.mrb[0].mxu0 %v1131
        %v1216 = vpop.f32.mrb[0].mxu0
        %v1217 = vadd.f32 0.0, %v1216
        %v1218 = vpop.f32.mrb[0].mxu0
        %1219 = vmatprep.mubr.f32.mxu0 0.0
        %1220 = vmatmul.mubr.f32.gmra.mrb[0].mxu0 %v1132
        %v1221 = vpop.f32.mrb[0].mxu0
        %v1222 = vadd.f32 0.0, %v1221
        %v1223 = vpop.f32.mrb[0].mxu0
        %1224 = vdwg.mxu0
        %v1225 = vadd.f32 %v1129, %v1217
        %v1226 = vadd.f32 %v1130, %v1222
        %v1227 = vld [vmem:[#allocation2 + $0xa] sm:$0xff]
        %v1228 = vld [vmem:[#allocation2 + $0x12] sm:$0xff]
        %s1229 = scalar_lea.vmem [#allocation8], 512
        %v1230 = vld [vmem:[%s1229] sm:$0xff]
        %v1231 = vld [vmem:[%s1229 + $0x8] sm:$0xff]
        %v1232 = vld [vmem:[%s1229 + $0x10] sm:$0xff]
        %v1233 = vld [vmem:[%s1229 + $0x18] sm:$0xff]
        %v1234 = vld [vmem:[%s1229 + $0x20] sm:$0xff]
        %v1235 = vld [vmem:[%s1229 + $0x28] sm:$0xff]
        %v1236 = vld [vmem:[%s1229 + $0x30] sm:$0xff]
        %v1237 = vld [vmem:[%s1229 + $0x38] sm:$0xff]
        %v1238 = vld [vmem:[%s1229 + $0x40] sm:$0xff]
        %v1239 = vld [vmem:[%s1229 + $0x48] sm:$0xff]
        %v1240 = vld [vmem:[%s1229 + $0x50] sm:$0xff]
        %v1241 = vld [vmem:[%s1229 + $0x58] sm:$0xff]
        %v1242 = vld [vmem:[%s1229 + $0x60] sm:$0xff]
        %v1243 = vld [vmem:[%s1229 + $0x68] sm:$0xff]
        %v1244 = vld [vmem:[%s1229 + $0x70] sm:$0xff]
        %v1245 = vld [vmem:[%s1229 + $0x78] sm:$0xff]
        %1246 = vmatprep.subr.mxu0 0.0
        %1247 = vmatpush1.msra.mxu0 %v1230
        %1248 = vmatprep.subr.mxu0 0.0
        %1249 = vmatpush1.msra.mxu0 %v1231
        %1250 = vmatprep.subr.mxu0 0.0
        %1251 = vmatpush1.msra.mxu0 %v1232
        %1252 = vmatprep.subr.mxu0 0.0
        %1253 = vmatpush1.msra.mxu0 %v1233
        %1254 = vmatprep.subr.mxu0 0.0
        %1255 = vmatpush1.msra.mxu0 %v1234
        %1256 = vmatprep.subr.mxu0 0.0
        %1257 = vmatpush1.msra.mxu0 %v1235
        %1258 = vmatprep.subr.mxu0 0.0
        %1259 = vmatpush1.msra.mxu0 %v1236
        %1260 = vmatprep.subr.mxu0 0.0
        %1261 = vmatpush1.msra.mxu0 %v1237
        %1262 = vmatprep.subr.mxu0 0.0
        %1263 = vmatpush1.msra.mxu0 %v1238
        %1264 = vmatprep.subr.mxu0 0.0
        %1265 = vmatpush1.msra.mxu0 %v1239
        %1266 = vmatprep.subr.mxu0 0.0
        %1267 = vmatpush1.msra.mxu0 %v1240
        %1268 = vmatprep.subr.mxu0 0.0
        %1269 = vmatpush1.msra.mxu0 %v1241
        %1270 = vmatprep.subr.mxu0 0.0
        %1271 = vmatpush1.msra.mxu0 %v1242
        %1272 = vmatprep.subr.mxu0 0.0
        %1273 = vmatpush1.msra.mxu0 %v1243
        %1274 = vmatprep.subr.mxu0 0.0
        %1275 = vmatpush1.msra.mxu0 %v1244
        %1276 = vmatprep.subr.mxu0 0.0
        %1277 = vmatpush1.msra.mxu0 %v1245
        %1278 = vmatprep.subr.mxu0 0.0
        %1279 = vmatpush1.msra.mxu0 0.0
        %1280 = vmatprep.subr.mxu0 0.0
        %1281 = vmatpush1.msra.mxu0 0.0
        %1282 = vmatprep.subr.mxu0 0.0
        %1283 = vmatpush1.msra.mxu0 0.0
        %1284 = vmatprep.subr.mxu0 0.0
        %1285 = vmatpush1.msra.mxu0 0.0
        %1286 = vmatprep.subr.mxu0 0.0
        %1287 = vmatpush1.msra.mxu0 0.0
        %1288 = vmatprep.subr.mxu0 0.0
        %1289 = vmatpush1.msra.mxu0 0.0
        %1290 = vmatprep.subr.mxu0 0.0
        %1291 = vmatpush1.msra.mxu0 0.0
        %1292 = vmatprep.subr.mxu0 0.0
        %1293 = vmatpush1.msra.mxu0 0.0
        %1294 = vmatprep.subr.mxu0 0.0
        %1295 = vmatpush1.msra.mxu0 0.0
        %1296 = vmatprep.subr.mxu0 0.0
        %1297 = vmatpush1.msra.mxu0 0.0
        %1298 = vmatprep.subr.mxu0 0.0
        %1299 = vmatpush1.msra.mxu0 0.0
        %1300 = vmatprep.subr.mxu0 0.0
        %1301 = vmatpush1.msra.mxu0 0.0
        %1302 = vmatprep.subr.mxu0 0.0
        %1303 = vmatpush1.msra.mxu0 0.0
        %1304 = vmatprep.subr.mxu0 0.0
        %1305 = vmatpush1.msra.mxu0 0.0
        %1306 = vmatprep.subr.mxu0 0.0
        %1307 = vmatpush1.msra.mxu0 0.0
        %1308 = vmatprep.subr.mxu0 0.0
        %1309 = vmatpush1.msra.mxu0 0.0
        %1310 = vmatprep.mubr.f32.mxu0 0.0
        %1311 = vmatmul.mubr.f32.gmra.mrb[0].mxu0 %v1227
        %v1312 = vpop.f32.mrb[0].mxu0
        %v1313 = vadd.f32 0.0, %v1312
        %v1314 = vpop.f32.mrb[0].mxu0
        %1315 = vmatprep.mubr.f32.mxu0 0.0
        %1316 = vmatmul.mubr.f32.gmra.mrb[0].mxu0 %v1228
        %v1317 = vpop.f32.mrb[0].mxu0
        %v1318 = vadd.f32 0.0, %v1317
        %v1319 = vpop.f32.mrb[0].mxu0
        %1320 = vdwg.mxu0
        %v1321 = vadd.f32 %v1225, %v1313
        %v1322 = vadd.f32 %v1226, %v1318
        %v1323 = vtanh.pop %v1321
        %v1324 = vtanh.pop %v1322
        %1325 = vst [vmem:[#allocation2 + $0x8] sm:$0xff] %v1323
        %1326 = vst [vmem:[#allocation2 + $0x10] sm:$0xff] %v1324
        %v1327 = vld [vmem:[%s6] sm:$0x1]
        %v1329 = vlaneseq
        %v1330 = vshrl.u32 %v1329, 7
        %v1331 = vsub.s32 0, %v1330
        %v1332 = vrot.slane %v1327, %v1331
        %v1334 = vld [vmem:[#allocation2 + $0x6] sm:$0xff]
        %v1335 = vld [vmem:[#allocation2 + $0xe] sm:$0xff]
        %v1336 = vld [vmem:[#allocation9] sm:$0xff]
        %v1337 = vld [vmem:[#allocation9 + $0x8] sm:$0xff]
        %v1338 = vld [vmem:[#allocation9 + $0x10] sm:$0xff]
        %v1339 = vld [vmem:[#allocation9 + $0x18] sm:$0xff]
        %v1340 = vld [vmem:[#allocation9 + $0x20] sm:$0xff]
        %v1341 = vld [vmem:[#allocation9 + $0x28] sm:$0xff]
        %v1342 = vld [vmem:[#allocation9 + $0x30] sm:$0xff]
        %v1343 = vld [vmem:[#allocation9 + $0x38] sm:$0xff]
        %v1344 = vld [vmem:[#allocation9 + $0x40] sm:$0xff]
        %v1345 = vld [vmem:[#allocation9 + $0x48] sm:$0xff]
        %v1346 = vld [vmem:[#allocation9 + $0x50] sm:$0xff]
        %v1347 = vld [vmem:[#allocation9 + $0x58] sm:$0xff]
        %v1348 = vld [vmem:[#allocation9 + $0x60] sm:$0xff]
        %v1349 = vld [vmem:[#allocation9 + $0x68] sm:$0xff]
        %v1350 = vld [vmem:[#allocation9 + $0x70] sm:$0xff]
        %v1351 = vld [vmem:[#allocation9 + $0x78] sm:$0xff]
        %1352 = vmatprep.subr.mxu0 0.0
        %1353 = vmatpush1.msra.mxu0 %v1336
        %1354 = vmatprep.subr.mxu0 0.0
        %1355 = vmatpush1.msra.mxu0 %v1337
        %1356 = vmatprep.subr.mxu0 0.0
        %1357 = vmatpush1.msra.mxu0 %v1338
        %1358 = vmatprep.subr.mxu0 0.0
        %1359 = vmatpush1.msra.mxu0 %v1339
        %1360 = vmatprep.subr.mxu0 0.0
        %1361 = vmatpush1.msra.mxu0 %v1340
        %1362 = vmatprep.subr.mxu0 0.0
        %1363 = vmatpush1.msra.mxu0 %v1341
        %1364 = vmatprep.subr.mxu0 0.0
        %1365 = vmatpush1.msra.mxu0 %v1342
        %1366 = vmatprep.subr.mxu0 0.0
        %1367 = vmatpush1.msra.mxu0 %v1343
        %1368 = vmatprep.subr.mxu0 0.0
        %1369 = vmatpush1.msra.mxu0 %v1344
        %1370 = vmatprep.subr.mxu0 0.0
        %1371 = vmatpush1.msra.mxu0 %v1345
        %1372 = vmatprep.subr.mxu0 0.0
        %1373 = vmatpush1.msra.mxu0 %v1346
        %1374 = vmatprep.subr.mxu0 0.0
        %1375 = vmatpush1.msra.mxu0 %v1347
        %1376 = vmatprep.subr.mxu0 0.0
        %1377 = vmatpush1.msra.mxu0 %v1348
        %1378 = vmatprep.subr.mxu0 0.0
        %1379 = vmatpush1.msra.mxu0 %v1349
        %1380 = vmatprep.subr.mxu0 0.0
        %1381 = vmatpush1.msra.mxu0 %v1350
        %1382 = vmatprep.subr.mxu0 0.0
        %1383 = vmatpush1.msra.mxu0 %v1351
        %1384 = vmatprep.subr.mxu0 0.0
        %1385 = vmatpush1.msra.mxu0 0.0
        %1386 = vmatprep.subr.mxu0 0.0
        %1387 = vmatpush1.msra.mxu0 0.0
        %1388 = vmatprep.subr.mxu0 0.0
        %1389 = vmatpush1.msra.mxu0 0.0
        %1390 = vmatprep.subr.mxu0 0.0
        %1391 = vmatpush1.msra.mxu0 0.0
        %1392 = vmatprep.subr.mxu0 0.0
        %1393 = vmatpush1.msra.mxu0 0.0
        %1394 = vmatprep.subr.mxu0 0.0
        %1395 = vmatpush1.msra.mxu0 0.0
        %1396 = vmatprep.subr.mxu0 0.0
        %1397 = vmatpush1.msra.mxu0 0.0
        %1398 = vmatprep.subr.mxu0 0.0
        %1399 = vmatpush1.msra.mxu0 0.0
        %1400 = vmatprep.subr.mxu0 0.0
        %1401 = vmatpush1.msra.mxu0 0.0
        %1402 = vmatprep.subr.mxu0 0.0
        %1403 = vmatpush1.msra.mxu0 0.0
        %1404 = vmatprep.subr.mxu0 0.0
        %1405 = vmatpush1.msra.mxu0 0.0
        %1406 = vmatprep.subr.mxu0 0.0
        %1407 = vmatpush1.msra.mxu0 0.0
        %1408 = vmatprep.subr.mxu0 0.0
        %1409 = vmatpush1.msra.mxu0 0.0
        %1410 = vmatprep.subr.mxu0 0.0
        %1411 = vmatpush1.msra.mxu0 0.0
        %1412 = vmatprep.subr.mxu0 0.0
        %1413 = vmatpush1.msra.mxu0 0.0
        %1414 = vmatprep.subr.mxu0 0.0
        %1415 = vmatpush1.msra.mxu0 0.0
        %1416 = vmatprep.mubr.f32.mxu0 0.0
        %1417 = vmatmul.mubr.f32.gmra.mrb[0].mxu0 %v1334
        %v1418 = vpop.f32.mrb[0].mxu0
        %v1419 = vadd.f32 0.0, %v1418
        %v1420 = vpop.f32.mrb[0].mxu0
        %1421 = vmatprep.mubr.f32.mxu0 0.0
        %1422 = vmatmul.mubr.f32.gmra.mrb[0].mxu0 %v1335
        %v1423 = vpop.f32.mrb[0].mxu0
        %v1424 = vadd.f32 0.0, %v1423
        %v1425 = vpop.f32.mrb[0].mxu0
        %1426 = vdwg.mxu0
        %v1427 = vadd.f32 %v1332, %v1419
        %v1428 = vadd.f32 %v1332, %v1424
        %v1429 = vld [vmem:[#allocation2 + $0x7] sm:$0xff]
        %v1430 = vld [vmem:[#allocation2 + $0xf] sm:$0xff]
        %s1431 = scalar_lea.vmem [#allocation9], 128
        %v1432 = vld [vmem:[%s1431] sm:$0xff]
        %v1433 = vld [vmem:[%s1431 + $0x8] sm:$0xff]
        %v1434 = vld [vmem:[%s1431 + $0x10] sm:$0xff]
        %v1435 = vld [vmem:[%s1431 + $0x18] sm:$0xff]
        %v1436 = vld [vmem:[%s1431 + $0x20] sm:$0xff]
        %v1437 = vld [vmem:[%s1431 + $0x28] sm:$0xff]
        %v1438 = vld [vmem:[%s1431 + $0x30] sm:$0xff]
        %v1439 = vld [vmem:[%s1431 + $0x38] sm:$0xff]
        %v1440 = vld [vmem:[%s1431 + $0x40] sm:$0xff]
        %v1441 = vld [vmem:[%s1431 + $0x48] sm:$0xff]
        %v1442 = vld [vmem:[%s1431 + $0x50] sm:$0xff]
        %v1443 = vld [vmem:[%s1431 + $0x58] sm:$0xff]
        %v1444 = vld [vmem:[%s1431 + $0x60] sm:$0xff]
        %v1445 = vld [vmem:[%s1431 + $0x68] sm:$0xff]
        %v1446 = vld [vmem:[%s1431 + $0x70] sm:$0xff]
        %v1447 = vld [vmem:[%s1431 + $0x78] sm:$0xff]
        %1448 = vmatprep.subr.mxu0 0.0
        %1449 = vmatpush1.msra.mxu0 %v1432
        %1450 = vmatprep.subr.mxu0 0.0
        %1451 = vmatpush1.msra.mxu0 %v1433
        %1452 = vmatprep.subr.mxu0 0.0
        %1453 = vmatpush1.msra.mxu0 %v1434
        %1454 = vmatprep.subr.mxu0 0.0
        %1455 = vmatpush1.msra.mxu0 %v1435
        %1456 = vmatprep.subr.mxu0 0.0
        %1457 = vmatpush1.msra.mxu0 %v1436
        %1458 = vmatprep.subr.mxu0 0.0
        %1459 = vmatpush1.msra.mxu0 %v1437
        %1460 = vmatprep.subr.mxu0 0.0
        %1461 = vmatpush1.msra.mxu0 %v1438
        %1462 = vmatprep.subr.mxu0 0.0
        %1463 = vmatpush1.msra.mxu0 %v1439
        %1464 = vmatprep.subr.mxu0 0.0
        %1465 = vmatpush1.msra.mxu0 %v1440
        %1466 = vmatprep.subr.mxu0 0.0
        %1467 = vmatpush1.msra.mxu0 %v1441
        %1468 = vmatprep.subr.mxu0 0.0
        %1469 = vmatpush1.msra.mxu0 %v1442
        %1470 = vmatprep.subr.mxu0 0.0
        %1471 = vmatpush1.msra.mxu0 %v1443
        %1472 = vmatprep.subr.mxu0 0.0
        %1473 = vmatpush1.msra.mxu0 %v1444
        %1474 = vmatprep.subr.mxu0 0.0
        %1475 = vmatpush1.msra.mxu0 %v1445
        %1476 = vmatprep.subr.mxu0 0.0
        %1477 = vmatpush1.msra.mxu0 %v1446
        %1478 = vmatprep.subr.mxu0 0.0
        %1479 = vmatpush1.msra.mxu0 %v1447
        %1480 = vmatprep.subr.mxu0 0.0
        %1481 = vmatpush1.msra.mxu0 0.0
        %1482 = vmatprep.subr.mxu0 0.0
        %1483 = vmatpush1.msra.mxu0 0.0
        %1484 = vmatprep.subr.mxu0 0.0
        %1485 = vmatpush1.msra.mxu0 0.0
        %1486 = vmatprep.subr.mxu0 0.0
        %1487 = vmatpush1.msra.mxu0 0.0
        %1488 = vmatprep.subr.mxu0 0.0
        %1489 = vmatpush1.msra.mxu0 0.0
        %1490 = vmatprep.subr.mxu0 0.0
        %1491 = vmatpush1.msra.mxu0 0.0
        %1492 = vmatprep.subr.mxu0 0.0
        %1493 = vmatpush1.msra.mxu0 0.0
        %1494 = vmatprep.subr.mxu0 0.0
        %1495 = vmatpush1.msra.mxu0 0.0
        %1496 = vmatprep.subr.mxu0 0.0
        %1497 = vmatpush1.msra.mxu0 0.0
        %1498 = vmatprep.subr.mxu0 0.0
        %1499 = vmatpush1.msra.mxu0 0.0
        %1500 = vmatprep.subr.mxu0 0.0
        %1501 = vmatpush1.msra.mxu0 0.0
        %1502 = vmatprep.subr.mxu0 0.0
        %1503 = vmatpush1.msra.mxu0 0.0
        %1504 = vmatprep.subr.mxu0 0.0
        %1505 = vmatpush1.msra.mxu0 0.0
        %1506 = vmatprep.subr.mxu0 0.0
        %1507 = vmatpush1.msra.mxu0 0.0
        %1508 = vmatprep.subr.mxu0 0.0
        %1509 = vmatpush1.msra.mxu0 0.0
        %1510 = vmatprep.subr.mxu0 0.0
        %1511 = vmatpush1.msra.mxu0 0.0
        %1512 = vmatprep.mubr.f32.mxu0 0.0
        %1513 = vmatmul.mubr.f32.gmra.mrb[0].mxu0 %v1429
        %v1514 = vpop.f32.mrb[0].mxu0
        %v1515 = vadd.f32 0.0, %v1514
        %v1516 = vpop.f32.mrb[0].mxu0
        %1517 = vmatprep.mubr.f32.mxu0 0.0
        %1518 = vmatmul.mubr.f32.gmra.mrb[0].mxu0 %v1430
        %v1519 = vpop.f32.mrb[0].mxu0
        %v1520 = vadd.f32 0.0, %v1519
        %v1521 = vpop.f32.mrb[0].mxu0
        %1522 = vdwg.mxu0
        %v1523 = vadd.f32 %v1427, %v1515
        %v1524 = vadd.f32 %v1428, %v1520
        %v1525 = vld [vmem:[#allocation2 + $0x8] sm:$0xff]
        %v1526 = vld [vmem:[#allocation2 + $0x10] sm:$0xff]
        %s1527 = scalar_lea.vmem [#allocation9], 256
        %v1528 = vld [vmem:[%s1527] sm:$0xff]
        %v1529 = vld [vmem:[%s1527 + $0x8] sm:$0xff]
        %v1530 = vld [vmem:[%s1527 + $0x10] sm:$0xff]
        %v1531 = vld [vmem:[%s1527 + $0x18] sm:$0xff]
        %v1532 = vld [vmem:[%s1527 + $0x20] sm:$0xff]
        %v1533 = vld [vmem:[%s1527 + $0x28] sm:$0xff]
        %v1534 = vld [vmem:[%s1527 + $0x30] sm:$0xff]
        %v1535 = vld [vmem:[%s1527 + $0x38] sm:$0xff]
        %v1536 = vld [vmem:[%s1527 + $0x40] sm:$0xff]
        %v1537 = vld [vmem:[%s1527 + $0x48] sm:$0xff]
        %v1538 = vld [vmem:[%s1527 + $0x50] sm:$0xff]
        %v1539 = vld [vmem:[%s1527 + $0x58] sm:$0xff]
        %v1540 = vld [vmem:[%s1527 + $0x60] sm:$0xff]
        %v1541 = vld [vmem:[%s1527 + $0x68] sm:$0xff]
        %v1542 = vld [vmem:[%s1527 + $0x70] sm:$0xff]
        %v1543 = vld [vmem:[%s1527 + $0x78] sm:$0xff]
        %1544 = vmatprep.subr.mxu0 0.0
        %1545 = vmatpush1.msra.mxu0 %v1528
        %1546 = vmatprep.subr.mxu0 0.0
        %1547 = vmatpush1.msra.mxu0 %v1529
        %1548 = vmatprep.subr.mxu0 0.0
        %1549 = vmatpush1.msra.mxu0 %v1530
        %1550 = vmatprep.subr.mxu0 0.0
        %1551 = vmatpush1.msra.mxu0 %v1531
        %1552 = vmatprep.subr.mxu0 0.0
        %1553 = vmatpush1.msra.mxu0 %v1532
        %1554 = vmatprep.subr.mxu0 0.0
        %1555 = vmatpush1.msra.mxu0 %v1533
        %1556 = vmatprep.subr.mxu0 0.0
        %1557 = vmatpush1.msra.mxu0 %v1534
        %1558 = vmatprep.subr.mxu0 0.0
        %1559 = vmatpush1.msra.mxu0 %v1535
        %1560 = vmatprep.subr.mxu0 0.0
        %1561 = vmatpush1.msra.mxu0 %v1536
        %1562 = vmatprep.subr.mxu0 0.0
        %1563 = vmatpush1.msra.mxu0 %v1537
        %1564 = vmatprep.subr.mxu0 0.0
        %1565 = vmatpush1.msra.mxu0 %v1538
        %1566 = vmatprep.subr.mxu0 0.0
        %1567 = vmatpush1.msra.mxu0 %v1539
        %1568 = vmatprep.subr.mxu0 0.0
        %1569 = vmatpush1.msra.mxu0 %v1540
        %1570 = vmatprep.subr.mxu0 0.0
        %1571 = vmatpush1.msra.mxu0 %v1541
        %1572 = vmatprep.subr.mxu0 0.0
        %1573 = vmatpush1.msra.mxu0 %v1542
        %1574 = vmatprep.subr.mxu0 0.0
        %1575 = vmatpush1.msra.mxu0 %v1543
        %1576 = vmatprep.subr.mxu0 0.0
        %1577 = vmatpush1.msra.mxu0 0.0
        %1578 = vmatprep.subr.mxu0 0.0
        %1579 = vmatpush1.msra.mxu0 0.0
        %1580 = vmatprep.subr.mxu0 0.0
        %1581 = vmatpush1.msra.mxu0 0.0
        %1582 = vmatprep.subr.mxu0 0.0
        %1583 = vmatpush1.msra.mxu0 0.0
        %1584 = vmatprep.subr.mxu0 0.0
        %1585 = vmatpush1.msra.mxu0 0.0
        %1586 = vmatprep.subr.mxu0 0.0
        %1587 = vmatpush1.msra.mxu0 0.0
        %1588 = vmatprep.subr.mxu0 0.0
        %1589 = vmatpush1.msra.mxu0 0.0
        %1590 = vmatprep.subr.mxu0 0.0
        %1591 = vmatpush1.msra.mxu0 0.0
        %1592 = vmatprep.subr.mxu0 0.0
        %1593 = vmatpush1.msra.mxu0 0.0
        %1594 = vmatprep.subr.mxu0 0.0
        %1595 = vmatpush1.msra.mxu0 0.0
        %1596 = vmatprep.subr.mxu0 0.0
        %1597 = vmatpush1.msra.mxu0 0.0
        %1598 = vmatprep.subr.mxu0 0.0
        %1599 = vmatpush1.msra.mxu0 0.0
        %1600 = vmatprep.subr.mxu0 0.0
        %1601 = vmatpush1.msra.mxu0 0.0
        %1602 = vmatprep.subr.mxu0 0.0
        %1603 = vmatpush1.msra.mxu0 0.0
        %1604 = vmatprep.subr.mxu0 0.0
        %1605 = vmatpush1.msra.mxu0 0.0
        %1606 = vmatprep.subr.mxu0 0.0
        %1607 = vmatpush1.msra.mxu0 0.0
        %1608 = vmatprep.mubr.f32.mxu0 0.0
        %1609 = vmatmul.mubr.f32.gmra.mrb[0].mxu0 %v1525
        %v1610 = vpop.f32.mrb[0].mxu0
        %v1611 = vadd.f32 0.0, %v1610
        %v1612 = vpop.f32.mrb[0].mxu0
        %1613 = vmatprep.mubr.f32.mxu0 0.0
        %1614 = vmatmul.mubr.f32.gmra.mrb[0].mxu0 %v1526
        %v1615 = vpop.f32.mrb[0].mxu0
        %v1616 = vadd.f32 0.0, %v1615
        %v1617 = vpop.f32.mrb[0].mxu0
        %1618 = vdwg.mxu0
        %v1619 = vadd.f32 %v1523, %v1611
        %v1620 = vadd.f32 %v1524, %v1616
        %v1621 = vld [vmem:[#allocation2 + $0x9] sm:$0xff]
        %v1622 = vld [vmem:[#allocation2 + $0x11] sm:$0xff]
        %s1623 = scalar_lea.vmem [#allocation9], 384
        %v1624 = vld [vmem:[%s1623] sm:$0xff]
        %v1625 = vld [vmem:[%s1623 + $0x8] sm:$0xff]
        %v1626 = vld [vmem:[%s1623 + $0x10] sm:$0xff]
        %v1627 = vld [vmem:[%s1623 + $0x18] sm:$0xff]
        %v1628 = vld [vmem:[%s1623 + $0x20] sm:$0xff]
        %v1629 = vld [vmem:[%s1623 + $0x28] sm:$0xff]
        %v1630 = vld [vmem:[%s1623 + $0x30] sm:$0xff]
        %v1631 = vld [vmem:[%s1623 + $0x38] sm:$0xff]
        %v1632 = vld [vmem:[%s1623 + $0x40] sm:$0xff]
        %v1633 = vld [vmem:[%s1623 + $0x48] sm:$0xff]
        %v1634 = vld [vmem:[%s1623 + $0x50] sm:$0xff]
        %v1635 = vld [vmem:[%s1623 + $0x58] sm:$0xff]
        %v1636 = vld [vmem:[%s1623 + $0x60] sm:$0xff]
        %v1637 = vld [vmem:[%s1623 + $0x68] sm:$0xff]
        %v1638 = vld [vmem:[%s1623 + $0x70] sm:$0xff]
        %v1639 = vld [vmem:[%s1623 + $0x78] sm:$0xff]
        %1640 = vmatprep.subr.mxu0 0.0
        %1641 = vmatpush1.msra.mxu0 %v1624
        %1642 = vmatprep.subr.mxu0 0.0
        %1643 = vmatpush1.msra.mxu0 %v1625
        %1644 = vmatprep.subr.mxu0 0.0
        %1645 = vmatpush1.msra.mxu0 %v1626
        %1646 = vmatprep.subr.mxu0 0.0
        %1647 = vmatpush1.msra.mxu0 %v1627
        %1648 = vmatprep.subr.mxu0 0.0
        %1649 = vmatpush1.msra.mxu0 %v1628
        %1650 = vmatprep.subr.mxu0 0.0
        %1651 = vmatpush1.msra.mxu0 %v1629
        %1652 = vmatprep.subr.mxu0 0.0
        %1653 = vmatpush1.msra.mxu0 %v1630
        %1654 = vmatprep.subr.mxu0 0.0
        %1655 = vmatpush1.msra.mxu0 %v1631
        %1656 = vmatprep.subr.mxu0 0.0
        %1657 = vmatpush1.msra.mxu0 %v1632
        %1658 = vmatprep.subr.mxu0 0.0
        %1659 = vmatpush1.msra.mxu0 %v1633
        %1660 = vmatprep.subr.mxu0 0.0
        %1661 = vmatpush1.msra.mxu0 %v1634
        %1662 = vmatprep.subr.mxu0 0.0
        %1663 = vmatpush1.msra.mxu0 %v1635
        %1664 = vmatprep.subr.mxu0 0.0
        %1665 = vmatpush1.msra.mxu0 %v1636
        %1666 = vmatprep.subr.mxu0 0.0
        %1667 = vmatpush1.msra.mxu0 %v1637
        %1668 = vmatprep.subr.mxu0 0.0
        %1669 = vmatpush1.msra.mxu0 %v1638
        %1670 = vmatprep.subr.mxu0 0.0
        %1671 = vmatpush1.msra.mxu0 %v1639
        %1672 = vmatprep.subr.mxu0 0.0
        %1673 = vmatpush1.msra.mxu0 0.0
        %1674 = vmatprep.subr.mxu0 0.0
        %1675 = vmatpush1.msra.mxu0 0.0
        %1676 = vmatprep.subr.mxu0 0.0
        %1677 = vmatpush1.msra.mxu0 0.0
        %1678 = vmatprep.subr.mxu0 0.0
        %1679 = vmatpush1.msra.mxu0 0.0
        %1680 = vmatprep.subr.mxu0 0.0
        %1681 = vmatpush1.msra.mxu0 0.0
        %1682 = vmatprep.subr.mxu0 0.0
        %1683 = vmatpush1.msra.mxu0 0.0
        %1684 = vmatprep.subr.mxu0 0.0
        %1685 = vmatpush1.msra.mxu0 0.0
        %1686 = vmatprep.subr.mxu0 0.0
        %1687 = vmatpush1.msra.mxu0 0.0
        %1688 = vmatprep.subr.mxu0 0.0
        %1689 = vmatpush1.msra.mxu0 0.0
        %1690 = vmatprep.subr.mxu0 0.0
        %1691 = vmatpush1.msra.mxu0 0.0
        %1692 = vmatprep.subr.mxu0 0.0
        %1693 = vmatpush1.msra.mxu0 0.0
        %1694 = vmatprep.subr.mxu0 0.0
        %1695 = vmatpush1.msra.mxu0 0.0
        %1696 = vmatprep.subr.mxu0 0.0
        %1697 = vmatpush1.msra.mxu0 0.0
        %1698 = vmatprep.subr.mxu0 0.0
        %1699 = vmatpush1.msra.mxu0 0.0
        %1700 = vmatprep.subr.mxu0 0.0
        %1701 = vmatpush1.msra.mxu0 0.0
        %1702 = vmatprep.subr.mxu0 0.0
        %1703 = vmatpush1.msra.mxu0 0.0
        %1704 = vmatprep.mubr.f32.mxu0 0.0
        %1705 = vmatmul.mubr.f32.gmra.mrb[0].mxu0 %v1621
        %v1706 = vpop.f32.mrb[0].mxu0
        %v1707 = vadd.f32 0.0, %v1706
        %v1708 = vpop.f32.mrb[0].mxu0
        %1709 = vmatprep.mubr.f32.mxu0 0.0
        %1710 = vmatmul.mubr.f32.gmra.mrb[0].mxu0 %v1622
        %v1711 = vpop.f32.mrb[0].mxu0
        %v1712 = vadd.f32 0.0, %v1711
        %v1713 = vpop.f32.mrb[0].mxu0
        %1714 = vdwg.mxu0
        %v1715 = vadd.f32 %v1619, %v1707
        %v1716 = vadd.f32 %v1620, %v1712
        %v1717 = vld [vmem:[#allocation2 + $0xa] sm:$0xff]
        %v1718 = vld [vmem:[#allocation2 + $0x12] sm:$0xff]
        %s1719 = scalar_lea.vmem [#allocation9], 512
        %v1720 = vld [vmem:[%s1719] sm:$0xff]
        %v1721 = vld [vmem:[%s1719 + $0x8] sm:$0xff]
        %v1722 = vld [vmem:[%s1719 + $0x10] sm:$0xff]
        %v1723 = vld [vmem:[%s1719 + $0x18] sm:$0xff]
        %v1724 = vld [vmem:[%s1719 + $0x20] sm:$0xff]
        %v1725 = vld [vmem:[%s1719 + $0x28] sm:$0xff]
        %v1726 = vld [vmem:[%s1719 + $0x30] sm:$0xff]
        %v1727 = vld [vmem:[%s1719 + $0x38] sm:$0xff]
        %v1728 = vld [vmem:[%s1719 + $0x40] sm:$0xff]
        %v1729 = vld [vmem:[%s1719 + $0x48] sm:$0xff]
        %v1730 = vld [vmem:[%s1719 + $0x50] sm:$0xff]
        %v1731 = vld [vmem:[%s1719 + $0x58] sm:$0xff]
        %v1732 = vld [vmem:[%s1719 + $0x60] sm:$0xff]
        %v1733 = vld [vmem:[%s1719 + $0x68] sm:$0xff]
        %v1734 = vld [vmem:[%s1719 + $0x70] sm:$0xff]
        %v1735 = vld [vmem:[%s1719 + $0x78] sm:$0xff]
        %1736 = vmatprep.subr.mxu0 0.0
        %1737 = vmatpush1.msra.mxu0 %v1720
        %1738 = vmatprep.subr.mxu0 0.0
        %1739 = vmatpush1.msra.mxu0 %v1721
        %1740 = vmatprep.subr.mxu0 0.0
        %1741 = vmatpush1.msra.mxu0 %v1722
        %1742 = vmatprep.subr.mxu0 0.0
        %1743 = vmatpush1.msra.mxu0 %v1723
        %1744 = vmatprep.subr.mxu0 0.0
        %1745 = vmatpush1.msra.mxu0 %v1724
        %1746 = vmatprep.subr.mxu0 0.0
        %1747 = vmatpush1.msra.mxu0 %v1725
        %1748 = vmatprep.subr.mxu0 0.0
        %1749 = vmatpush1.msra.mxu0 %v1726
        %1750 = vmatprep.subr.mxu0 0.0
        %1751 = vmatpush1.msra.mxu0 %v1727
        %1752 = vmatprep.subr.mxu0 0.0
        %1753 = vmatpush1.msra.mxu0 %v1728
        %1754 = vmatprep.subr.mxu0 0.0
        %1755 = vmatpush1.msra.mxu0 %v1729
        %1756 = vmatprep.subr.mxu0 0.0
        %1757 = vmatpush1.msra.mxu0 %v1730
        %1758 = vmatprep.subr.mxu0 0.0
        %1759 = vmatpush1.msra.mxu0 %v1731
        %1760 = vmatprep.subr.mxu0 0.0
        %1761 = vmatpush1.msra.mxu0 %v1732
        %1762 = vmatprep.subr.mxu0 0.0
        %1763 = vmatpush1.msra.mxu0 %v1733
        %1764 = vmatprep.subr.mxu0 0.0
        %1765 = vmatpush1.msra.mxu0 %v1734
        %1766 = vmatprep.subr.mxu0 0.0
        %1767 = vmatpush1.msra.mxu0 %v1735
        %1768 = vmatprep.subr.mxu0 0.0
        %1769 = vmatpush1.msra.mxu0 0.0
        %1770 = vmatprep.subr.mxu0 0.0
        %1771 = vmatpush1.msra.mxu0 0.0
        %1772 = vmatprep.subr.mxu0 0.0
        %1773 = vmatpush1.msra.mxu0 0.0
        %1774 = vmatprep.subr.mxu0 0.0
        %1775 = vmatpush1.msra.mxu0 0.0
        %1776 = vmatprep.subr.mxu0 0.0
        %1777 = vmatpush1.msra.mxu0 0.0
        %1778 = vmatprep.subr.mxu0 0.0
        %1779 = vmatpush1.msra.mxu0 0.0
        %1780 = vmatprep.subr.mxu0 0.0
        %1781 = vmatpush1.msra.mxu0 0.0
        %1782 = vmatprep.subr.mxu0 0.0
        %1783 = vmatpush1.msra.mxu0 0.0
        %1784 = vmatprep.subr.mxu0 0.0
        %1785 = vmatpush1.msra.mxu0 0.0
        %1786 = vmatprep.subr.mxu0 0.0
        %1787 = vmatpush1.msra.mxu0 0.0
        %1788 = vmatprep.subr.mxu0 0.0
        %1789 = vmatpush1.msra.mxu0 0.0
        %1790 = vmatprep.subr.mxu0 0.0
        %1791 = vmatpush1.msra.mxu0 0.0
        %1792 = vmatprep.subr.mxu0 0.0
        %1793 = vmatpush1.msra.mxu0 0.0
        %1794 = vmatprep.subr.mxu0 0.0
        %1795 = vmatpush1.msra.mxu0 0.0
        %1796 = vmatprep.subr.mxu0 0.0
        %1797 = vmatpush1.msra.mxu0 0.0
        %1798 = vmatprep.subr.mxu0 0.0
        %1799 = vmatpush1.msra.mxu0 0.0
        %1800 = vmatprep.mubr.f32.mxu0 0.0
        %1801 = vmatmul.mubr.f32.gmra.mrb[0].mxu0 %v1717
        %v1802 = vpop.f32.mrb[0].mxu0
        %v1803 = vadd.f32 0.0, %v1802
        %v1804 = vpop.f32.mrb[0].mxu0
        %1805 = vmatprep.mubr.f32.mxu0 0.0
        %1806 = vmatmul.mubr.f32.gmra.mrb[0].mxu0 %v1718
        %v1807 = vpop.f32.mrb[0].mxu0
        %v1808 = vadd.f32 0.0, %v1807
        %v1809 = vpop.f32.mrb[0].mxu0
        %1810 = vdwg.mxu0
        %v1811 = vadd.f32 %v1715, %v1803
        %v1812 = vadd.f32 %v1716, %v1808
        %1813 = vst [vmem:[%s340] sm:$0xff] %v1811
        %1814 = vst [vmem:[%s340 + $0x8] sm:$0xff] %v1812
        %s1815 = sand.u32 %s186, 1
        %s1816 = scalar_lea.sflag [#allocation5], %s1815
        %s1817 = sand.u32 %s186, 1
        %s1818 = smul.addr %s1817, 16
        %s1819 = scalar_lea.vmem [#allocation11], %s1818
        // Predicated region
        $region65: #{tpu_custom_call.1} parent=47 // pred_check
          %p1820 = pneg %p196
        $region66: #{tpu_custom_call.1} parent=47 // pred_check_branch
          %1822 = sbr.rel (%p1820) target = $region68
        $region67: #{tpu_custom_call.1} parent=47 // pred_region
          %s1824 = ssub.s32 256, 256
          %1825 = vsyncadd %s1816, %s1824
          %s1826 = smul.addr %s26, 2
          %s1827 = smul.addr %s1826, 128
          %s1828 = scalar_lea.hbm %s7, %s1827
          %s1829 = sshll.u32 %s1819, 4
          %s1830 = int_to_ptr.vmem [resolvable:$true] %s1829
          %1835 = dma.vmem_to_hbm [thread:$0]  %s1830, 256, %s1828, %s1816, 128, 128, 8
        $region68: #{tpu_custom_call.1} parent=47 // pred_fallthru
          _
      $region48: #{tpu_custom_call.1} parent=5 // pred_fallthru
        _
      %p1836 = scmp.le.s32.totalorder 2, %s21
      // Predicated region
      $region69: #{tpu_custom_call.1} parent=5 // pred_check
        %p1837 = pneg %p1836
      $region70: #{tpu_custom_call.1} parent=5 // pred_check_branch
        %1839 = sbr.rel (%p1837) target = $region72
      $region71: #{tpu_custom_call.1} parent=5 // pred_region
        %s1840 = ssub.s32 %s21, 2
        // Predicated region
        $region73: #{tpu_custom_call.1} parent=71 // pred_check
          %p1841 = pneg %p202
        $region74: #{tpu_custom_call.1} parent=71 // pred_check_branch
          %1843 = sbr.rel (%p1841) target = $region76
        $region75: #{tpu_custom_call.1} parent=71 // pred_region
          %s1844 = sand.u32 %s187, 1
          %s1845 = scalar_lea.sflag [#allocation5], %s1844
          %s1846 = sand.u32 %s187, 1
          %s1847 = smul.addr %s1846, 16
          %s1848 = scalar_lea.vmem [#allocation11], %s1847
          %1849 = dma.done %s1845, 256
        $region76: #{tpu_custom_call.1} parent=71 // pred_fallthru
          _
      $region72: #{tpu_custom_call.1} parent=5 // pred_fallthru
        _
    $region6: #{tpu_custom_call.1} parent=1 // loop_footer
      %s25 = sadd.s32 1, %s21
    $region7: #{tpu_custom_call.1} parent=1 // loop_footer_branch
      %20 = sbr.rel target = $region3
    $region8: #{tpu_custom_call.1} parent=1 // loop_exit
      _
    %1850 = vsyncpa [#allocation4], 1
    %s1851 = scalar_lea.sflag [#allocation4], 1
    %1852 = vsyncpa %s1851, 1
    %1853 = vsyncpa [#allocation7], 1
    %1854 = vsyncpa [#allocation10], 1
    %1855 = vsyncpa [#allocation5], 1
    %s1856 = scalar_lea.sflag [#allocation5], 1
    %1857 = vsyncpa %s1856, 1

</llo_original>
